<compile_context>
chip_gen: v7x
topology: tpu7x:2x2x1
jax: 0.10.0
libtpu: 0.0.40
codegen_flags: <defaults>
</compile_context>

<pallas_src>
import jax
import jax.numpy as jnp
from jax import lax
from jax.experimental import pallas as pl
from jax.experimental.pallas import tpu as pltpu


def local_rep_kernel(x_hbm, wconv_ref, bconv_ref, wout_ref, bout_ref, o_ref,
                     buf, sem):
    # x_hbm:     (B, H+2, cpg, W+2, D)   zero-padded, BN already applied (HBM)
    # wconv_ref: (cpg*9, D)              row c*9 + kh*3 + kw == torch_w[:, c, kh, kw]
    # bconv_ref: (1, D)
    # wout_ref:  (D, D) bf16             == torch_linear_w.T  (in, out)
    # bout_ref:  (1, D)
    # o_ref:     (rows_per_group, D)     rows_per_group = nt_in * TH * W
    # buf:       (2, TH+2, cpg, W+2, D)  VMEM double buffer for row-tile slabs
    # sem:       DMA semaphores, shape (2,)
    b = pl.program_id(0)
    g = pl.program_id(1)

    _, thp2, cpg, wp2, dmod = buf.shape
    th = thp2 - 2
    w = wp2 - 2
    rows_block = o_ref.shape[0]
    nt_in = rows_block // (th * w)          # row tiles handled by this grid step

    def start_fetch(t, slot):
        # rows [row0, row0 + th + 2) of the padded slab: 1-row halo on each side.
        row0 = (g * nt_in + t) * th
        pltpu.make_async_copy(
            x_hbm.at[b, pl.ds(row0, th + 2)],
            buf.at[slot],
            sem.at[slot],
        ).start()

    def wait_fetch(slot):
        # shape-only descriptor (same extents) for semaphore accounting
        pltpu.make_async_copy(
            x_hbm.at[b, pl.ds(0, th + 2)],
            buf.at[slot],
            sem.at[slot],
        ).wait()

    # prime the pipeline
    start_fetch(0, 0)

    @pl.loop(0, nt_in)
    def _(t):
        slot = t & 1
        wait_fetch(slot)

        # prefetch the next row tile while computing this one
        @pl.when(t + 1 < nt_in)
        def _():
            start_fetch(t + 1, 1 - slot)

        # --- grouped ("depthwise over groups") 3x3 conv: 9*cpg shifted MACs ---
        acc = jnp.zeros((th, w, dmod), jnp.float32)
        for c in range(cpg):
            for kh in range(3):
                for kw in range(3):
                    tap = buf[slot, kh:kh + th, c, kw:kw + w, :]   # (TH, W, D)
                    acc = acc + tap * wconv_ref[c * 9 + kh * 3 + kw, :]
        conv = acc + bconv_ref[0, :]                                # (TH, W, D)

        # --- Linear(d_model, d_model) on the MXU, bf16 in / f32 accumulate ---
        y = jnp.dot(conv.reshape(th * w, dmod).astype(jnp.bfloat16),
                    wout_ref[...],
                    preferred_element_type=jnp.float32)
        y = y + bout_ref[...]

        r0 = pl.multiple_of(t * (th * w), th * w)
        o_ref[pl.ds(r0, th * w), :] = y.astype(o_ref.dtype)


def local_representation(x, params, d_model, *, tile_rows=None, row_groups=None):
    """x: NCHW float32 (B, dim, H, W) -> (B, H*W, d_model)."""
    B, C, H, W = x.shape
    assert C % d_model == 0
    cpg = C // d_model
    D = d_model
    eps = 1e-5

    # ---- row tiling configuration -----------------------------------------
    if tile_rows is None:
        tile_rows = 16 if H % 16 == 0 else H
    assert H % tile_rows == 0
    nt = H // tile_rows
    if row_groups is None:
        row_groups = 2 if nt % 2 == 0 else 1
    assert nt % row_groups == 0
    nt_in = nt // row_groups
    rows_per_group = nt_in * tile_rows * W
    assert (tile_rows * W) % 8 == 0 and D % 128 == 0

    # ---- BatchNorm (train mode -> biased batch statistics) -----------------
    mean = jnp.mean(x, axis=(0, 2, 3))
    var = jnp.var(x, axis=(0, 2, 3))
    scale = params["bn_gamma"] / jnp.sqrt(var + eps)                  # (C,)
    shift = params["bn_beta"] - mean * scale                          # (C,)

    # BN affine fused into the (already required) relayout pass; zero padding
    # is inserted AFTER the affine, matching Conv2d's padding of the BN output.
    xn = x * scale[None, :, None, None] + shift[None, :, None, None]
    # channel c_orig = g*cpg + c  ->  axes (B, H, c, W, g); g on the lane dim.
    x_r = xn.reshape(B, D, cpg, H, W).transpose(0, 3, 2, 4, 1)        # (B,H,cpg,W,D)
    x_pad = jnp.pad(x_r, ((0, 0), (1, 1), (0, 0), (1, 1), (0, 0)))    # (B,H+2,cpg,W+2,D)

    # ---- weight relayout ----------------------------------------------------
    wconv = jnp.transpose(params["conv_w"], (1, 2, 3, 0)).reshape(cpg * 9, D)
    bconv = params["conv_b"].reshape(1, D)
    wout = params["lin_w"].T.astype(jnp.bfloat16)                     # (in, out)
    bout = params["lin_b"].reshape(1, D)

    # ---- VMEM budget ---------------------------------------------------------
    buf_bytes = 2 * (tile_rows + 2) * cpg * (W + 2) * D * 4
    out_bytes = 2 * rows_per_group * D * 4
    w_bytes = 2 * (cpg * 9 * D * 4 + D * 4 + D * D * 2 + D * 4)
    vmem_limit = int(min(64 << 20, max(2 * (buf_bytes + out_bytes + w_bytes),
                                       32 << 20)))

    return pl.pallas_call(
        local_rep_kernel,
        out_shape=jax.ShapeDtypeStruct((B, H * W, D), jnp.float32),
        grid_spec=pltpu.PrefetchScalarGridSpec(
            num_scalar_prefetch=0,
            grid=(B, row_groups),
            in_specs=[
                pl.BlockSpec(memory_space=pl.ANY),          # x_pad stays in HBM
                pl.BlockSpec((cpg * 9, D), lambda b, g: (0, 0)),
                pl.BlockSpec((1, D), lambda b, g: (0, 0)),
                pl.BlockSpec((D, D), lambda b, g: (0, 0)),
                pl.BlockSpec((1, D), lambda b, g: (0, 0)),
            ],
            out_specs=pl.BlockSpec((None, rows_per_group, D),
                                   lambda b, g: (b, g, 0)),
            scratch_shapes=[
                pltpu.VMEM((2, tile_rows + 2, cpg, W + 2, D), jnp.float32),
                pltpu.SemaphoreType.DMA((2,)),
            ],
        ),
        compiler_params=pltpu.CompilerParams(
            dimension_semantics=("parallel", "parallel"),
            vmem_limit_bytes=vmem_limit),
    )(x_pad, wconv, bconv, wout, bout)


def reference(x, params, d_model):
    """Pure-JAX reference mirroring the PyTorch forward."""
    eps = 1e-5
    mean = jnp.mean(x, axis=(0, 2, 3), keepdims=True)
    var = jnp.var(x, axis=(0, 2, 3), keepdims=True)
    xn = (x - mean) / jnp.sqrt(var + eps)
    xn = xn * params["bn_gamma"][None, :, None, None] \
        + params["bn_beta"][None, :, None, None]
    conv = lax.conv_general_dilated(
        xn, params["conv_w"], window_strides=(1, 1), padding="SAME",
        dimension_numbers=("NCHW", "OIHW", "NCHW"),
        feature_group_count=d_model,
        precision=lax.Precision.HIGHEST)
    conv = conv + params["conv_b"][None, :, None, None]
    B, D, H, W = conv.shape
    t = conv.reshape(B, D, H * W).transpose(0, 2, 1)
    return jnp.matmul(t, params["lin_w"].T,
                      precision=lax.Precision.HIGHEST) + params["lin_b"]


if __name__ == "__main__":
    # Small shapes consistent with the module (cpg = dim // d_model = 4, same
    # ratio as the defaults 1024/256).  tile_rows=4, row_groups=2 exercises
    # both the multi-step grid and the in-kernel double-buffered DMA loop.
    B, d_model, dim, H, W = 2, 128, 512, 16, 16

    key = jax.random.PRNGKey(0)
    ks = jax.random.split(key, 7)
    x = jax.random.normal(ks[0], (B, dim, H, W), jnp.float32)
    params = {
        "bn_gamma": 1.0 + 0.1 * jax.random.normal(ks[1], (dim,), jnp.float32),
        "bn_beta": 0.1 * jax.random.normal(ks[2], (dim,), jnp.float32),
        "conv_w": 0.1 * jax.random.normal(ks[3], (d_model, dim // d_model, 3, 3),
                                          jnp.float32),
        "conv_b": 0.1 * jax.random.normal(ks[4], (d_model,), jnp.float32),
        "lin_w": 0.05 * jax.random.normal(ks[5], (d_model, d_model), jnp.float32),
        "lin_b": 0.1 * jax.random.normal(ks[6], (d_model,), jnp.float32),
    }

    out = local_representation(x, params, d_model, tile_rows=4, row_groups=2)
    jax.block_until_ready(out)

    ref = reference(x, params, d_model)
    assert out.shape == (B, H * W, d_model), out.shape
    max_err = float(jnp.max(jnp.abs(out - ref)))
    assert jnp.allclose(out, ref, atol=2e-2, rtol=2e-2), max_err
    print("KERNEL_OK")
</pallas_src>

<mosaic_0001>
module attributes {stable_mosaic.version = 11 : i64} {
  func.func @local_rep_kernel(%arg0: i32, %arg1: i32, %arg2: memref<2x18x4x18x128xf32, #tpu.memory_space<any>>, %arg3: memref<36x128xf32, #tpu.memory_space<vmem>>, %arg4: memref<1x128xf32, #tpu.memory_space<vmem>>, %arg5: memref<128x128xbf16, #tpu.memory_space<vmem>>, %arg6: memref<1x128xf32, #tpu.memory_space<vmem>>, %arg7: memref<1x128x128xf32, #tpu.memory_space<vmem>>, %arg8: memref<2x6x4x18x128xf32, #tpu.memory_space<vmem>>, %arg9: memref<2x!tpu.dma_semaphore, #tpu.memory_space<semaphore_mem>>) attributes {dimension_semantics = [#tpu.dimension_semantics<parallel>, #tpu.dimension_semantics<parallel>], iteration_bounds = array<i64: 2, 2>, scalar_prefetch = 0 : i64, scratch_operands = 2 : i64, tpu.core_type = #tpu.core_type<tc>, window_params = [{}, {pipeline_mode = #tpu.pipeline_mode<synchronous>, transform_indices = @transform_1, window_bounds = array<i64: 36, 128>}, {pipeline_mode = #tpu.pipeline_mode<synchronous>, transform_indices = @transform_2, window_bounds = array<i64: 1, 128>}, {pipeline_mode = #tpu.pipeline_mode<synchronous>, transform_indices = @transform_3, window_bounds = array<i64: 128, 128>}, {pipeline_mode = #tpu.pipeline_mode<synchronous>, transform_indices = @transform_4, window_bounds = array<i64: 1, 128>}, {transform_indices = @transform_5, window_bounds = array<i64: 1, 128, 128>}]} {
    %c2_i32 = arith.constant 2 : i32
    %0 = arith.muli %arg1, %c2_i32 : i32
    %c0_i32 = arith.constant 0 : i32
    %1 = arith.addi %0, %c0_i32 : i32
    %c4_i32 = arith.constant 4 : i32
    %2 = arith.muli %1, %c4_i32 : i32
    %c0_i32_0 = arith.constant 0 : i32
    %c0_i32_1 = arith.constant 0 : i32
    %c0_i32_2 = arith.constant 0 : i32
    %c0_i32_3 = arith.constant 0 : i32
    %c0_i32_4 = arith.constant 0 : i32
    %3 = tpu.memref_slice %arg2[%arg0, %2, %c0_i32_2, %c0_i32_3, %c0_i32_4] : memref<2x18x4x18x128xf32, #tpu.memory_space<any>> -> memref<1x6x4x18x128xf32, #tpu.memory_space<any>>
    %4 = tpu.memref_squeeze %3 : memref<1x6x4x18x128xf32, #tpu.memory_space<any>> -> memref<6x4x18x128xf32, #tpu.memory_space<any>>
    %c0_i32_5 = arith.constant 0 : i32
    %c0_i32_6 = arith.constant 0 : i32
    %c0_i32_7 = arith.constant 0 : i32
    %c0_i32_8 = arith.constant 0 : i32
    %5 = tpu.memref_slice %arg8[%c0_i32_0, %c0_i32_5, %c0_i32_6, %c0_i32_7, %c0_i32_8] : memref<2x6x4x18x128xf32, #tpu.memory_space<vmem>> -> memref<1x6x4x18x128xf32, #tpu.memory_space<vmem>>
    %6 = tpu.memref_squeeze %5 : memref<1x6x4x18x128xf32, #tpu.memory_space<vmem>> -> memref<6x4x18x128xf32, #tpu.memory_space<vmem>>
    %7 = tpu.memref_slice %arg9[%c0_i32_1] : memref<2x!tpu.dma_semaphore, #tpu.memory_space<semaphore_mem>> -> memref<1x!tpu.dma_semaphore, #tpu.memory_space<semaphore_mem>>
    %8 = tpu.memref_squeeze %7 : memref<1x!tpu.dma_semaphore, #tpu.memory_space<semaphore_mem>> -> memref<!tpu.dma_semaphore, #tpu.memory_space<semaphore_mem>>
    tpu.enqueue_dma source(%4 : memref<6x4x18x128xf32, #tpu.memory_space<any>>) target(%6 : memref<6x4x18x128xf32, #tpu.memory_space<vmem>>) target_semaphore(%8 : memref<!tpu.dma_semaphore, #tpu.memory_space<semaphore_mem>>)
    %c0_i32_9 = arith.constant 0 : i32
    %c2_i32_10 = arith.constant 2 : i32
    %9 = arith.addi %c0_i32_9, %c2_i32_10 : i32
    %c1_i32 = arith.constant 1 : i32
    scf.for %arg10 = %c0_i32_9 to %9 step %c1_i32  : i32 {
      %c1_i32_12 = arith.constant 1 : i32
      %10 = arith.muli %arg10, %c1_i32_12 : i32
      %c0_i32_13 = arith.constant 0 : i32
      %11 = arith.addi %c0_i32_13, %10 : i32
      %c1_i32_14 = arith.constant 1 : i32
      %12 = arith.andi %11, %c1_i32_14 : i32
      %c0_i32_15 = arith.constant 0 : i32
      %c0_i32_16 = arith.constant 0 : i32
      %c0_i32_17 = arith.constant 0 : i32
      %c0_i32_18 = arith.constant 0 : i32
      %13 = tpu.memref_slice %arg2[%arg0, %c0_i32_15, %c0_i32_16, %c0_i32_17, %c0_i32_18] : memref<2x18x4x18x128xf32, #tpu.memory_space<any>> -> memref<1x6x4x18x128xf32, #tpu.memory_space<any>>
      %14 = tpu.memref_squeeze %13 : memref<1x6x4x18x128xf32, #tpu.memory_space<any>> -> memref<6x4x18x128xf32, #tpu.memory_space<any>>
      %c0_i32_19 = arith.constant 0 : i32
      %c0_i32_20 = arith.constant 0 : i32
      %c0_i32_21 = arith.constant 0 : i32
      %c0_i32_22 = arith.constant 0 : i32
      %15 = tpu.memref_slice %arg8[%12, %c0_i32_19, %c0_i32_20, %c0_i32_21, %c0_i32_22] : memref<2x6x4x18x128xf32, #tpu.memory_space<vmem>> -> memref<1x6x4x18x128xf32, #tpu.memory_space<vmem>>
      %16 = tpu.memref_squeeze %15 : memref<1x6x4x18x128xf32, #tpu.memory_space<vmem>> -> memref<6x4x18x128xf32, #tpu.memory_space<vmem>>
      %17 = tpu.memref_slice %arg9[%12] : memref<2x!tpu.dma_semaphore, #tpu.memory_space<semaphore_mem>> -> memref<1x!tpu.dma_semaphore, #tpu.memory_space<semaphore_mem>>
      %18 = tpu.memref_squeeze %17 : memref<1x!tpu.dma_semaphore, #tpu.memory_space<semaphore_mem>> -> memref<!tpu.dma_semaphore, #tpu.memory_space<semaphore_mem>>
      tpu.wait_dma2 semaphore(%18 : memref<!tpu.dma_semaphore, #tpu.memory_space<semaphore_mem>>) src(%14 : memref<6x4x18x128xf32, #tpu.memory_space<any>>) dst(%16 : memref<6x4x18x128xf32, #tpu.memory_space<vmem>>)
      %c1_i32_23 = arith.constant 1 : i32
      %19 = arith.addi %11, %c1_i32_23 : i32
      %c2_i32_24 = arith.constant 2 : i32
      %20 = arith.cmpi slt, %19, %c2_i32_24 : i32
      %21 = arith.extui %20 : i1 to i32
      %c0_i32_25 = arith.constant 0 : i32
      %22 = arith.cmpi ne, %21, %c0_i32_25 : i32
      scf.if %22 {
        %c1_i32_215 = arith.constant 1 : i32
        %366 = arith.addi %11, %c1_i32_215 : i32
        %c1_i32_216 = arith.constant 1 : i32
        %367 = arith.subi %c1_i32_216, %12 : i32
        %c2_i32_217 = arith.constant 2 : i32
        %368 = arith.muli %arg1, %c2_i32_217 : i32
        %369 = arith.addi %368, %366 : i32
        %c4_i32_218 = arith.constant 4 : i32
        %370 = arith.muli %369, %c4_i32_218 : i32
        %c0_i32_219 = arith.constant 0 : i32
        %c0_i32_220 = arith.constant 0 : i32
        %c0_i32_221 = arith.constant 0 : i32
        %371 = tpu.memref_slice %arg2[%arg0, %370, %c0_i32_219, %c0_i32_220, %c0_i32_221] : memref<2x18x4x18x128xf32, #tpu.memory_space<any>> -> memref<1x6x4x18x128xf32, #tpu.memory_space<any>>
        %372 = tpu.memref_squeeze %371 : memref<1x6x4x18x128xf32, #tpu.memory_space<any>> -> memref<6x4x18x128xf32, #tpu.memory_space<any>>
        %c0_i32_222 = arith.constant 0 : i32
        %c0_i32_223 = arith.constant 0 : i32
        %c0_i32_224 = arith.constant 0 : i32
        %c0_i32_225 = arith.constant 0 : i32
        %373 = tpu.memref_slice %arg8[%367, %c0_i32_222, %c0_i32_223, %c0_i32_224, %c0_i32_225] : memref<2x6x4x18x128xf32, #tpu.memory_space<vmem>> -> memref<1x6x4x18x128xf32, #tpu.memory_space<vmem>>
        %374 = tpu.memref_squeeze %373 : memref<1x6x4x18x128xf32, #tpu.memory_space<vmem>> -> memref<6x4x18x128xf32, #tpu.memory_space<vmem>>
        %375 = tpu.memref_slice %arg9[%367] : memref<2x!tpu.dma_semaphore, #tpu.memory_space<semaphore_mem>> -> memref<1x!tpu.dma_semaphore, #tpu.memory_space<semaphore_mem>>
        %376 = tpu.memref_squeeze %375 : memref<1x!tpu.dma_semaphore, #tpu.memory_space<semaphore_mem>> -> memref<!tpu.dma_semaphore, #tpu.memory_space<semaphore_mem>>
        tpu.enqueue_dma source(%372 : memref<6x4x18x128xf32, #tpu.memory_space<any>>) target(%374 : memref<6x4x18x128xf32, #tpu.memory_space<vmem>>) target_semaphore(%376 : memref<!tpu.dma_semaphore, #tpu.memory_space<semaphore_mem>>)
      } else {
      }
      %cst = arith.constant 0.000000e+00 : f32
      %23 = vector.broadcast %cst : f32 to vector<4x16x128xf32>
      %24 = arith.index_cast %12 : i32 to index
      %c0 = arith.constant 0 : index
      %c0_26 = arith.constant 0 : index
      %c0_27 = arith.constant 0 : index
      %c0_28 = arith.constant 0 : index
      %25 = vector.load %arg8[%24, %c0, %c0_26, %c0_27, %c0_28] : memref<2x6x4x18x128xf32, #tpu.memory_space<vmem>>, vector<1x4x1x16x128xf32>
      %26 = vector.shape_cast %25 : vector<1x4x1x16x128xf32> to vector<4x16x128xf32>
      %c0_29 = arith.constant 0 : index
      %c0_30 = arith.constant 0 : index
      %27 = vector.load %arg3[%c0_29, %c0_30] : memref<36x128xf32, #tpu.memory_space<vmem>>, vector<1x128xf32>
      %28 = vector.shape_cast %27 : vector<1x128xf32> to vector<128xf32>
      %29 = vector.shape_cast %28 : vector<128xf32> to vector<1x1x128xf32>
      %30 = vector.broadcast %29 : vector<1x1x128xf32> to vector<4x16x128xf32>
      %31 = arith.mulf %26, %30 : vector<4x16x128xf32>
      %32 = arith.addf %23, %31 : vector<4x16x128xf32>
      %33 = arith.index_cast %12 : i32 to index
      %c0_31 = arith.constant 0 : index
      %c0_32 = arith.constant 0 : index
      %c1 = arith.constant 1 : index
      %c0_33 = arith.constant 0 : index
      %34 = vector.load %arg8[%33, %c0_31, %c0_32, %c1, %c0_33] : memref<2x6x4x18x128xf32, #tpu.memory_space<vmem>>, vector<1x4x1x16x128xf32>
      %35 = vector.shape_cast %34 : vector<1x4x1x16x128xf32> to vector<4x16x128xf32>
      %c1_34 = arith.constant 1 : index
      %c0_35 = arith.constant 0 : index
      %36 = vector.load %arg3[%c1_34, %c0_35] : memref<36x128xf32, #tpu.memory_space<vmem>>, vector<1x128xf32>
      %37 = vector.shape_cast %36 : vector<1x128xf32> to vector<128xf32>
      %38 = vector.shape_cast %37 : vector<128xf32> to vector<1x1x128xf32>
      %39 = vector.broadcast %38 : vector<1x1x128xf32> to vector<4x16x128xf32>
      %40 = arith.mulf %35, %39 : vector<4x16x128xf32>
      %41 = arith.addf %32, %40 : vector<4x16x128xf32>
      %42 = arith.index_cast %12 : i32 to index
      %c0_36 = arith.constant 0 : index
      %c0_37 = arith.constant 0 : index
      %c2 = arith.constant 2 : index
      %c0_38 = arith.constant 0 : index
      %43 = vector.load %arg8[%42, %c0_36, %c0_37, %c2, %c0_38] : memref<2x6x4x18x128xf32, #tpu.memory_space<vmem>>, vector<1x4x1x16x128xf32>
      %44 = vector.shape_cast %43 : vector<1x4x1x16x128xf32> to vector<4x16x128xf32>
      %c2_39 = arith.constant 2 : index
      %c0_40 = arith.constant 0 : index
      %45 = vector.load %arg3[%c2_39, %c0_40] : memref<36x128xf32, #tpu.memory_space<vmem>>, vector<1x128xf32>
      %46 = vector.shape_cast %45 : vector<1x128xf32> to vector<128xf32>
      %47 = vector.shape_cast %46 : vector<128xf32> to vector<1x1x128xf32>
      %48 = vector.broadcast %47 : vector<1x1x128xf32> to vector<4x16x128xf32>
      %49 = arith.mulf %44, %48 : vector<4x16x128xf32>
      %50 = arith.addf %41, %49 : vector<4x16x128xf32>
      %51 = arith.index_cast %12 : i32 to index
      %c1_41 = arith.constant 1 : index
      %c0_42 = arith.constant 0 : index
      %c0_43 = arith.constant 0 : index
      %c0_44 = arith.constant 0 : index
      %52 = vector.load %arg8[%51, %c1_41, %c0_42, %c0_43, %c0_44] : memref<2x6x4x18x128xf32, #tpu.memory_space<vmem>>, vector<1x4x1x16x128xf32>
      %53 = vector.shape_cast %52 : vector<1x4x1x16x128xf32> to vector<4x16x128xf32>
      %c3 = arith.constant 3 : index
      %c0_45 = arith.constant 0 : index
      %54 = vector.load %arg3[%c3, %c0_45] : memref<36x128xf32, #tpu.memory_space<vmem>>, vector<1x128xf32>
      %55 = vector.shape_cast %54 : vector<1x128xf32> to vector<128xf32>
      %56 = vector.shape_cast %55 : vector<128xf32> to vector<1x1x128xf32>
      %57 = vector.broadcast %56 : vector<1x1x128xf32> to vector<4x16x128xf32>
      %58 = arith.mulf %53, %57 : vector<4x16x128xf32>
      %59 = arith.addf %50, %58 : vector<4x16x128xf32>
      %60 = arith.index_cast %12 : i32 to index
      %c1_46 = arith.constant 1 : index
      %c0_47 = arith.constant 0 : index
      %c1_48 = arith.constant 1 : index
      %c0_49 = arith.constant 0 : index
      %61 = vector.load %arg8[%60, %c1_46, %c0_47, %c1_48, %c0_49] : memref<2x6x4x18x128xf32, #tpu.memory_space<vmem>>, vector<1x4x1x16x128xf32>
      %62 = vector.shape_cast %61 : vector<1x4x1x16x128xf32> to vector<4x16x128xf32>
      %c4 = arith.constant 4 : index
      %c0_50 = arith.constant 0 : index
      %63 = vector.load %arg3[%c4, %c0_50] : memref<36x128xf32, #tpu.memory_space<vmem>>, vector<1x128xf32>
      %64 = vector.shape_cast %63 : vector<1x128xf32> to vector<128xf32>
      %65 = vector.shape_cast %64 : vector<128xf32> to vector<1x1x128xf32>
      %66 = vector.broadcast %65 : vector<1x1x128xf32> to vector<4x16x128xf32>
      %67 = arith.mulf %62, %66 : vector<4x16x128xf32>
      %68 = arith.addf %59, %67 : vector<4x16x128xf32>
      %69 = arith.index_cast %12 : i32 to index
      %c1_51 = arith.constant 1 : index
      %c0_52 = arith.constant 0 : index
      %c2_53 = arith.constant 2 : index
      %c0_54 = arith.constant 0 : index
      %70 = vector.load %arg8[%69, %c1_51, %c0_52, %c2_53, %c0_54] : memref<2x6x4x18x128xf32, #tpu.memory_space<vmem>>, vector<1x4x1x16x128xf32>
      %71 = vector.shape_cast %70 : vector<1x4x1x16x128xf32> to vector<4x16x128xf32>
      %c5 = arith.constant 5 : index
      %c0_55 = arith.constant 0 : index
      %72 = vector.load %arg3[%c5, %c0_55] : memref<36x128xf32, #tpu.memory_space<vmem>>, vector<1x128xf32>
      %73 = vector.shape_cast %72 : vector<1x128xf32> to vector<128xf32>
      %74 = vector.shape_cast %73 : vector<128xf32> to vector<1x1x128xf32>
      %75 = vector.broadcast %74 : vector<1x1x128xf32> to vector<4x16x128xf32>
      %76 = arith.mulf %71, %75 : vector<4x16x128xf32>
      %77 = arith.addf %68, %76 : vector<4x16x128xf32>
      %78 = arith.index_cast %12 : i32 to index
      %c2_56 = arith.constant 2 : index
      %c0_57 = arith.constant 0 : index
      %c0_58 = arith.constant 0 : index
      %c0_59 = arith.constant 0 : index
      %79 = vector.load %arg8[%78, %c2_56, %c0_57, %c0_58, %c0_59] : memref<2x6x4x18x128xf32, #tpu.memory_space<vmem>>, vector<1x4x1x16x128xf32>
      %80 = vector.shape_cast %79 : vector<1x4x1x16x128xf32> to vector<4x16x128xf32>
      %c6 = arith.constant 6 : index
      %c0_60 = arith.constant 0 : index
      %81 = vector.load %arg3[%c6, %c0_60] : memref<36x128xf32, #tpu.memory_space<vmem>>, vector<1x128xf32>
      %82 = vector.shape_cast %81 : vector<1x128xf32> to vector<128xf32>
      %83 = vector.shape_cast %82 : vector<128xf32> to vector<1x1x128xf32>
      %84 = vector.broadcast %83 : vector<1x1x128xf32> to vector<4x16x128xf32>
      %85 = arith.mulf %80, %84 : vector<4x16x128xf32>
      %86 = arith.addf %77, %85 : vector<4x16x128xf32>
      %87 = arith.index_cast %12 : i32 to index
      %c2_61 = arith.constant 2 : index
      %c0_62 = arith.constant 0 : index
      %c1_63 = arith.constant 1 : index
      %c0_64 = arith.constant 0 : index
      %88 = vector.load %arg8[%87, %c2_61, %c0_62, %c1_63, %c0_64] : memref<2x6x4x18x128xf32, #tpu.memory_space<vmem>>, vector<1x4x1x16x128xf32>
      %89 = vector.shape_cast %88 : vector<1x4x1x16x128xf32> to vector<4x16x128xf32>
      %c7 = arith.constant 7 : index
      %c0_65 = arith.constant 0 : index
      %90 = vector.load %arg3[%c7, %c0_65] : memref<36x128xf32, #tpu.memory_space<vmem>>, vector<1x128xf32>
      %91 = vector.shape_cast %90 : vector<1x128xf32> to vector<128xf32>
      %92 = vector.shape_cast %91 : vector<128xf32> to vector<1x1x128xf32>
      %93 = vector.broadcast %92 : vector<1x1x128xf32> to vector<4x16x128xf32>
      %94 = arith.mulf %89, %93 : vector<4x16x128xf32>
      %95 = arith.addf %86, %94 : vector<4x16x128xf32>
      %96 = arith.index_cast %12 : i32 to index
      %c2_66 = arith.constant 2 : index
      %c0_67 = arith.constant 0 : index
      %c2_68 = arith.constant 2 : index
      %c0_69 = arith.constant 0 : index
      %97 = vector.load %arg8[%96, %c2_66, %c0_67, %c2_68, %c0_69] : memref<2x6x4x18x128xf32, #tpu.memory_space<vmem>>, vector<1x4x1x16x128xf32>
      %98 = vector.shape_cast %97 : vector<1x4x1x16x128xf32> to vector<4x16x128xf32>
      %c8 = arith.constant 8 : index
      %c0_70 = arith.constant 0 : index
      %99 = vector.load %arg3[%c8, %c0_70] : memref<36x128xf32, #tpu.memory_space<vmem>>, vector<1x128xf32>
      %100 = vector.shape_cast %99 : vector<1x128xf32> to vector<128xf32>
      %101 = vector.shape_cast %100 : vector<128xf32> to vector<1x1x128xf32>
      %102 = vector.broadcast %101 : vector<1x1x128xf32> to vector<4x16x128xf32>
      %103 = arith.mulf %98, %102 : vector<4x16x128xf32>
      %104 = arith.addf %95, %103 : vector<4x16x128xf32>
      %105 = arith.index_cast %12 : i32 to index
      %c0_71 = arith.constant 0 : index
      %c1_72 = arith.constant 1 : index
      %c0_73 = arith.constant 0 : index
      %c0_74 = arith.constant 0 : index
      %106 = vector.load %arg8[%105, %c0_71, %c1_72, %c0_73, %c0_74] : memref<2x6x4x18x128xf32, #tpu.memory_space<vmem>>, vector<1x4x1x16x128xf32>
      %107 = vector.shape_cast %106 : vector<1x4x1x16x128xf32> to vector<4x16x128xf32>
      %c9 = arith.constant 9 : index
      %c0_75 = arith.constant 0 : index
      %108 = vector.load %arg3[%c9, %c0_75] : memref<36x128xf32, #tpu.memory_space<vmem>>, vector<1x128xf32>
      %109 = vector.shape_cast %108 : vector<1x128xf32> to vector<128xf32>
      %110 = vector.shape_cast %109 : vector<128xf32> to vector<1x1x128xf32>
      %111 = vector.broadcast %110 : vector<1x1x128xf32> to vector<4x16x128xf32>
      %112 = arith.mulf %107, %111 : vector<4x16x128xf32>
      %113 = arith.addf %104, %112 : vector<4x16x128xf32>
      %114 = arith.index_cast %12 : i32 to index
      %c0_76 = arith.constant 0 : index
      %c1_77 = arith.constant 1 : index
      %c1_78 = arith.constant 1 : index
      %c0_79 = arith.constant 0 : index
      %115 = vector.load %arg8[%114, %c0_76, %c1_77, %c1_78, %c0_79] : memref<2x6x4x18x128xf32, #tpu.memory_space<vmem>>, vector<1x4x1x16x128xf32>
      %116 = vector.shape_cast %115 : vector<1x4x1x16x128xf32> to vector<4x16x128xf32>
      %c10 = arith.constant 10 : index
      %c0_80 = arith.constant 0 : index
      %117 = vector.load %arg3[%c10, %c0_80] : memref<36x128xf32, #tpu.memory_space<vmem>>, vector<1x128xf32>
      %118 = vector.shape_cast %117 : vector<1x128xf32> to vector<128xf32>
      %119 = vector.shape_cast %118 : vector<128xf32> to vector<1x1x128xf32>
      %120 = vector.broadcast %119 : vector<1x1x128xf32> to vector<4x16x128xf32>
      %121 = arith.mulf %116, %120 : vector<4x16x128xf32>
      %122 = arith.addf %113, %121 : vector<4x16x128xf32>
      %123 = arith.index_cast %12 : i32 to index
      %c0_81 = arith.constant 0 : index
      %c1_82 = arith.constant 1 : index
      %c2_83 = arith.constant 2 : index
      %c0_84 = arith.constant 0 : index
      %124 = vector.load %arg8[%123, %c0_81, %c1_82, %c2_83, %c0_84] : memref<2x6x4x18x128xf32, #tpu.memory_space<vmem>>, vector<1x4x1x16x128xf32>
      %125 = vector.shape_cast %124 : vector<1x4x1x16x128xf32> to vector<4x16x128xf32>
      %c11 = arith.constant 11 : index
      %c0_85 = arith.constant 0 : index
      %126 = vector.load %arg3[%c11, %c0_85] : memref<36x128xf32, #tpu.memory_space<vmem>>, vector<1x128xf32>
      %127 = vector.shape_cast %126 : vector<1x128xf32> to vector<128xf32>
      %128 = vector.shape_cast %127 : vector<128xf32> to vector<1x1x128xf32>
      %129 = vector.broadcast %128 : vector<1x1x128xf32> to vector<4x16x128xf32>
      %130 = arith.mulf %125, %129 : vector<4x16x128xf32>
      %131 = arith.addf %122, %130 : vector<4x16x128xf32>
      %132 = arith.index_cast %12 : i32 to index
      %c1_86 = arith.constant 1 : index
      %c1_87 = arith.constant 1 : index
      %c0_88 = arith.constant 0 : index
      %c0_89 = arith.constant 0 : index
      %133 = vector.load %arg8[%132, %c1_86, %c1_87, %c0_88, %c0_89] : memref<2x6x4x18x128xf32, #tpu.memory_space<vmem>>, vector<1x4x1x16x128xf32>
      %134 = vector.shape_cast %133 : vector<1x4x1x16x128xf32> to vector<4x16x128xf32>
      %c12 = arith.constant 12 : index
      %c0_90 = arith.constant 0 : index
      %135 = vector.load %arg3[%c12, %c0_90] : memref<36x128xf32, #tpu.memory_space<vmem>>, vector<1x128xf32>
      %136 = vector.shape_cast %135 : vector<1x128xf32> to vector<128xf32>
      %137 = vector.shape_cast %136 : vector<128xf32> to vector<1x1x128xf32>
      %138 = vector.broadcast %137 : vector<1x1x128xf32> to vector<4x16x128xf32>
      %139 = arith.mulf %134, %138 : vector<4x16x128xf32>
      %140 = arith.addf %131, %139 : vector<4x16x128xf32>
      %141 = arith.index_cast %12 : i32 to index
      %c1_91 = arith.constant 1 : index
      %c1_92 = arith.constant 1 : index
      %c1_93 = arith.constant 1 : index
      %c0_94 = arith.constant 0 : index
      %142 = vector.load %arg8[%141, %c1_91, %c1_92, %c1_93, %c0_94] : memref<2x6x4x18x128xf32, #tpu.memory_space<vmem>>, vector<1x4x1x16x128xf32>
      %143 = vector.shape_cast %142 : vector<1x4x1x16x128xf32> to vector<4x16x128xf32>
      %c13 = arith.constant 13 : index
      %c0_95 = arith.constant 0 : index
      %144 = vector.load %arg3[%c13, %c0_95] : memref<36x128xf32, #tpu.memory_space<vmem>>, vector<1x128xf32>
      %145 = vector.shape_cast %144 : vector<1x128xf32> to vector<128xf32>
      %146 = vector.shape_cast %145 : vector<128xf32> to vector<1x1x128xf32>
      %147 = vector.broadcast %146 : vector<1x1x128xf32> to vector<4x16x128xf32>
      %148 = arith.mulf %143, %147 : vector<4x16x128xf32>
      %149 = arith.addf %140, %148 : vector<4x16x128xf32>
      %150 = arith.index_cast %12 : i32 to index
      %c1_96 = arith.constant 1 : index
      %c1_97 = arith.constant 1 : index
      %c2_98 = arith.constant 2 : index
      %c0_99 = arith.constant 0 : index
      %151 = vector.load %arg8[%150, %c1_96, %c1_97, %c2_98, %c0_99] : memref<2x6x4x18x128xf32, #tpu.memory_space<vmem>>, vector<1x4x1x16x128xf32>
      %152 = vector.shape_cast %151 : vector<1x4x1x16x128xf32> to vector<4x16x128xf32>
      %c14 = arith.constant 14 : index
      %c0_100 = arith.constant 0 : index
      %153 = vector.load %arg3[%c14, %c0_100] : memref<36x128xf32, #tpu.memory_space<vmem>>, vector<1x128xf32>
      %154 = vector.shape_cast %153 : vector<1x128xf32> to vector<128xf32>
      %155 = vector.shape_cast %154 : vector<128xf32> to vector<1x1x128xf32>
      %156 = vector.broadcast %155 : vector<1x1x128xf32> to vector<4x16x128xf32>
      %157 = arith.mulf %152, %156 : vector<4x16x128xf32>
      %158 = arith.addf %149, %157 : vector<4x16x128xf32>
      %159 = arith.index_cast %12 : i32 to index
      %c2_101 = arith.constant 2 : index
      %c1_102 = arith.constant 1 : index
      %c0_103 = arith.constant 0 : index
      %c0_104 = arith.constant 0 : index
      %160 = vector.load %arg8[%159, %c2_101, %c1_102, %c0_103, %c0_104] : memref<2x6x4x18x128xf32, #tpu.memory_space<vmem>>, vector<1x4x1x16x128xf32>
      %161 = vector.shape_cast %160 : vector<1x4x1x16x128xf32> to vector<4x16x128xf32>
      %c15 = arith.constant 15 : index
      %c0_105 = arith.constant 0 : index
      %162 = vector.load %arg3[%c15, %c0_105] : memref<36x128xf32, #tpu.memory_space<vmem>>, vector<1x128xf32>
      %163 = vector.shape_cast %162 : vector<1x128xf32> to vector<128xf32>
      %164 = vector.shape_cast %163 : vector<128xf32> to vector<1x1x128xf32>
      %165 = vector.broadcast %164 : vector<1x1x128xf32> to vector<4x16x128xf32>
      %166 = arith.mulf %161, %165 : vector<4x16x128xf32>
      %167 = arith.addf %158, %166 : vector<4x16x128xf32>
      %168 = arith.index_cast %12 : i32 to index
      %c2_106 = arith.constant 2 : index
      %c1_107 = arith.constant 1 : index
      %c1_108 = arith.constant 1 : index
      %c0_109 = arith.constant 0 : index
      %169 = vector.load %arg8[%168, %c2_106, %c1_107, %c1_108, %c0_109] : memref<2x6x4x18x128xf32, #tpu.memory_space<vmem>>, vector<1x4x1x16x128xf32>
      %170 = vector.shape_cast %169 : vector<1x4x1x16x128xf32> to vector<4x16x128xf32>
      %c16 = arith.constant 16 : index
      %c0_110 = arith.constant 0 : index
      %171 = vector.load %arg3[%c16, %c0_110] : memref<36x128xf32, #tpu.memory_space<vmem>>, vector<1x128xf32>
      %172 = vector.shape_cast %171 : vector<1x128xf32> to vector<128xf32>
      %173 = vector.shape_cast %172 : vector<128xf32> to vector<1x1x128xf32>
      %174 = vector.broadcast %173 : vector<1x1x128xf32> to vector<4x16x128xf32>
      %175 = arith.mulf %170, %174 : vector<4x16x128xf32>
      %176 = arith.addf %167, %175 : vector<4x16x128xf32>
      %177 = arith.index_cast %12 : i32 to index
      %c2_111 = arith.constant 2 : index
      %c1_112 = arith.constant 1 : index
      %c2_113 = arith.constant 2 : index
      %c0_114 = arith.constant 0 : index
      %178 = vector.load %arg8[%177, %c2_111, %c1_112, %c2_113, %c0_114] : memref<2x6x4x18x128xf32, #tpu.memory_space<vmem>>, vector<1x4x1x16x128xf32>
      %179 = vector.shape_cast %178 : vector<1x4x1x16x128xf32> to vector<4x16x128xf32>
      %c17 = arith.constant 17 : index
      %c0_115 = arith.constant 0 : index
      %180 = vector.load %arg3[%c17, %c0_115] : memref<36x128xf32, #tpu.memory_space<vmem>>, vector<1x128xf32>
      %181 = vector.shape_cast %180 : vector<1x128xf32> to vector<128xf32>
      %182 = vector.shape_cast %181 : vector<128xf32> to vector<1x1x128xf32>
      %183 = vector.broadcast %182 : vector<1x1x128xf32> to vector<4x16x128xf32>
      %184 = arith.mulf %179, %183 : vector<4x16x128xf32>
      %185 = arith.addf %176, %184 : vector<4x16x128xf32>
      %186 = arith.index_cast %12 : i32 to index
      %c0_116 = arith.constant 0 : index
      %c2_117 = arith.constant 2 : index
      %c0_118 = arith.constant 0 : index
      %c0_119 = arith.constant 0 : index
      %187 = vector.load %arg8[%186, %c0_116, %c2_117, %c0_118, %c0_119] : memref<2x6x4x18x128xf32, #tpu.memory_space<vmem>>, vector<1x4x1x16x128xf32>
      %188 = vector.shape_cast %187 : vector<1x4x1x16x128xf32> to vector<4x16x128xf32>
      %c18 = arith.constant 18 : index
      %c0_120 = arith.constant 0 : index
      %189 = vector.load %arg3[%c18, %c0_120] : memref<36x128xf32, #tpu.memory_space<vmem>>, vector<1x128xf32>
      %190 = vector.shape_cast %189 : vector<1x128xf32> to vector<128xf32>
      %191 = vector.shape_cast %190 : vector<128xf32> to vector<1x1x128xf32>
      %192 = vector.broadcast %191 : vector<1x1x128xf32> to vector<4x16x128xf32>
      %193 = arith.mulf %188, %192 : vector<4x16x128xf32>
      %194 = arith.addf %185, %193 : vector<4x16x128xf32>
      %195 = arith.index_cast %12 : i32 to index
      %c0_121 = arith.constant 0 : index
      %c2_122 = arith.constant 2 : index
      %c1_123 = arith.constant 1 : index
      %c0_124 = arith.constant 0 : index
      %196 = vector.load %arg8[%195, %c0_121, %c2_122, %c1_123, %c0_124] : memref<2x6x4x18x128xf32, #tpu.memory_space<vmem>>, vector<1x4x1x16x128xf32>
      %197 = vector.shape_cast %196 : vector<1x4x1x16x128xf32> to vector<4x16x128xf32>
      %c19 = arith.constant 19 : index
      %c0_125 = arith.constant 0 : index
      %198 = vector.load %arg3[%c19, %c0_125] : memref<36x128xf32, #tpu.memory_space<vmem>>, vector<1x128xf32>
      %199 = vector.shape_cast %198 : vector<1x128xf32> to vector<128xf32>
      %200 = vector.shape_cast %199 : vector<128xf32> to vector<1x1x128xf32>
      %201 = vector.broadcast %200 : vector<1x1x128xf32> to vector<4x16x128xf32>
      %202 = arith.mulf %197, %201 : vector<4x16x128xf32>
      %203 = arith.addf %194, %202 : vector<4x16x128xf32>
      %204 = arith.index_cast %12 : i32 to index
      %c0_126 = arith.constant 0 : index
      %c2_127 = arith.constant 2 : index
      %c2_128 = arith.constant 2 : index
      %c0_129 = arith.constant 0 : index
      %205 = vector.load %arg8[%204, %c0_126, %c2_127, %c2_128, %c0_129] : memref<2x6x4x18x128xf32, #tpu.memory_space<vmem>>, vector<1x4x1x16x128xf32>
      %206 = vector.shape_cast %205 : vector<1x4x1x16x128xf32> to vector<4x16x128xf32>
      %c20 = arith.constant 20 : index
      %c0_130 = arith.constant 0 : index
      %207 = vector.load %arg3[%c20, %c0_130] : memref<36x128xf32, #tpu.memory_space<vmem>>, vector<1x128xf32>
      %208 = vector.shape_cast %207 : vector<1x128xf32> to vector<128xf32>
      %209 = vector.shape_cast %208 : vector<128xf32> to vector<1x1x128xf32>
      %210 = vector.broadcast %209 : vector<1x1x128xf32> to vector<4x16x128xf32>
      %211 = arith.mulf %206, %210 : vector<4x16x128xf32>
      %212 = arith.addf %203, %211 : vector<4x16x128xf32>
      %213 = arith.index_cast %12 : i32 to index
      %c1_131 = arith.constant 1 : index
      %c2_132 = arith.constant 2 : index
      %c0_133 = arith.constant 0 : index
      %c0_134 = arith.constant 0 : index
      %214 = vector.load %arg8[%213, %c1_131, %c2_132, %c0_133, %c0_134] : memref<2x6x4x18x128xf32, #tpu.memory_space<vmem>>, vector<1x4x1x16x128xf32>
      %215 = vector.shape_cast %214 : vector<1x4x1x16x128xf32> to vector<4x16x128xf32>
      %c21 = arith.constant 21 : index
      %c0_135 = arith.constant 0 : index
      %216 = vector.load %arg3[%c21, %c0_135] : memref<36x128xf32, #tpu.memory_space<vmem>>, vector<1x128xf32>
      %217 = vector.shape_cast %216 : vector<1x128xf32> to vector<128xf32>
      %218 = vector.shape_cast %217 : vector<128xf32> to vector<1x1x128xf32>
      %219 = vector.broadcast %218 : vector<1x1x128xf32> to vector<4x16x128xf32>
      %220 = arith.mulf %215, %219 : vector<4x16x128xf32>
      %221 = arith.addf %212, %220 : vector<4x16x128xf32>
      %222 = arith.index_cast %12 : i32 to index
      %c1_136 = arith.constant 1 : index
      %c2_137 = arith.constant 2 : index
      %c1_138 = arith.constant 1 : index
      %c0_139 = arith.constant 0 : index
      %223 = vector.load %arg8[%222, %c1_136, %c2_137, %c1_138, %c0_139] : memref<2x6x4x18x128xf32, #tpu.memory_space<vmem>>, vector<1x4x1x16x128xf32>
      %224 = vector.shape_cast %223 : vector<1x4x1x16x128xf32> to vector<4x16x128xf32>
      %c22 = arith.constant 22 : index
      %c0_140 = arith.constant 0 : index
      %225 = vector.load %arg3[%c22, %c0_140] : memref<36x128xf32, #tpu.memory_space<vmem>>, vector<1x128xf32>
      %226 = vector.shape_cast %225 : vector<1x128xf32> to vector<128xf32>
      %227 = vector.shape_cast %226 : vector<128xf32> to vector<1x1x128xf32>
      %228 = vector.broadcast %227 : vector<1x1x128xf32> to vector<4x16x128xf32>
      %229 = arith.mulf %224, %228 : vector<4x16x128xf32>
      %230 = arith.addf %221, %229 : vector<4x16x128xf32>
      %231 = arith.index_cast %12 : i32 to index
      %c1_141 = arith.constant 1 : index
      %c2_142 = arith.constant 2 : index
      %c2_143 = arith.constant 2 : index
      %c0_144 = arith.constant 0 : index
      %232 = vector.load %arg8[%231, %c1_141, %c2_142, %c2_143, %c0_144] : memref<2x6x4x18x128xf32, #tpu.memory_space<vmem>>, vector<1x4x1x16x128xf32>
      %233 = vector.shape_cast %232 : vector<1x4x1x16x128xf32> to vector<4x16x128xf32>
      %c23 = arith.constant 23 : index
      %c0_145 = arith.constant 0 : index
      %234 = vector.load %arg3[%c23, %c0_145] : memref<36x128xf32, #tpu.memory_space<vmem>>, vector<1x128xf32>
      %235 = vector.shape_cast %234 : vector<1x128xf32> to vector<128xf32>
      %236 = vector.shape_cast %235 : vector<128xf32> to vector<1x1x128xf32>
      %237 = vector.broadcast %236 : vector<1x1x128xf32> to vector<4x16x128xf32>
      %238 = arith.mulf %233, %237 : vector<4x16x128xf32>
      %239 = arith.addf %230, %238 : vector<4x16x128xf32>
      %240 = arith.index_cast %12 : i32 to index
      %c2_146 = arith.constant 2 : index
      %c2_147 = arith.constant 2 : index
      %c0_148 = arith.constant 0 : index
      %c0_149 = arith.constant 0 : index
      %241 = vector.load %arg8[%240, %c2_146, %c2_147, %c0_148, %c0_149] : memref<2x6x4x18x128xf32, #tpu.memory_space<vmem>>, vector<1x4x1x16x128xf32>
      %242 = vector.shape_cast %241 : vector<1x4x1x16x128xf32> to vector<4x16x128xf32>
      %c24 = arith.constant 24 : index
      %c0_150 = arith.constant 0 : index
      %243 = vector.load %arg3[%c24, %c0_150] : memref<36x128xf32, #tpu.memory_space<vmem>>, vector<1x128xf32>
      %244 = vector.shape_cast %243 : vector<1x128xf32> to vector<128xf32>
      %245 = vector.shape_cast %244 : vector<128xf32> to vector<1x1x128xf32>
      %246 = vector.broadcast %245 : vector<1x1x128xf32> to vector<4x16x128xf32>
      %247 = arith.mulf %242, %246 : vector<4x16x128xf32>
      %248 = arith.addf %239, %247 : vector<4x16x128xf32>
      %249 = arith.index_cast %12 : i32 to index
      %c2_151 = arith.constant 2 : index
      %c2_152 = arith.constant 2 : index
      %c1_153 = arith.constant 1 : index
      %c0_154 = arith.constant 0 : index
      %250 = vector.load %arg8[%249, %c2_151, %c2_152, %c1_153, %c0_154] : memref<2x6x4x18x128xf32, #tpu.memory_space<vmem>>, vector<1x4x1x16x128xf32>
      %251 = vector.shape_cast %250 : vector<1x4x1x16x128xf32> to vector<4x16x128xf32>
      %c25 = arith.constant 25 : index
      %c0_155 = arith.constant 0 : index
      %252 = vector.load %arg3[%c25, %c0_155] : memref<36x128xf32, #tpu.memory_space<vmem>>, vector<1x128xf32>
      %253 = vector.shape_cast %252 : vector<1x128xf32> to vector<128xf32>
      %254 = vector.shape_cast %253 : vector<128xf32> to vector<1x1x128xf32>
      %255 = vector.broadcast %254 : vector<1x1x128xf32> to vector<4x16x128xf32>
      %256 = arith.mulf %251, %255 : vector<4x16x128xf32>
      %257 = arith.addf %248, %256 : vector<4x16x128xf32>
      %258 = arith.index_cast %12 : i32 to index
      %c2_156 = arith.constant 2 : index
      %c2_157 = arith.constant 2 : index
      %c2_158 = arith.constant 2 : index
      %c0_159 = arith.constant 0 : index
      %259 = vector.load %arg8[%258, %c2_156, %c2_157, %c2_158, %c0_159] : memref<2x6x4x18x128xf32, #tpu.memory_space<vmem>>, vector<1x4x1x16x128xf32>
      %260 = vector.shape_cast %259 : vector<1x4x1x16x128xf32> to vector<4x16x128xf32>
      %c26 = arith.constant 26 : index
      %c0_160 = arith.constant 0 : index
      %261 = vector.load %arg3[%c26, %c0_160] : memref<36x128xf32, #tpu.memory_space<vmem>>, vector<1x128xf32>
      %262 = vector.shape_cast %261 : vector<1x128xf32> to vector<128xf32>
      %263 = vector.shape_cast %262 : vector<128xf32> to vector<1x1x128xf32>
      %264 = vector.broadcast %263 : vector<1x1x128xf32> to vector<4x16x128xf32>
      %265 = arith.mulf %260, %264 : vector<4x16x128xf32>
      %266 = arith.addf %257, %265 : vector<4x16x128xf32>
      %267 = arith.index_cast %12 : i32 to index
      %c0_161 = arith.constant 0 : index
      %c3_162 = arith.constant 3 : index
      %c0_163 = arith.constant 0 : index
      %c0_164 = arith.constant 0 : index
      %268 = vector.load %arg8[%267, %c0_161, %c3_162, %c0_163, %c0_164] : memref<2x6x4x18x128xf32, #tpu.memory_space<vmem>>, vector<1x4x1x16x128xf32>
      %269 = vector.shape_cast %268 : vector<1x4x1x16x128xf32> to vector<4x16x128xf32>
      %c27 = arith.constant 27 : index
      %c0_165 = arith.constant 0 : index
      %270 = vector.load %arg3[%c27, %c0_165] : memref<36x128xf32, #tpu.memory_space<vmem>>, vector<1x128xf32>
      %271 = vector.shape_cast %270 : vector<1x128xf32> to vector<128xf32>
      %272 = vector.shape_cast %271 : vector<128xf32> to vector<1x1x128xf32>
      %273 = vector.broadcast %272 : vector<1x1x128xf32> to vector<4x16x128xf32>
      %274 = arith.mulf %269, %273 : vector<4x16x128xf32>
      %275 = arith.addf %266, %274 : vector<4x16x128xf32>
      %276 = arith.index_cast %12 : i32 to index
      %c0_166 = arith.constant 0 : index
      %c3_167 = arith.constant 3 : index
      %c1_168 = arith.constant 1 : index
      %c0_169 = arith.constant 0 : index
      %277 = vector.load %arg8[%276, %c0_166, %c3_167, %c1_168, %c0_169] : memref<2x6x4x18x128xf32, #tpu.memory_space<vmem>>, vector<1x4x1x16x128xf32>
      %278 = vector.shape_cast %277 : vector<1x4x1x16x128xf32> to vector<4x16x128xf32>
      %c28 = arith.constant 28 : index
      %c0_170 = arith.constant 0 : index
      %279 = vector.load %arg3[%c28, %c0_170] : memref<36x128xf32, #tpu.memory_space<vmem>>, vector<1x128xf32>
      %280 = vector.shape_cast %279 : vector<1x128xf32> to vector<128xf32>
      %281 = vector.shape_cast %280 : vector<128xf32> to vector<1x1x128xf32>
      %282 = vector.broadcast %281 : vector<1x1x128xf32> to vector<4x16x128xf32>
      %283 = arith.mulf %278, %282 : vector<4x16x128xf32>
      %284 = arith.addf %275, %283 : vector<4x16x128xf32>
      %285 = arith.index_cast %12 : i32 to index
      %c0_171 = arith.constant 0 : index
      %c3_172 = arith.constant 3 : index
      %c2_173 = arith.constant 2 : index
      %c0_174 = arith.constant 0 : index
      %286 = vector.load %arg8[%285, %c0_171, %c3_172, %c2_173, %c0_174] : memref<2x6x4x18x128xf32, #tpu.memory_space<vmem>>, vector<1x4x1x16x128xf32>
      %287 = vector.shape_cast %286 : vector<1x4x1x16x128xf32> to vector<4x16x128xf32>
      %c29 = arith.constant 29 : index
      %c0_175 = arith.constant 0 : index
      %288 = vector.load %arg3[%c29, %c0_175] : memref<36x128xf32, #tpu.memory_space<vmem>>, vector<1x128xf32>
      %289 = vector.shape_cast %288 : vector<1x128xf32> to vector<128xf32>
      %290 = vector.shape_cast %289 : vector<128xf32> to vector<1x1x128xf32>
      %291 = vector.broadcast %290 : vector<1x1x128xf32> to vector<4x16x128xf32>
      %292 = arith.mulf %287, %291 : vector<4x16x128xf32>
      %293 = arith.addf %284, %292 : vector<4x16x128xf32>
      %294 = arith.index_cast %12 : i32 to index
      %c1_176 = arith.constant 1 : index
      %c3_177 = arith.constant 3 : index
      %c0_178 = arith.constant 0 : index
      %c0_179 = arith.constant 0 : index
      %295 = vector.load %arg8[%294, %c1_176, %c3_177, %c0_178, %c0_179] : memref<2x6x4x18x128xf32, #tpu.memory_space<vmem>>, vector<1x4x1x16x128xf32>
      %296 = vector.shape_cast %295 : vector<1x4x1x16x128xf32> to vector<4x16x128xf32>
      %c30 = arith.constant 30 : index
      %c0_180 = arith.constant 0 : index
      %297 = vector.load %arg3[%c30, %c0_180] : memref<36x128xf32, #tpu.memory_space<vmem>>, vector<1x128xf32>
      %298 = vector.shape_cast %297 : vector<1x128xf32> to vector<128xf32>
      %299 = vector.shape_cast %298 : vector<128xf32> to vector<1x1x128xf32>
      %300 = vector.broadcast %299 : vector<1x1x128xf32> to vector<4x16x128xf32>
      %301 = arith.mulf %296, %300 : vector<4x16x128xf32>
      %302 = arith.addf %293, %301 : vector<4x16x128xf32>
      %303 = arith.index_cast %12 : i32 to index
      %c1_181 = arith.constant 1 : index
      %c3_182 = arith.constant 3 : index
      %c1_183 = arith.constant 1 : index
      %c0_184 = arith.constant 0 : index
      %304 = vector.load %arg8[%303, %c1_181, %c3_182, %c1_183, %c0_184] : memref<2x6x4x18x128xf32, #tpu.memory_space<vmem>>, vector<1x4x1x16x128xf32>
      %305 = vector.shape_cast %304 : vector<1x4x1x16x128xf32> to vector<4x16x128xf32>
      %c31 = arith.constant 31 : index
      %c0_185 = arith.constant 0 : index
      %306 = vector.load %arg3[%c31, %c0_185] : memref<36x128xf32, #tpu.memory_space<vmem>>, vector<1x128xf32>
      %307 = vector.shape_cast %306 : vector<1x128xf32> to vector<128xf32>
      %308 = vector.shape_cast %307 : vector<128xf32> to vector<1x1x128xf32>
      %309 = vector.broadcast %308 : vector<1x1x128xf32> to vector<4x16x128xf32>
      %310 = arith.mulf %305, %309 : vector<4x16x128xf32>
      %311 = arith.addf %302, %310 : vector<4x16x128xf32>
      %312 = arith.index_cast %12 : i32 to index
      %c1_186 = arith.constant 1 : index
      %c3_187 = arith.constant 3 : index
      %c2_188 = arith.constant 2 : index
      %c0_189 = arith.constant 0 : index
      %313 = vector.load %arg8[%312, %c1_186, %c3_187, %c2_188, %c0_189] : memref<2x6x4x18x128xf32, #tpu.memory_space<vmem>>, vector<1x4x1x16x128xf32>
      %314 = vector.shape_cast %313 : vector<1x4x1x16x128xf32> to vector<4x16x128xf32>
      %c32 = arith.constant 32 : index
      %c0_190 = arith.constant 0 : index
      %315 = vector.load %arg3[%c32, %c0_190] : memref<36x128xf32, #tpu.memory_space<vmem>>, vector<1x128xf32>
      %316 = vector.shape_cast %315 : vector<1x128xf32> to vector<128xf32>
      %317 = vector.shape_cast %316 : vector<128xf32> to vector<1x1x128xf32>
      %318 = vector.broadcast %317 : vector<1x1x128xf32> to vector<4x16x128xf32>
      %319 = arith.mulf %314, %318 : vector<4x16x128xf32>
      %320 = arith.addf %311, %319 : vector<4x16x128xf32>
      %321 = arith.index_cast %12 : i32 to index
      %c2_191 = arith.constant 2 : index
      %c3_192 = arith.constant 3 : index
      %c0_193 = arith.constant 0 : index
      %c0_194 = arith.constant 0 : index
      %322 = vector.load %arg8[%321, %c2_191, %c3_192, %c0_193, %c0_194] : memref<2x6x4x18x128xf32, #tpu.memory_space<vmem>>, vector<1x4x1x16x128xf32>
      %323 = vector.shape_cast %322 : vector<1x4x1x16x128xf32> to vector<4x16x128xf32>
      %c33 = arith.constant 33 : index
      %c0_195 = arith.constant 0 : index
      %324 = vector.load %arg3[%c33, %c0_195] : memref<36x128xf32, #tpu.memory_space<vmem>>, vector<1x128xf32>
      %325 = vector.shape_cast %324 : vector<1x128xf32> to vector<128xf32>
      %326 = vector.shape_cast %325 : vector<128xf32> to vector<1x1x128xf32>
      %327 = vector.broadcast %326 : vector<1x1x128xf32> to vector<4x16x128xf32>
      %328 = arith.mulf %323, %327 : vector<4x16x128xf32>
      %329 = arith.addf %320, %328 : vector<4x16x128xf32>
      %330 = arith.index_cast %12 : i32 to index
      %c2_196 = arith.constant 2 : index
      %c3_197 = arith.constant 3 : index
      %c1_198 = arith.constant 1 : index
      %c0_199 = arith.constant 0 : index
      %331 = vector.load %arg8[%330, %c2_196, %c3_197, %c1_198, %c0_199] : memref<2x6x4x18x128xf32, #tpu.memory_space<vmem>>, vector<1x4x1x16x128xf32>
      %332 = vector.shape_cast %331 : vector<1x4x1x16x128xf32> to vector<4x16x128xf32>
      %c34 = arith.constant 34 : index
      %c0_200 = arith.constant 0 : index
      %333 = vector.load %arg3[%c34, %c0_200] : memref<36x128xf32, #tpu.memory_space<vmem>>, vector<1x128xf32>
      %334 = vector.shape_cast %333 : vector<1x128xf32> to vector<128xf32>
      %335 = vector.shape_cast %334 : vector<128xf32> to vector<1x1x128xf32>
      %336 = vector.broadcast %335 : vector<1x1x128xf32> to vector<4x16x128xf32>
      %337 = arith.mulf %332, %336 : vector<4x16x128xf32>
      %338 = arith.addf %329, %337 : vector<4x16x128xf32>
      %339 = arith.index_cast %12 : i32 to index
      %c2_201 = arith.constant 2 : index
      %c3_202 = arith.constant 3 : index
      %c2_203 = arith.constant 2 : index
      %c0_204 = arith.constant 0 : index
      %340 = vector.load %arg8[%339, %c2_201, %c3_202, %c2_203, %c0_204] : memref<2x6x4x18x128xf32, #tpu.memory_space<vmem>>, vector<1x4x1x16x128xf32>
      %341 = vector.shape_cast %340 : vector<1x4x1x16x128xf32> to vector<4x16x128xf32>
      %c35 = arith.constant 35 : index
      %c0_205 = arith.constant 0 : index
      %342 = vector.load %arg3[%c35, %c0_205] : memref<36x128xf32, #tpu.memory_space<vmem>>, vector<1x128xf32>
      %343 = vector.shape_cast %342 : vector<1x128xf32> to vector<128xf32>
      %344 = vector.shape_cast %343 : vector<128xf32> to vector<1x1x128xf32>
      %345 = vector.broadcast %344 : vector<1x1x128xf32> to vector<4x16x128xf32>
      %346 = arith.mulf %341, %345 : vector<4x16x128xf32>
      %347 = arith.addf %338, %346 : vector<4x16x128xf32>
      %c0_206 = arith.constant 0 : index
      %c0_207 = arith.constant 0 : index
      %348 = vector.load %arg4[%c0_206, %c0_207] : memref<1x128xf32, #tpu.memory_space<vmem>>, vector<1x128xf32>
      %349 = vector.shape_cast %348 : vector<1x128xf32> to vector<128xf32>
      %350 = vector.shape_cast %349 : vector<128xf32> to vector<1x1x128xf32>
      %351 = vector.broadcast %350 : vector<1x1x128xf32> to vector<4x16x128xf32>
      %352 = arith.addf %347, %351 : vector<4x16x128xf32>
      %353 = vector.shape_cast %352 : vector<4x16x128xf32> to vector<64x128xf32>
      %354 = arith.truncf %353 : vector<64x128xf32> to vector<64x128xbf16>
      %c0_208 = arith.constant 0 : index
      %c0_209 = arith.constant 0 : index
      %355 = vector.load %arg5[%c0_208, %c0_209] : memref<128x128xbf16, #tpu.memory_space<vmem>>, vector<128x128xbf16>
      %cst_210 = arith.constant dense<0.000000e+00> : vector<64x128xf32>
      %356 = tpu.matmul %354, %355, %cst_210 {dimension_numbers = #tpu.dot_dimension_numbers<[1], [0], [0], [1], [0, 0, 1, 1], [], []>} : vector<64x128xbf16>, vector<128x128xbf16>, vector<64x128xf32> -> vector<64x128xf32>
      %c0_211 = arith.constant 0 : index
      %c0_212 = arith.constant 0 : index
      %357 = vector.load %arg6[%c0_211, %c0_212] : memref<1x128xf32, #tpu.memory_space<vmem>>, vector<1x128xf32>
      %358 = vector.broadcast %357 : vector<1x128xf32> to vector<64x128xf32>
      %359 = arith.addf %356, %358 : vector<64x128xf32>
      %c64_i32 = arith.constant 64 : i32
      %360 = arith.muli %11, %c64_i32 : i32
      %361 = tpu.assume_multiple %360, 64 : i32
      %c0_213 = arith.constant 0 : index
      %362 = arith.index_cast %361 : i32 to index
      %c0_214 = arith.constant 0 : index
      %363 = vector.load %arg7[%c0_213, %362, %c0_214] : memref<1x128x128xf32, #tpu.memory_space<vmem>>, vector<1x64x128xf32>
      %364 = vector.shape_cast %363 : vector<1x64x128xf32> to vector<64x128xf32>
      %365 = vector.shape_cast %359 : vector<64x128xf32> to vector<1x64x128xf32>
      tpu.vector_store %arg7[%c0_213, %362, %c0_214], %365 {strides = array<i32>} : memref<1x128x128xf32, #tpu.memory_space<vmem>>, vector<1x64x128xf32>,
    }
    %c2_i32_11 = arith.constant 2 : i32
    return
  }
  func.func @transform_1(%arg0: i32, %arg1: i32) -> (i32, i32) {
    %c0_i32 = arith.constant 0 : i32
    %c0_i32_0 = arith.constant 0 : i32
    %c0_i32_1 = arith.constant 0 : i32
    return %c0_i32, %c0_i32_0 : i32, i32
  }
  func.func @transform_2(%arg0: i32, %arg1: i32) -> (i32, i32) {
    %c0_i32 = arith.constant 0 : i32
    %c0_i32_0 = arith.constant 0 : i32
    %c0_i32_1 = arith.constant 0 : i32
    return %c0_i32, %c0_i32_0 : i32, i32
  }
  func.func @transform_3(%arg0: i32, %arg1: i32) -> (i32, i32) {
    %c0_i32 = arith.constant 0 : i32
    %c0_i32_0 = arith.constant 0 : i32
    %c0_i32_1 = arith.constant 0 : i32
    return %c0_i32, %c0_i32_0 : i32, i32
  }
  func.func @transform_4(%arg0: i32, %arg1: i32) -> (i32, i32) {
    %c0_i32 = arith.constant 0 : i32
    %c0_i32_0 = arith.constant 0 : i32
    %c0_i32_1 = arith.constant 0 : i32
    return %c0_i32, %c0_i32_0 : i32, i32
  }
  func.func @transform_5(%arg0: i32, %arg1: i32) -> (i32, i32, i32) {
    %c0_i32 = arith.constant 0 : i32
    %c0_i32_0 = arith.constant 0 : i32
    return %arg0, %arg1, %c0_i32 : i32, i32, i32
  }
}

</mosaic_0001>

<llo_original>
// kernel: tpu_custom_call.1
$region0: #{tpu_custom_call.1}
  #allocation0 [shape = 'u32[]', space=smem, size = 0x4, offset = 0x4, fixed_abs, tag = 'smem constant byte address 0x4 - core index']
  #allocation1 [shape = 'u32[144,128]{1,0:T(1,128)}', space=vmem, size = 0x12000, scoped, tag = 'internal scratch']
  #allocation2 [shape = 'f32[2,6,4,18,128]{4,3,2,1,0:T(8,128)}', space=vmem, size = 0x90000, scoped, tag = 'scratch operand']
  #allocation3 [shape = 's32[2]{0}', space=sflag, size = 0x8, scoped, tag = 'scratch operand']
  #allocation6 [shape = 's32[]', space=sflag, size = 0x4, offset = 0, fixed_abs, tag = 'sflag constant byte address 0x0 - dummy sync flag']
  #allocation7 [shape = 's32[]', space=sflag, size = 0x4, offset = 0, fixed_abs, tag = 'sflag constant byte address 0x0 - dummy sync flag']
  %s0 = inlined_call_operand.vmem [shape: f32[2,18,4,18,128], index: 0, kind: input, shape index: {}]
  %s1 = inlined_call_operand.vmem [shape: f32[36,128], index: 1, kind: input, shape index: {}]
  %s2 = inlined_call_operand.vmem [shape: f32[1,128], index: 2, kind: input, shape index: {}]
  %s3 = inlined_call_operand.vmem [shape: bf16[128,128], index: 3, kind: input, shape index: {}]
  %s4 = inlined_call_operand.vmem [shape: f32[1,128], index: 4, kind: input, shape index: {}]
  %s5 = inlined_call_operand.hbm [shape: f32[2,256,128], index: 5, kind: output, shape index: {}]
  %s6 = sld [smem:[#allocation0]]
  $region134: #{tpu_custom_call.1} parent=0
    _
  %s8 = ssub.s32 1, %s6
  %s9 = scalar_select 0, %s8, %s6
  $region1: #{tpu_custom_call.1} parent=0
    #allocation4 [shape = 'u8[131072]{0}', space=vmem, size = 0x20000, scoped, tag = 'output window, operand 0']
    #allocation5 [shape = 's32[2]{0}', space=sflag, size = 0x8, scoped, tag = 'scoped memory for tpu_custom_call.1']
    %10 = vsyncpa [#allocation5], 0
    %s11 = scalar_lea.sflag [#allocation5], 1
    %12 = vsyncpa %s11, 0
    loop: start=0, step=1, limit=6
    $region2: #{tpu_custom_call.1} parent=1 // loop_pre_header
      _
    $region3: #{tpu_custom_call.1} parent=1 // loop_header
      %s14 = sphi 0, %s18
      %p15 = scmp.ge.s32.totalorder %s14, 6
      %s21 = sphi 0, %s33
      %s22 = sphi 0, %s29
      %s23 = sphi 0, %s21
      %s24 = sphi 0, %s22
      %s25 = sphi 0, %s23
      %s26 = sphi 0, %s24
      %s34 = sphi 0, %s34
      %s36 = sphi 0, %s34
      %s37 = sphi 0, %s36
      %s51 = sphi 0, %s37
      %s55 = sphi 0, %s55
      %s57 = sphi 0, %s55
      %s58 = sphi 0, %s57
      %s72 = sphi 0, %s58
      %s76 = sphi 0, %s76
      %s78 = sphi 0, %s76
      %s79 = sphi 0, %s78
      %s93 = sphi 0, %s79
      %s97 = sphi 0, %s97
      %s99 = sphi 0, %s97
      %s100 = sphi 0, %s99
      %s114 = sphi 0, %s100
      %s122 = sphi 0, %s124
      %s125 = sphi 0, %s122
      %s126 = sphi 0, %s125
      %s142 = sphi 0, %s126
    $region4: #{tpu_custom_call.1} parent=1 // loop_header_branch
      %17 = sbr.rel (%p15) target = $region8
    $region5: #{tpu_custom_call.1} parent=1 // loop_body
      %s19 = ssub.s32 %s14, 1
      %s20 = ssub.s32 %s14, 2
      %s27 = sadd.s32 1, %s22
      %p28 = scmp.ge.s32.totalorder %s27, 2
      %s29 = scalar_select %p28, 0, %s27
      %s30 = sadd.s32 1, %s21
      %s31 = scalar_select %p28, %s30, %s21
      %p32 = scmp.ge.s32.totalorder %s31, 2
      %s33 = scalar_select %p32, 0, %s31
      %s35 = sadd.s32 %s34, 1
      %p38 = scmp.eq.s32.totalorder %s14, 3
      %p39 = scmp.ne.s32.totalorder %s34, %s36
      %p40 = scmp.eq.s32.totalorder %s14, 0
      %p41 = por %p39, %p40
      %p42 = scmp.ne.s32.totalorder %s34, %s36
      %p43 = scmp.eq.s32.totalorder %s19, 3
      %p44 = por %p42, %p43
      %p45 = scmp.ne.s32.totalorder %s36, %s37
      %p46 = scmp.eq.s32.totalorder %s19, 0
      %p47 = por %p45, %p46
      %p48 = scmp.ne.s32.totalorder %s36, %s37
      %p49 = scmp.eq.s32.totalorder %s20, 3
      %p50 = por %p48, %p49
      %p52 = scmp.ne.s32.totalorder %s37, %s51
      %p53 = scmp.eq.s32.totalorder %s20, 0
      %p54 = por %p52, %p53
      %s56 = sadd.s32 %s55, 1
      %p59 = scmp.eq.s32.totalorder %s14, 3
      %p60 = scmp.ne.s32.totalorder %s55, %s57
      %p61 = scmp.eq.s32.totalorder %s14, 0
      %p62 = por %p60, %p61
      %p63 = scmp.ne.s32.totalorder %s55, %s57
      %p64 = scmp.eq.s32.totalorder %s19, 3
      %p65 = por %p63, %p64
      %p66 = scmp.ne.s32.totalorder %s57, %s58
      %p67 = scmp.eq.s32.totalorder %s19, 0
      %p68 = por %p66, %p67
      %p69 = scmp.ne.s32.totalorder %s57, %s58
      %p70 = scmp.eq.s32.totalorder %s20, 3
      %p71 = por %p69, %p70
      %p73 = scmp.ne.s32.totalorder %s58, %s72
      %p74 = scmp.eq.s32.totalorder %s20, 0
      %p75 = por %p73, %p74
      %s77 = sadd.s32 %s76, 1
      %p80 = scmp.eq.s32.totalorder %s14, 3
      %p81 = scmp.ne.s32.totalorder %s76, %s78
      %p82 = scmp.eq.s32.totalorder %s14, 0
      %p83 = por %p81, %p82
      %p84 = scmp.ne.s32.totalorder %s76, %s78
      %p85 = scmp.eq.s32.totalorder %s19, 3
      %p86 = por %p84, %p85
      %p87 = scmp.ne.s32.totalorder %s78, %s79
      %p88 = scmp.eq.s32.totalorder %s19, 0
      %p89 = por %p87, %p88
      %p90 = scmp.ne.s32.totalorder %s78, %s79
      %p91 = scmp.eq.s32.totalorder %s20, 3
      %p92 = por %p90, %p91
      %p94 = scmp.ne.s32.totalorder %s79, %s93
      %p95 = scmp.eq.s32.totalorder %s20, 0
      %p96 = por %p94, %p95
      %s98 = sadd.s32 %s97, 1
      %p101 = scmp.eq.s32.totalorder %s14, 3
      %p102 = scmp.ne.s32.totalorder %s97, %s99
      %p103 = scmp.eq.s32.totalorder %s14, 0
      %p104 = por %p102, %p103
      %p105 = scmp.ne.s32.totalorder %s97, %s99
      %p106 = scmp.eq.s32.totalorder %s19, 3
      %p107 = por %p105, %p106
      %p108 = scmp.ne.s32.totalorder %s99, %s100
      %p109 = scmp.eq.s32.totalorder %s19, 0
      %p110 = por %p108, %p109
      %p111 = scmp.ne.s32.totalorder %s99, %s100
      %p112 = scmp.eq.s32.totalorder %s20, 3
      %p113 = por %p111, %p112
      %p115 = scmp.ne.s32.totalorder %s100, %s114
      %p116 = scmp.eq.s32.totalorder %s20, 0
      %p117 = por %p115, %p116
      %s118 = ssub.s32 %s21, %s33
      %s119 = ssub.s32 %s22, %s29
      %s120 = sor.u32 %s118, %s119
      %p121 = scmp.eq.s32.totalorder %s120, 0
      %s123 = sadd.s32 %s122, 1
      %s124 = scalar_select %p121, %s122, %s123
      %p127 = pneg %p121
      %p128 = scmp.eq.s32.totalorder %s14, 3
      %p129 = por %p127, %p128
      %p130 = scmp.ne.s32.totalorder %s122, %s125
      %p131 = scmp.eq.s32.totalorder %s14, 0
      %p132 = por %p130, %p131
      %p133 = scmp.ne.s32.totalorder %s122, %s125
      %p134 = scmp.eq.s32.totalorder %s19, 3
      %p135 = por %p133, %p134
      %p136 = scmp.ne.s32.totalorder %s125, %s126
      %p137 = scmp.eq.s32.totalorder %s19, 0
      %p138 = por %p136, %p137
      %p139 = scmp.ne.s32.totalorder %s125, %s126
      %p140 = scmp.eq.s32.totalorder %s20, 3
      %p141 = por %p139, %p140
      %p143 = scmp.ne.s32.totalorder %s126, %s142
      %p144 = scmp.eq.s32.totalorder %s20, 0
      %p145 = por %p143, %p144
      %p146 = scmp.le.s32.totalorder 1, %s14
      %p147 = scmp.lt.s32.totalorder %s14, 5
      %p148 = pnand %p146, %p147
      %p149 = pneg %p148
      // Predicated region
      $region9: #{tpu_custom_call.1} parent=5 // pred_check
        _
      $region10: #{tpu_custom_call.1} parent=5 // pred_check_branch
        %151 = sbr.rel (%p148) target = $region12
      $region11: #{tpu_custom_call.1} parent=5 // pred_region
        %s152 = ssub.s32 %s14, 1
        // Predicated region
        $region13: #{tpu_custom_call.1} parent=11 // pred_check
          %p153 = pneg %p47
        $region14: #{tpu_custom_call.1} parent=11 // pred_check_branch
          %155 = sbr.rel (%p153) target = $region16
        $region15: #{tpu_custom_call.1} parent=11 // pred_region
          _
        $region16: #{tpu_custom_call.1} parent=11 // pred_fallthru
          _
        // Predicated region
        $region17: #{tpu_custom_call.1} parent=11 // pred_check
          %p156 = pneg %p68
        $region18: #{tpu_custom_call.1} parent=11 // pred_check_branch
          %158 = sbr.rel (%p156) target = $region20
        $region19: #{tpu_custom_call.1} parent=11 // pred_region
          _
        $region20: #{tpu_custom_call.1} parent=11 // pred_fallthru
          _
        // Predicated region
        $region21: #{tpu_custom_call.1} parent=11 // pred_check
          %p159 = pneg %p89
        $region22: #{tpu_custom_call.1} parent=11 // pred_check_branch
          %161 = sbr.rel (%p159) target = $region24
        $region23: #{tpu_custom_call.1} parent=11 // pred_region
          _
        $region24: #{tpu_custom_call.1} parent=11 // pred_fallthru
          _
        // Predicated region
        $region25: #{tpu_custom_call.1} parent=11 // pred_check
          %p162 = pneg %p110
        $region26: #{tpu_custom_call.1} parent=11 // pred_check_branch
          %164 = sbr.rel (%p162) target = $region28
        $region27: #{tpu_custom_call.1} parent=11 // pred_region
          _
        $region28: #{tpu_custom_call.1} parent=11 // pred_fallthru
          _
      $region12: #{tpu_custom_call.1} parent=5 // pred_fallthru
        _
      %p165 = scmp.lt.s32.totalorder %s14, 4
      // Predicated region
      $region29: #{tpu_custom_call.1} parent=5 // pred_check
        %p166 = pneg %p165
      $region30: #{tpu_custom_call.1} parent=5 // pred_check_branch
        %168 = sbr.rel (%p166) target = $region32
      $region31: #{tpu_custom_call.1} parent=5 // pred_region
        _
      $region32: #{tpu_custom_call.1} parent=5 // pred_fallthru
        _
      %p169 = scmp.le.s32.totalorder 1, %s14
      %p170 = scmp.lt.s32.totalorder %s14, 5
      %p171 = pnand %p169, %p170
      %p172 = pneg %p171
      // Predicated region
      $region33: #{tpu_custom_call.1} parent=5 // pred_check
        _
      $region34: #{tpu_custom_call.1} parent=5 // pred_check_branch
        %174 = sbr.rel (%p171) target = $region36
      $region35: #{tpu_custom_call.1} parent=5 // pred_region
        %s175 = ssub.s32 %s14, 1
        %p176 = pneg %p47
        %p177 = pneg %p44
        %p178 = pneg %p68
        %p179 = pneg %p65
        %p180 = pneg %p89
        %p181 = pneg %p86
        %p182 = pneg %p110
        %p183 = pneg %p107
        %p184 = pneg %p138
        %p185 = pneg %p135
        %s186 = sand.u32 %s125, 1
        %s187 = scalar_lea.sflag [#allocation5], %s186
        %s188 = sand.u32 %s125, 1
        %s189 = smul.addr %s188, 128
        %s190 = scalar_lea.vmem [#allocation4], %s189
        %s191 = smul.u32 16, %s24
        %s193 = smul.u32 %s24, 8
        %s194 = smul.u32 %s193, 96
        %s195 = smul.u32 %s23, 1728
        %s196 = sadd.s32 %s194, %s195
        %s197 = scalar_lea.vmem %s0, %s196
        %p199 = scmp.lt.u32.totalorder 18, 8
        %p200 = pneg %p199
        // Predicated region
        $region37: #{tpu_custom_call.1} parent=35 // pred_check
          _
        $region38: #{tpu_custom_call.1} parent=35 // pred_check_branch
          %202 = sbr.rel (%p199) target = $region40
        $region39: #{tpu_custom_call.1} parent=35 // pred_region
          %s263 = sand.u32 18, 7
          %p264 = scmp.eq.s32.totalorder %s263, 0
          %p265 = pneg %p264
          // Predicated region
          $region52: #{tpu_custom_call.1} parent=39 // pred_check
            _
          $region53: #{tpu_custom_call.1} parent=39 // pred_check_branch
            %267 = sbr.rel (%p264) target = $region55
          $region54: #{tpu_custom_call.1} parent=39 // pred_region
            %s268 = sand.u32 18, 7
            %s269 = ssub.s32 18, %s268
            %s270 = scalar_lea.vmem %s197, %s269
            %s271 = ssub.s32 18, %s268
            %s272 = scalar_lea.vmem [#allocation2], %s271
            loop: start=0, step=1, limit=1
            $region56: #{tpu_custom_call.1} parent=54 // loop_pre_header
              _
            $region57: #{tpu_custom_call.1} parent=54 // loop_header
              %s274 = sphi 0, %s278
              %p275 = scmp.ge.s32.totalorder %s274, 1
              %s279 = sphi %s197, %s197
              %s280 = sphi [#allocation2], [#allocation2]
            $region58: #{tpu_custom_call.1} parent=54 // loop_header_branch
              %277 = sbr.rel (%p275) target = $region62
            $region59: #{tpu_custom_call.1} parent=54 // loop_body
              %v281 = vld [vmem:[%s279] sm:$0xff]
              %282 = vst [vmem:[%s280] sm:$0xff] %v281
              %v283 = vld [vmem:[%s279 + $0x8] sm:$0xff]
              %284 = vst [vmem:[%s280 + $0x8] sm:$0xff] %v283
              %v285 = vld [vmem:[%s279 + $0x18] sm:$0xff]
              %286 = vst [vmem:[%s280 + $0x18] sm:$0xff] %v285
              %v287 = vld [vmem:[%s279 + $0x20] sm:$0xff]
              %288 = vst [vmem:[%s280 + $0x20] sm:$0xff] %v287
              %v289 = vld [vmem:[%s279 + $0x30] sm:$0xff]
              %290 = vst [vmem:[%s280 + $0x30] sm:$0xff] %v289
              %v291 = vld [vmem:[%s279 + $0x38] sm:$0xff]
              %292 = vst [vmem:[%s280 + $0x38] sm:$0xff] %v291
              %v293 = vld [vmem:[%s279 + $0x48] sm:$0xff]
              %294 = vst [vmem:[%s280 + $0x48] sm:$0xff] %v293
              %v295 = vld [vmem:[%s279 + $0x50] sm:$0xff]
              %296 = vst [vmem:[%s280 + $0x50] sm:$0xff] %v295
              %v297 = vld [vmem:[%s279 + $0x60] sm:$0xff]
              %298 = vst [vmem:[%s280 + $0x60] sm:$0xff] %v297
              %v299 = vld [vmem:[%s279 + $0x68] sm:$0xff]
              %300 = vst [vmem:[%s280 + $0x68] sm:$0xff] %v299
              %v301 = vld [vmem:[%s279 + $0x78] sm:$0xff]
              %302 = vst [vmem:[%s280 + $0x78] sm:$0xff] %v301
              %v303 = vld [vmem:[%s279 + $0x80] sm:$0xff]
              %304 = vst [vmem:[%s280 + $0x80] sm:$0xff] %v303
              %v305 = vld [vmem:[%s279 + $0x90] sm:$0xff]
              %306 = vst [vmem:[%s280 + $0x90] sm:$0xff] %v305
              %v307 = vld [vmem:[%s279 + $0x98] sm:$0xff]
              %308 = vst [vmem:[%s280 + $0x98] sm:$0xff] %v307
              %v309 = vld [vmem:[%s279 + $0xa8] sm:$0xff]
              %310 = vst [vmem:[%s280 + $0xa8] sm:$0xff] %v309
              %v311 = vld [vmem:[%s279 + $0xb0] sm:$0xff]
              %312 = vst [vmem:[%s280 + $0xb0] sm:$0xff] %v311
              %v313 = vld [vmem:[%s279 + $0xc0] sm:$0xff]
              %314 = vst [vmem:[%s280 + $0xc0] sm:$0xff] %v313
              %v315 = vld [vmem:[%s279 + $0xc8] sm:$0xff]
              %316 = vst [vmem:[%s280 + $0xc8] sm:$0xff] %v315
              %v317 = vld [vmem:[%s279 + $0xd8] sm:$0xff]
              %318 = vst [vmem:[%s280 + $0xd8] sm:$0xff] %v317
              %v319 = vld [vmem:[%s279 + $0xe0] sm:$0xff]
              %320 = vst [vmem:[%s280 + $0xe0] sm:$0xff] %v319
              %v321 = vld [vmem:[%s279 + $0xf0] sm:$0xff]
              %322 = vst [vmem:[%s280 + $0xf0] sm:$0xff] %v321
              %v323 = vld [vmem:[%s279 + $0xf8] sm:$0xff]
              %324 = vst [vmem:[%s280 + $0xf8] sm:$0xff] %v323
              %v325 = vld [vmem:[%s279 + $0x108] sm:$0xff]
              %326 = vst [vmem:[%s280 + $0x108] sm:$0xff] %v325
              %v327 = vld [vmem:[%s279 + $0x110] sm:$0xff]
              %328 = vst [vmem:[%s280 + $0x110] sm:$0xff] %v327
              %v329 = vld [vmem:[%s279 + $0x120] sm:$0xff]
              %330 = vst [vmem:[%s280 + $0x120] sm:$0xff] %v329
              %v331 = vld [vmem:[%s279 + $0x128] sm:$0xff]
              %332 = vst [vmem:[%s280 + $0x128] sm:$0xff] %v331
              %v333 = vld [vmem:[%s279 + $0x138] sm:$0xff]
              %334 = vst [vmem:[%s280 + $0x138] sm:$0xff] %v333
              %v335 = vld [vmem:[%s279 + $0x140] sm:$0xff]
              %336 = vst [vmem:[%s280 + $0x140] sm:$0xff] %v335
              %v337 = vld [vmem:[%s279 + $0x150] sm:$0xff]
              %338 = vst [vmem:[%s280 + $0x150] sm:$0xff] %v337
              %v339 = vld [vmem:[%s279 + $0x158] sm:$0xff]
              %340 = vst [vmem:[%s280 + $0x158] sm:$0xff] %v339
              %v341 = vld [vmem:[%s279 + $0x168] sm:$0xff]
              %342 = vst [vmem:[%s280 + $0x168] sm:$0xff] %v341
              %v343 = vld [vmem:[%s279 + $0x170] sm:$0xff]
              %344 = vst [vmem:[%s280 + $0x170] sm:$0xff] %v343
              %v345 = vld [vmem:[%s279 + $0x180] sm:$0xff]
              %346 = vst [vmem:[%s280 + $0x180] sm:$0xff] %v345
              %v347 = vld [vmem:[%s279 + $0x188] sm:$0xff]
              %348 = vst [vmem:[%s280 + $0x188] sm:$0xff] %v347
              %v349 = vld [vmem:[%s279 + $0x198] sm:$0xff]
              %350 = vst [vmem:[%s280 + $0x198] sm:$0xff] %v349
              %v351 = vld [vmem:[%s279 + $0x1a0] sm:$0xff]
              %352 = vst [vmem:[%s280 + $0x1a0] sm:$0xff] %v351
              %v353 = vld [vmem:[%s279 + $0x1b0] sm:$0xff]
              %354 = vst [vmem:[%s280 + $0x1b0] sm:$0xff] %v353
              %v355 = vld [vmem:[%s279 + $0x1b8] sm:$0xff]
              %356 = vst [vmem:[%s280 + $0x1b8] sm:$0xff] %v355
              %v357 = vld [vmem:[%s279 + $0x1c8] sm:$0xff]
              %358 = vst [vmem:[%s280 + $0x1c8] sm:$0xff] %v357
              %v359 = vld [vmem:[%s279 + $0x1d0] sm:$0xff]
              %360 = vst [vmem:[%s280 + $0x1d0] sm:$0xff] %v359
              %v361 = vld [vmem:[%s279 + $0x1e0] sm:$0xff]
              %362 = vst [vmem:[%s280 + $0x1e0] sm:$0xff] %v361
              %v363 = vld [vmem:[%s279 + $0x1e8] sm:$0xff]
              %364 = vst [vmem:[%s280 + $0x1e8] sm:$0xff] %v363
              %v365 = vld [vmem:[%s279 + $0x1f8] sm:$0xff]
              %366 = vst [vmem:[%s280 + $0x1f8] sm:$0xff] %v365
              %v367 = vld [vmem:[%s279 + $0x200] sm:$0xff]
              %368 = vst [vmem:[%s280 + $0x200] sm:$0xff] %v367
              %v369 = vld [vmem:[%s279 + $0x210] sm:$0xff]
              %370 = vst [vmem:[%s280 + $0x210] sm:$0xff] %v369
              %v371 = vld [vmem:[%s279 + $0x218] sm:$0xff]
              %372 = vst [vmem:[%s280 + $0x218] sm:$0xff] %v371
              %v373 = vld [vmem:[%s279 + $0x228] sm:$0xff]
              %374 = vst [vmem:[%s280 + $0x228] sm:$0xff] %v373
              %v375 = vld [vmem:[%s279 + $0x230] sm:$0xff]
              %376 = vst [vmem:[%s280 + $0x230] sm:$0xff] %v375
            $region60: #{tpu_custom_call.1} parent=54 // loop_footer
              %s278 = sadd.s32 1, %s274
            $region61: #{tpu_custom_call.1} parent=54 // loop_footer_branch
              %273 = sbr.rel target = $region57
            $region62: #{tpu_custom_call.1} parent=54 // loop_exit
              _
            %s377 = sshllo.u32 0, %s268
            loop: start=0, step=1, limit=1
            $region63: #{tpu_custom_call.1} parent=54 // loop_pre_header
              _
            $region64: #{tpu_custom_call.1} parent=54 // loop_header
              %s379 = sphi 0, %s383
              %p380 = scmp.ge.s32.totalorder %s379, 1
              %s384 = sphi %s270, %s270
              %s385 = sphi %s272, %s272
            $region65: #{tpu_custom_call.1} parent=54 // loop_header_branch
              %382 = sbr.rel (%p380) target = $region69
            $region66: #{tpu_custom_call.1} parent=54 // loop_body
              %v386 = vld [vmem:[%s384] sm:%s377]
              %387 = vst [vmem:[%s385] sm:%s377] %v386
              %v388 = vld [vmem:[%s384 + $0x18] sm:%s377]
              %389 = vst [vmem:[%s385 + $0x18] sm:%s377] %v388
              %v390 = vld [vmem:[%s384 + $0x30] sm:%s377]
              %391 = vst [vmem:[%s385 + $0x30] sm:%s377] %v390
              %v392 = vld [vmem:[%s384 + $0x48] sm:%s377]
              %393 = vst [vmem:[%s385 + $0x48] sm:%s377] %v392
              %v394 = vld [vmem:[%s384 + $0x60] sm:%s377]
              %395 = vst [vmem:[%s385 + $0x60] sm:%s377] %v394
              %v396 = vld [vmem:[%s384 + $0x78] sm:%s377]
              %397 = vst [vmem:[%s385 + $0x78] sm:%s377] %v396
              %v398 = vld [vmem:[%s384 + $0x90] sm:%s377]
              %399 = vst [vmem:[%s385 + $0x90] sm:%s377] %v398
              %v400 = vld [vmem:[%s384 + $0xa8] sm:%s377]
              %401 = vst [vmem:[%s385 + $0xa8] sm:%s377] %v400
              %v402 = vld [vmem:[%s384 + $0xc0] sm:%s377]
              %403 = vst [vmem:[%s385 + $0xc0] sm:%s377] %v402
              %v404 = vld [vmem:[%s384 + $0xd8] sm:%s377]
              %405 = vst [vmem:[%s385 + $0xd8] sm:%s377] %v404
              %v406 = vld [vmem:[%s384 + $0xf0] sm:%s377]
              %407 = vst [vmem:[%s385 + $0xf0] sm:%s377] %v406
              %v408 = vld [vmem:[%s384 + $0x108] sm:%s377]
              %409 = vst [vmem:[%s385 + $0x108] sm:%s377] %v408
              %v410 = vld [vmem:[%s384 + $0x120] sm:%s377]
              %411 = vst [vmem:[%s385 + $0x120] sm:%s377] %v410
              %v412 = vld [vmem:[%s384 + $0x138] sm:%s377]
              %413 = vst [vmem:[%s385 + $0x138] sm:%s377] %v412
              %v414 = vld [vmem:[%s384 + $0x150] sm:%s377]
              %415 = vst [vmem:[%s385 + $0x150] sm:%s377] %v414
              %v416 = vld [vmem:[%s384 + $0x168] sm:%s377]
              %417 = vst [vmem:[%s385 + $0x168] sm:%s377] %v416
              %v418 = vld [vmem:[%s384 + $0x180] sm:%s377]
              %419 = vst [vmem:[%s385 + $0x180] sm:%s377] %v418
              %v420 = vld [vmem:[%s384 + $0x198] sm:%s377]
              %421 = vst [vmem:[%s385 + $0x198] sm:%s377] %v420
              %v422 = vld [vmem:[%s384 + $0x1b0] sm:%s377]
              %423 = vst [vmem:[%s385 + $0x1b0] sm:%s377] %v422
              %v424 = vld [vmem:[%s384 + $0x1c8] sm:%s377]
              %425 = vst [vmem:[%s385 + $0x1c8] sm:%s377] %v424
              %v426 = vld [vmem:[%s384 + $0x1e0] sm:%s377]
              %427 = vst [vmem:[%s385 + $0x1e0] sm:%s377] %v426
              %v428 = vld [vmem:[%s384 + $0x1f8] sm:%s377]
              %429 = vst [vmem:[%s385 + $0x1f8] sm:%s377] %v428
              %v430 = vld [vmem:[%s384 + $0x210] sm:%s377]
              %431 = vst [vmem:[%s385 + $0x210] sm:%s377] %v430
              %v432 = vld [vmem:[%s384 + $0x228] sm:%s377]
              %433 = vst [vmem:[%s385 + $0x228] sm:%s377] %v432
            $region67: #{tpu_custom_call.1} parent=54 // loop_footer
              %s383 = sadd.s32 1, %s379
            $region68: #{tpu_custom_call.1} parent=54 // loop_footer_branch
              %378 = sbr.rel target = $region64
            $region69: #{tpu_custom_call.1} parent=54 // loop_exit
              _
          $region55: #{tpu_custom_call.1} parent=39 // pred_fallthru
            _
        $region40: #{tpu_custom_call.1} parent=35 // pred_fallthru
          _
        // Predicated region
        $region41: #{tpu_custom_call.1} parent=35 // pred_check
          %p203 = pneg %p199
        $region42: #{tpu_custom_call.1} parent=35 // pred_check_branch
          %205 = sbr.rel (%p203) target = $region44
        $region43: #{tpu_custom_call.1} parent=35 // pred_region
          %s206 = sshllo.u32 0, 18
          loop: start=0, step=1, limit=1
          $region45: #{tpu_custom_call.1} parent=43 // loop_pre_header
            _
          $region46: #{tpu_custom_call.1} parent=43 // loop_header
            %s208 = sphi 0, %s212
            %p209 = scmp.ge.s32.totalorder %s208, 1
            %s213 = sphi %s197, %s197
            %s214 = sphi [#allocation2], [#allocation2]
          $region47: #{tpu_custom_call.1} parent=43 // loop_header_branch
            %211 = sbr.rel (%p209) target = $region51
          $region48: #{tpu_custom_call.1} parent=43 // loop_body
            %v215 = vld [vmem:[%s213] sm:%s206]
            %216 = vst [vmem:[%s214] sm:%s206] %v215
            %v217 = vld [vmem:[%s213 + $0x18] sm:%s206]
            %218 = vst [vmem:[%s214 + $0x18] sm:%s206] %v217
            %v219 = vld [vmem:[%s213 + $0x30] sm:%s206]
            %220 = vst [vmem:[%s214 + $0x30] sm:%s206] %v219
            %v221 = vld [vmem:[%s213 + $0x48] sm:%s206]
            %222 = vst [vmem:[%s214 + $0x48] sm:%s206] %v221
            %v223 = vld [vmem:[%s213 + $0x60] sm:%s206]
            %224 = vst [vmem:[%s214 + $0x60] sm:%s206] %v223
            %v225 = vld [vmem:[%s213 + $0x78] sm:%s206]
            %226 = vst [vmem:[%s214 + $0x78] sm:%s206] %v225
            %v227 = vld [vmem:[%s213 + $0x90] sm:%s206]
            %228 = vst [vmem:[%s214 + $0x90] sm:%s206] %v227
            %v229 = vld [vmem:[%s213 + $0xa8] sm:%s206]
            %230 = vst [vmem:[%s214 + $0xa8] sm:%s206] %v229
            %v231 = vld [vmem:[%s213 + $0xc0] sm:%s206]
            %232 = vst [vmem:[%s214 + $0xc0] sm:%s206] %v231
            %v233 = vld [vmem:[%s213 + $0xd8] sm:%s206]
            %234 = vst [vmem:[%s214 + $0xd8] sm:%s206] %v233
            %v235 = vld [vmem:[%s213 + $0xf0] sm:%s206]
            %236 = vst [vmem:[%s214 + $0xf0] sm:%s206] %v235
            %v237 = vld [vmem:[%s213 + $0x108] sm:%s206]
            %238 = vst [vmem:[%s214 + $0x108] sm:%s206] %v237
            %v239 = vld [vmem:[%s213 + $0x120] sm:%s206]
            %240 = vst [vmem:[%s214 + $0x120] sm:%s206] %v239
            %v241 = vld [vmem:[%s213 + $0x138] sm:%s206]
            %242 = vst [vmem:[%s214 + $0x138] sm:%s206] %v241
            %v243 = vld [vmem:[%s213 + $0x150] sm:%s206]
            %244 = vst [vmem:[%s214 + $0x150] sm:%s206] %v243
            %v245 = vld [vmem:[%s213 + $0x168] sm:%s206]
            %246 = vst [vmem:[%s214 + $0x168] sm:%s206] %v245
            %v247 = vld [vmem:[%s213 + $0x180] sm:%s206]
            %248 = vst [vmem:[%s214 + $0x180] sm:%s206] %v247
            %v249 = vld [vmem:[%s213 + $0x198] sm:%s206]
            %250 = vst [vmem:[%s214 + $0x198] sm:%s206] %v249
            %v251 = vld [vmem:[%s213 + $0x1b0] sm:%s206]
            %252 = vst [vmem:[%s214 + $0x1b0] sm:%s206] %v251
            %v253 = vld [vmem:[%s213 + $0x1c8] sm:%s206]
            %254 = vst [vmem:[%s214 + $0x1c8] sm:%s206] %v253
            %v255 = vld [vmem:[%s213 + $0x1e0] sm:%s206]
            %256 = vst [vmem:[%s214 + $0x1e0] sm:%s206] %v255
            %v257 = vld [vmem:[%s213 + $0x1f8] sm:%s206]
            %258 = vst [vmem:[%s214 + $0x1f8] sm:%s206] %v257
            %v259 = vld [vmem:[%s213 + $0x210] sm:%s206]
            %260 = vst [vmem:[%s214 + $0x210] sm:%s206] %v259
            %v261 = vld [vmem:[%s213 + $0x228] sm:%s206]
            %262 = vst [vmem:[%s214 + $0x228] sm:%s206] %v261
          $region49: #{tpu_custom_call.1} parent=43 // loop_footer
            %s212 = sadd.s32 1, %s208
          $region50: #{tpu_custom_call.1} parent=43 // loop_footer_branch
            %207 = sbr.rel target = $region46
          $region51: #{tpu_custom_call.1} parent=43 // loop_exit
            _
        $region44: #{tpu_custom_call.1} parent=35 // pred_fallthru
          _
        // Predicated region
        $region70: #{tpu_custom_call.1} parent=35 // pred_check
          _
        $region71: #{tpu_custom_call.1} parent=35 // pred_check_branch
          %436 = sbr.rel (0) target = $region73
        $region72: #{tpu_custom_call.1} parent=35 // pred_region
          %437 = vsyncadd [#allocation3], 6912
        $region73: #{tpu_custom_call.1} parent=35 // pred_fallthru
          _
        loop: start=0, step=1, limit=2
        $region74: #{tpu_custom_call.1} parent=35 // loop_pre_header
          _
        $region75: #{tpu_custom_call.1} parent=35 // loop_header
          %s439 = sphi 0, %s443
          %p440 = scmp.ge.s32.totalorder %s439, 2
        $region76: #{tpu_custom_call.1} parent=35 // loop_header_branch
          %442 = sbr.rel (%p440) target = $region80
        $region77: #{tpu_custom_call.1} parent=35 // loop_body
          %s444 = sand.u32 %s439, 1
          %s445 = scalar_lea.sflag [#allocation3], %s444
          %s446 = smul.u32 6, 4
          %s447 = smul.u32 %s446, 18
          %s448 = smul.u32 %s447, 1
          %s449 = sshll.u32 %s448, 4
          %450 = dma.done %s445, %s449
          %s451 = sadd.s32 %s439, 1
          %p452 = scmp.lt.s32.totalorder %s451, 2
          // Predicated region
          $region81: #{tpu_custom_call.1} parent=77 // pred_check
            %p453 = pneg %p452
          $region82: #{tpu_custom_call.1} parent=77 // pred_check_branch
            %455 = sbr.rel (%p453) target = $region84
          $region83: #{tpu_custom_call.1} parent=77 // pred_region
            %s456 = ssub.s32 1, %s444
            %s457 = smul.u32 %s24, 2
            %s458 = sadd.s32 %s457, %s451
            %s459 = smul.u32 %s458, 4
            %s460 = smul.u32 %s459, 96
            %s461 = sadd.s32 %s460, %s195
            %s462 = scalar_lea.vmem %s0, %s461
            %s463 = smul.u32 %s456, 576
            %s464 = scalar_lea.vmem [#allocation2], %s463
            %s465 = scalar_lea.sflag [#allocation3], %s456
            %p467 = scmp.lt.u32.totalorder 18, 8
            %p468 = pneg %p467
            // Predicated region
            $region85: #{tpu_custom_call.1} parent=83 // pred_check
              _
            $region86: #{tpu_custom_call.1} parent=83 // pred_check_branch
              %470 = sbr.rel (%p467) target = $region88
            $region87: #{tpu_custom_call.1} parent=83 // pred_region
              %s531 = sand.u32 18, 7
              %p532 = scmp.eq.s32.totalorder %s531, 0
              %p533 = pneg %p532
              // Predicated region
              $region100: #{tpu_custom_call.1} parent=87 // pred_check
                _
              $region101: #{tpu_custom_call.1} parent=87 // pred_check_branch
                %535 = sbr.rel (%p532) target = $region103
              $region102: #{tpu_custom_call.1} parent=87 // pred_region
                %s536 = sand.u32 18, 7
                %s537 = ssub.s32 18, %s536
                %s538 = scalar_lea.vmem %s462, %s537
                %s539 = ssub.s32 18, %s536
                %s540 = scalar_lea.vmem %s464, %s539 [#allocation2]
                loop: start=0, step=1, limit=1
                $region104: #{tpu_custom_call.1} parent=102 // loop_pre_header
                  _
                $region105: #{tpu_custom_call.1} parent=102 // loop_header
                  %s542 = sphi 0, %s546
                  %p543 = scmp.ge.s32.totalorder %s542, 1
                  %s547 = sphi %s462, %s462
                  %s548 = sphi %s464, %s464
                $region106: #{tpu_custom_call.1} parent=102 // loop_header_branch
                  %545 = sbr.rel (%p543) target = $region110
                $region107: #{tpu_custom_call.1} parent=102 // loop_body
                  %v549 = vld [vmem:[%s547] sm:$0xff]
                  %550 = vst [vmem:[%s548] sm:$0xff] %v549
                  %v551 = vld [vmem:[%s547 + $0x8] sm:$0xff]
                  %552 = vst [vmem:[%s548 + $0x8] sm:$0xff] %v551
                  %v553 = vld [vmem:[%s547 + $0x18] sm:$0xff]
                  %554 = vst [vmem:[%s548 + $0x18] sm:$0xff] %v553
                  %v555 = vld [vmem:[%s547 + $0x20] sm:$0xff]
                  %556 = vst [vmem:[%s548 + $0x20] sm:$0xff] %v555
                  %v557 = vld [vmem:[%s547 + $0x30] sm:$0xff]
                  %558 = vst [vmem:[%s548 + $0x30] sm:$0xff] %v557
                  %v559 = vld [vmem:[%s547 + $0x38] sm:$0xff]
                  %560 = vst [vmem:[%s548 + $0x38] sm:$0xff] %v559
                  %v561 = vld [vmem:[%s547 + $0x48] sm:$0xff]
                  %562 = vst [vmem:[%s548 + $0x48] sm:$0xff] %v561
                  %v563 = vld [vmem:[%s547 + $0x50] sm:$0xff]
                  %564 = vst [vmem:[%s548 + $0x50] sm:$0xff] %v563
                  %v565 = vld [vmem:[%s547 + $0x60] sm:$0xff]
                  %566 = vst [vmem:[%s548 + $0x60] sm:$0xff] %v565
                  %v567 = vld [vmem:[%s547 + $0x68] sm:$0xff]
                  %568 = vst [vmem:[%s548 + $0x68] sm:$0xff] %v567
                  %v569 = vld [vmem:[%s547 + $0x78] sm:$0xff]
                  %570 = vst [vmem:[%s548 + $0x78] sm:$0xff] %v569
                  %v571 = vld [vmem:[%s547 + $0x80] sm:$0xff]
                  %572 = vst [vmem:[%s548 + $0x80] sm:$0xff] %v571
                  %v573 = vld [vmem:[%s547 + $0x90] sm:$0xff]
                  %574 = vst [vmem:[%s548 + $0x90] sm:$0xff] %v573
                  %v575 = vld [vmem:[%s547 + $0x98] sm:$0xff]
                  %576 = vst [vmem:[%s548 + $0x98] sm:$0xff] %v575
                  %v577 = vld [vmem:[%s547 + $0xa8] sm:$0xff]
                  %578 = vst [vmem:[%s548 + $0xa8] sm:$0xff] %v577
                  %v579 = vld [vmem:[%s547 + $0xb0] sm:$0xff]
                  %580 = vst [vmem:[%s548 + $0xb0] sm:$0xff] %v579
                  %v581 = vld [vmem:[%s547 + $0xc0] sm:$0xff]
                  %582 = vst [vmem:[%s548 + $0xc0] sm:$0xff] %v581
                  %v583 = vld [vmem:[%s547 + $0xc8] sm:$0xff]
                  %584 = vst [vmem:[%s548 + $0xc8] sm:$0xff] %v583
                  %v585 = vld [vmem:[%s547 + $0xd8] sm:$0xff]
                  %586 = vst [vmem:[%s548 + $0xd8] sm:$0xff] %v585
                  %v587 = vld [vmem:[%s547 + $0xe0] sm:$0xff]
                  %588 = vst [vmem:[%s548 + $0xe0] sm:$0xff] %v587
                  %v589 = vld [vmem:[%s547 + $0xf0] sm:$0xff]
                  %590 = vst [vmem:[%s548 + $0xf0] sm:$0xff] %v589
                  %v591 = vld [vmem:[%s547 + $0xf8] sm:$0xff]
                  %592 = vst [vmem:[%s548 + $0xf8] sm:$0xff] %v591
                  %v593 = vld [vmem:[%s547 + $0x108] sm:$0xff]
                  %594 = vst [vmem:[%s548 + $0x108] sm:$0xff] %v593
                  %v595 = vld [vmem:[%s547 + $0x110] sm:$0xff]
                  %596 = vst [vmem:[%s548 + $0x110] sm:$0xff] %v595
                  %v597 = vld [vmem:[%s547 + $0x120] sm:$0xff]
                  %598 = vst [vmem:[%s548 + $0x120] sm:$0xff] %v597
                  %v599 = vld [vmem:[%s547 + $0x128] sm:$0xff]
                  %600 = vst [vmem:[%s548 + $0x128] sm:$0xff] %v599
                  %v601 = vld [vmem:[%s547 + $0x138] sm:$0xff]
                  %602 = vst [vmem:[%s548 + $0x138] sm:$0xff] %v601
                  %v603 = vld [vmem:[%s547 + $0x140] sm:$0xff]
                  %604 = vst [vmem:[%s548 + $0x140] sm:$0xff] %v603
                  %v605 = vld [vmem:[%s547 + $0x150] sm:$0xff]
                  %606 = vst [vmem:[%s548 + $0x150] sm:$0xff] %v605
                  %v607 = vld [vmem:[%s547 + $0x158] sm:$0xff]
                  %608 = vst [vmem:[%s548 + $0x158] sm:$0xff] %v607
                  %v609 = vld [vmem:[%s547 + $0x168] sm:$0xff]
                  %610 = vst [vmem:[%s548 + $0x168] sm:$0xff] %v609
                  %v611 = vld [vmem:[%s547 + $0x170] sm:$0xff]
                  %612 = vst [vmem:[%s548 + $0x170] sm:$0xff] %v611
                  %v613 = vld [vmem:[%s547 + $0x180] sm:$0xff]
                  %614 = vst [vmem:[%s548 + $0x180] sm:$0xff] %v613
                  %v615 = vld [vmem:[%s547 + $0x188] sm:$0xff]
                  %616 = vst [vmem:[%s548 + $0x188] sm:$0xff] %v615
                  %v617 = vld [vmem:[%s547 + $0x198] sm:$0xff]
                  %618 = vst [vmem:[%s548 + $0x198] sm:$0xff] %v617
                  %v619 = vld [vmem:[%s547 + $0x1a0] sm:$0xff]
                  %620 = vst [vmem:[%s548 + $0x1a0] sm:$0xff] %v619
                  %v621 = vld [vmem:[%s547 + $0x1b0] sm:$0xff]
                  %622 = vst [vmem:[%s548 + $0x1b0] sm:$0xff] %v621
                  %v623 = vld [vmem:[%s547 + $0x1b8] sm:$0xff]
                  %624 = vst [vmem:[%s548 + $0x1b8] sm:$0xff] %v623
                  %v625 = vld [vmem:[%s547 + $0x1c8] sm:$0xff]
                  %626 = vst [vmem:[%s548 + $0x1c8] sm:$0xff] %v625
                  %v627 = vld [vmem:[%s547 + $0x1d0] sm:$0xff]
                  %628 = vst [vmem:[%s548 + $0x1d0] sm:$0xff] %v627
                  %v629 = vld [vmem:[%s547 + $0x1e0] sm:$0xff]
                  %630 = vst [vmem:[%s548 + $0x1e0] sm:$0xff] %v629
                  %v631 = vld [vmem:[%s547 + $0x1e8] sm:$0xff]
                  %632 = vst [vmem:[%s548 + $0x1e8] sm:$0xff] %v631
                  %v633 = vld [vmem:[%s547 + $0x1f8] sm:$0xff]
                  %634 = vst [vmem:[%s548 + $0x1f8] sm:$0xff] %v633
                  %v635 = vld [vmem:[%s547 + $0x200] sm:$0xff]
                  %636 = vst [vmem:[%s548 + $0x200] sm:$0xff] %v635
                  %v637 = vld [vmem:[%s547 + $0x210] sm:$0xff]
                  %638 = vst [vmem:[%s548 + $0x210] sm:$0xff] %v637
                  %v639 = vld [vmem:[%s547 + $0x218] sm:$0xff]
                  %640 = vst [vmem:[%s548 + $0x218] sm:$0xff] %v639
                  %v641 = vld [vmem:[%s547 + $0x228] sm:$0xff]
                  %642 = vst [vmem:[%s548 + $0x228] sm:$0xff] %v641
                  %v643 = vld [vmem:[%s547 + $0x230] sm:$0xff]
                  %644 = vst [vmem:[%s548 + $0x230] sm:$0xff] %v643
                $region108: #{tpu_custom_call.1} parent=102 // loop_footer
                  %s546 = sadd.s32 1, %s542
                $region109: #{tpu_custom_call.1} parent=102 // loop_footer_branch
                  %541 = sbr.rel target = $region105
                $region110: #{tpu_custom_call.1} parent=102 // loop_exit
                  _
                %s645 = sshllo.u32 0, %s536
                loop: start=0, step=1, limit=1
                $region111: #{tpu_custom_call.1} parent=102 // loop_pre_header
                  _
                $region112: #{tpu_custom_call.1} parent=102 // loop_header
                  %s647 = sphi 0, %s651
                  %p648 = scmp.ge.s32.totalorder %s647, 1
                  %s652 = sphi %s538, %s538
                  %s653 = sphi %s540, %s540
                $region113: #{tpu_custom_call.1} parent=102 // loop_header_branch
                  %650 = sbr.rel (%p648) target = $region117
                $region114: #{tpu_custom_call.1} parent=102 // loop_body
                  %v654 = vld [vmem:[%s652] sm:%s645]
                  %655 = vst [vmem:[%s653] sm:%s645] %v654
                  %v656 = vld [vmem:[%s652 + $0x18] sm:%s645]
                  %657 = vst [vmem:[%s653 + $0x18] sm:%s645] %v656
                  %v658 = vld [vmem:[%s652 + $0x30] sm:%s645]
                  %659 = vst [vmem:[%s653 + $0x30] sm:%s645] %v658
                  %v660 = vld [vmem:[%s652 + $0x48] sm:%s645]
                  %661 = vst [vmem:[%s653 + $0x48] sm:%s645] %v660
                  %v662 = vld [vmem:[%s652 + $0x60] sm:%s645]
                  %663 = vst [vmem:[%s653 + $0x60] sm:%s645] %v662
                  %v664 = vld [vmem:[%s652 + $0x78] sm:%s645]
                  %665 = vst [vmem:[%s653 + $0x78] sm:%s645] %v664
                  %v666 = vld [vmem:[%s652 + $0x90] sm:%s645]
                  %667 = vst [vmem:[%s653 + $0x90] sm:%s645] %v666
                  %v668 = vld [vmem:[%s652 + $0xa8] sm:%s645]
                  %669 = vst [vmem:[%s653 + $0xa8] sm:%s645] %v668
                  %v670 = vld [vmem:[%s652 + $0xc0] sm:%s645]
                  %671 = vst [vmem:[%s653 + $0xc0] sm:%s645] %v670
                  %v672 = vld [vmem:[%s652 + $0xd8] sm:%s645]
                  %673 = vst [vmem:[%s653 + $0xd8] sm:%s645] %v672
                  %v674 = vld [vmem:[%s652 + $0xf0] sm:%s645]
                  %675 = vst [vmem:[%s653 + $0xf0] sm:%s645] %v674
                  %v676 = vld [vmem:[%s652 + $0x108] sm:%s645]
                  %677 = vst [vmem:[%s653 + $0x108] sm:%s645] %v676
                  %v678 = vld [vmem:[%s652 + $0x120] sm:%s645]
                  %679 = vst [vmem:[%s653 + $0x120] sm:%s645] %v678
                  %v680 = vld [vmem:[%s652 + $0x138] sm:%s645]
                  %681 = vst [vmem:[%s653 + $0x138] sm:%s645] %v680
                  %v682 = vld [vmem:[%s652 + $0x150] sm:%s645]
                  %683 = vst [vmem:[%s653 + $0x150] sm:%s645] %v682
                  %v684 = vld [vmem:[%s652 + $0x168] sm:%s645]
                  %685 = vst [vmem:[%s653 + $0x168] sm:%s645] %v684
                  %v686 = vld [vmem:[%s652 + $0x180] sm:%s645]
                  %687 = vst [vmem:[%s653 + $0x180] sm:%s645] %v686
                  %v688 = vld [vmem:[%s652 + $0x198] sm:%s645]
                  %689 = vst [vmem:[%s653 + $0x198] sm:%s645] %v688
                  %v690 = vld [vmem:[%s652 + $0x1b0] sm:%s645]
                  %691 = vst [vmem:[%s653 + $0x1b0] sm:%s645] %v690
                  %v692 = vld [vmem:[%s652 + $0x1c8] sm:%s645]
                  %693 = vst [vmem:[%s653 + $0x1c8] sm:%s645] %v692
                  %v694 = vld [vmem:[%s652 + $0x1e0] sm:%s645]
                  %695 = vst [vmem:[%s653 + $0x1e0] sm:%s645] %v694
                  %v696 = vld [vmem:[%s652 + $0x1f8] sm:%s645]
                  %697 = vst [vmem:[%s653 + $0x1f8] sm:%s645] %v696
                  %v698 = vld [vmem:[%s652 + $0x210] sm:%s645]
                  %699 = vst [vmem:[%s653 + $0x210] sm:%s645] %v698
                  %v700 = vld [vmem:[%s652 + $0x228] sm:%s645]
                  %701 = vst [vmem:[%s653 + $0x228] sm:%s645] %v700
                $region115: #{tpu_custom_call.1} parent=102 // loop_footer
                  %s651 = sadd.s32 1, %s647
                $region116: #{tpu_custom_call.1} parent=102 // loop_footer_branch
                  %646 = sbr.rel target = $region112
                $region117: #{tpu_custom_call.1} parent=102 // loop_exit
                  _
              $region103: #{tpu_custom_call.1} parent=87 // pred_fallthru
                _
            $region88: #{tpu_custom_call.1} parent=83 // pred_fallthru
              _
            // Predicated region
            $region89: #{tpu_custom_call.1} parent=83 // pred_check
              %p471 = pneg %p467
            $region90: #{tpu_custom_call.1} parent=83 // pred_check_branch
              %473 = sbr.rel (%p471) target = $region92
            $region91: #{tpu_custom_call.1} parent=83 // pred_region
              %s474 = sshllo.u32 0, 18
              loop: start=0, step=1, limit=1
              $region93: #{tpu_custom_call.1} parent=91 // loop_pre_header
                _
              $region94: #{tpu_custom_call.1} parent=91 // loop_header
                %s476 = sphi 0, %s480
                %p477 = scmp.ge.s32.totalorder %s476, 1
                %s481 = sphi %s462, %s462
                %s482 = sphi %s464, %s464
              $region95: #{tpu_custom_call.1} parent=91 // loop_header_branch
                %479 = sbr.rel (%p477) target = $region99
              $region96: #{tpu_custom_call.1} parent=91 // loop_body
                %v483 = vld [vmem:[%s481] sm:%s474]
                %484 = vst [vmem:[%s482] sm:%s474] %v483
                %v485 = vld [vmem:[%s481 + $0x18] sm:%s474]
                %486 = vst [vmem:[%s482 + $0x18] sm:%s474] %v485
                %v487 = vld [vmem:[%s481 + $0x30] sm:%s474]
                %488 = vst [vmem:[%s482 + $0x30] sm:%s474] %v487
                %v489 = vld [vmem:[%s481 + $0x48] sm:%s474]
                %490 = vst [vmem:[%s482 + $0x48] sm:%s474] %v489
                %v491 = vld [vmem:[%s481 + $0x60] sm:%s474]
                %492 = vst [vmem:[%s482 + $0x60] sm:%s474] %v491
                %v493 = vld [vmem:[%s481 + $0x78] sm:%s474]
                %494 = vst [vmem:[%s482 + $0x78] sm:%s474] %v493
                %v495 = vld [vmem:[%s481 + $0x90] sm:%s474]
                %496 = vst [vmem:[%s482 + $0x90] sm:%s474] %v495
                %v497 = vld [vmem:[%s481 + $0xa8] sm:%s474]
                %498 = vst [vmem:[%s482 + $0xa8] sm:%s474] %v497
                %v499 = vld [vmem:[%s481 + $0xc0] sm:%s474]
                %500 = vst [vmem:[%s482 + $0xc0] sm:%s474] %v499
                %v501 = vld [vmem:[%s481 + $0xd8] sm:%s474]
                %502 = vst [vmem:[%s482 + $0xd8] sm:%s474] %v501
                %v503 = vld [vmem:[%s481 + $0xf0] sm:%s474]
                %504 = vst [vmem:[%s482 + $0xf0] sm:%s474] %v503
                %v505 = vld [vmem:[%s481 + $0x108] sm:%s474]
                %506 = vst [vmem:[%s482 + $0x108] sm:%s474] %v505
                %v507 = vld [vmem:[%s481 + $0x120] sm:%s474]
                %508 = vst [vmem:[%s482 + $0x120] sm:%s474] %v507
                %v509 = vld [vmem:[%s481 + $0x138] sm:%s474]
                %510 = vst [vmem:[%s482 + $0x138] sm:%s474] %v509
                %v511 = vld [vmem:[%s481 + $0x150] sm:%s474]
                %512 = vst [vmem:[%s482 + $0x150] sm:%s474] %v511
                %v513 = vld [vmem:[%s481 + $0x168] sm:%s474]
                %514 = vst [vmem:[%s482 + $0x168] sm:%s474] %v513
                %v515 = vld [vmem:[%s481 + $0x180] sm:%s474]
                %516 = vst [vmem:[%s482 + $0x180] sm:%s474] %v515
                %v517 = vld [vmem:[%s481 + $0x198] sm:%s474]
                %518 = vst [vmem:[%s482 + $0x198] sm:%s474] %v517
                %v519 = vld [vmem:[%s481 + $0x1b0] sm:%s474]
                %520 = vst [vmem:[%s482 + $0x1b0] sm:%s474] %v519
                %v521 = vld [vmem:[%s481 + $0x1c8] sm:%s474]
                %522 = vst [vmem:[%s482 + $0x1c8] sm:%s474] %v521
                %v523 = vld [vmem:[%s481 + $0x1e0] sm:%s474]
                %524 = vst [vmem:[%s482 + $0x1e0] sm:%s474] %v523
                %v525 = vld [vmem:[%s481 + $0x1f8] sm:%s474]
                %526 = vst [vmem:[%s482 + $0x1f8] sm:%s474] %v525
                %v527 = vld [vmem:[%s481 + $0x210] sm:%s474]
                %528 = vst [vmem:[%s482 + $0x210] sm:%s474] %v527
                %v529 = vld [vmem:[%s481 + $0x228] sm:%s474]
                %530 = vst [vmem:[%s482 + $0x228] sm:%s474] %v529
              $region97: #{tpu_custom_call.1} parent=91 // loop_footer
                %s480 = sadd.s32 1, %s476
              $region98: #{tpu_custom_call.1} parent=91 // loop_footer_branch
                %475 = sbr.rel target = $region94
              $region99: #{tpu_custom_call.1} parent=91 // loop_exit
                _
            $region92: #{tpu_custom_call.1} parent=83 // pred_fallthru
              _
            // Predicated region
            $region118: #{tpu_custom_call.1} parent=83 // pred_check
              _
            $region119: #{tpu_custom_call.1} parent=83 // pred_check_branch
              %704 = sbr.rel (0) target = $region121
            $region120: #{tpu_custom_call.1} parent=83 // pred_region
              %705 = vsyncadd %s465, 6912
            $region121: #{tpu_custom_call.1} parent=83 // pred_fallthru
              _
          $region84: #{tpu_custom_call.1} parent=77 // pred_fallthru
            _
          %s706 = smul.u32 %s444, 576
          %s707 = scalar_lea.vmem [#allocation2], %s706
          %v708 = vld [vmem:[%s707] sm:$0xff]
          %v709 = vld [vmem:[%s707 + $0x8] sm:$0xff]
          %v710 = vld [vmem:[%s707 + $0x60] sm:$0xff]
          %v711 = vld [vmem:[%s707 + $0x68] sm:$0xff]
          %v712 = vld [vmem:[%s707 + $0xc0] sm:$0xff]
          %v713 = vld [vmem:[%s707 + $0xc8] sm:$0xff]
          %v714 = vld [vmem:[%s707 + $0x120] sm:$0xff]
          %v715 = vld [vmem:[%s707 + $0x128] sm:$0xff]
          %v716 = vld [vmem:[%s1] sm:$0x1]
          %v717 = vlaneseq
          %v718 = vshrl.u32 %v717, 7
          %v719 = vsub.s32 0, %v718
          %v720 = vrot.slane %v716, %v719
          %v721 = vmul.f32 %v708, %v720
          %v722 = vmul.f32 %v709, %v720
          %v723 = vmul.f32 %v710, %v720
          %v724 = vmul.f32 %v711, %v720
          %v725 = vmul.f32 %v712, %v720
          %v726 = vmul.f32 %v713, %v720
          %v727 = vmul.f32 %v714, %v720
          %v728 = vmul.f32 %v715, %v720
          %v729 = vadd.f32 %v721, 0.0
          %v730 = vadd.f32 %v722, 0.0
          %v731 = vadd.f32 %v723, 0.0
          %v732 = vadd.f32 %v724, 0.0
          %v733 = vadd.f32 %v725, 0.0
          %v734 = vadd.f32 %v726, 0.0
          %v735 = vadd.f32 %v727, 0.0
          %v736 = vadd.f32 %v728, 0.0
          %v737 = vld [vmem:[%s707 + $0x1] sm:$0xff]
          %v738 = vld [vmem:[%s707 + $0x9] sm:$0xff]
          %v739 = vld [vmem:[%s707 + $0x61] sm:$0xff]
          %v740 = vld [vmem:[%s707 + $0x69] sm:$0xff]
          %v741 = vld [vmem:[%s707 + $0xc1] sm:$0xff]
          %v742 = vld [vmem:[%s707 + $0xc9] sm:$0xff]
          %v743 = vld [vmem:[%s707 + $0x121] sm:$0xff]
          %v744 = vld [vmem:[%s707 + $0x129] sm:$0xff]
          %v745 = vld [vmem:[%s1 + $0x1] sm:$0x1]
          %v746 = vlaneseq
          %v747 = vshrl.u32 %v746, 7
          %v748 = vsub.s32 0, %v747
          %v749 = vrot.slane %v745, %v748
          %v750 = vmul.f32 %v737, %v749
          %v751 = vmul.f32 %v738, %v749
          %v752 = vmul.f32 %v739, %v749
          %v753 = vmul.f32 %v740, %v749
          %v754 = vmul.f32 %v741, %v749
          %v755 = vmul.f32 %v742, %v749
          %v756 = vmul.f32 %v743, %v749
          %v757 = vmul.f32 %v744, %v749
          %v758 = vadd.f32 %v729, %v750
          %v759 = vadd.f32 %v730, %v751
          %v760 = vadd.f32 %v731, %v752
          %v761 = vadd.f32 %v732, %v753
          %v762 = vadd.f32 %v733, %v754
          %v763 = vadd.f32 %v734, %v755
          %v764 = vadd.f32 %v735, %v756
          %v765 = vadd.f32 %v736, %v757
          %v766 = vld [vmem:[%s707 + $0x2] sm:$0xff]
          %v767 = vld [vmem:[%s707 + $0xa] sm:$0xff]
          %v768 = vld [vmem:[%s707 + $0x62] sm:$0xff]
          %v769 = vld [vmem:[%s707 + $0x6a] sm:$0xff]
          %v770 = vld [vmem:[%s707 + $0xc2] sm:$0xff]
          %v771 = vld [vmem:[%s707 + $0xca] sm:$0xff]
          %v772 = vld [vmem:[%s707 + $0x122] sm:$0xff]
          %v773 = vld [vmem:[%s707 + $0x12a] sm:$0xff]
          %v774 = vld [vmem:[%s1 + $0x2] sm:$0x1]
          %v775 = vlaneseq
          %v776 = vshrl.u32 %v775, 7
          %v777 = vsub.s32 0, %v776
          %v778 = vrot.slane %v774, %v777
          %v779 = vmul.f32 %v766, %v778
          %v780 = vmul.f32 %v767, %v778
          %v781 = vmul.f32 %v768, %v778
          %v782 = vmul.f32 %v769, %v778
          %v783 = vmul.f32 %v770, %v778
          %v784 = vmul.f32 %v771, %v778
          %v785 = vmul.f32 %v772, %v778
          %v786 = vmul.f32 %v773, %v778
          %v787 = vadd.f32 %v758, %v779
          %v788 = vadd.f32 %v759, %v780
          %v789 = vadd.f32 %v760, %v781
          %v790 = vadd.f32 %v761, %v782
          %v791 = vadd.f32 %v762, %v783
          %v792 = vadd.f32 %v763, %v784
          %v793 = vadd.f32 %v764, %v785
          %v794 = vadd.f32 %v765, %v786
          %s795 = sadd.s32 96, %s706
          %s796 = scalar_lea.vmem [#allocation2], %s795
          %v797 = vld [vmem:[%s796] sm:$0xff]
          %v798 = vld [vmem:[%s796 + $0x8] sm:$0xff]
          %v799 = vld [vmem:[%s796 + $0x60] sm:$0xff]
          %v800 = vld [vmem:[%s796 + $0x68] sm:$0xff]
          %v801 = vld [vmem:[%s796 + $0xc0] sm:$0xff]
          %v802 = vld [vmem:[%s796 + $0xc8] sm:$0xff]
          %v803 = vld [vmem:[%s796 + $0x120] sm:$0xff]
          %v804 = vld [vmem:[%s796 + $0x128] sm:$0xff]
          %v805 = vld [vmem:[%s1 + $0x3] sm:$0x1]
          %v806 = vlaneseq
          %v807 = vshrl.u32 %v806, 7
          %v808 = vsub.s32 0, %v807
          %v809 = vrot.slane %v805, %v808
          %v810 = vmul.f32 %v797, %v809
          %v811 = vmul.f32 %v798, %v809
          %v812 = vmul.f32 %v799, %v809
          %v813 = vmul.f32 %v800, %v809
          %v814 = vmul.f32 %v801, %v809
          %v815 = vmul.f32 %v802, %v809
          %v816 = vmul.f32 %v803, %v809
          %v817 = vmul.f32 %v804, %v809
          %v818 = vadd.f32 %v787, %v810
          %v819 = vadd.f32 %v788, %v811
          %v820 = vadd.f32 %v789, %v812
          %v821 = vadd.f32 %v790, %v813
          %v822 = vadd.f32 %v791, %v814
          %v823 = vadd.f32 %v792, %v815
          %v824 = vadd.f32 %v793, %v816
          %v825 = vadd.f32 %v794, %v817
          %v826 = vld [vmem:[%s796 + $0x1] sm:$0xff]
          %v827 = vld [vmem:[%s796 + $0x9] sm:$0xff]
          %v828 = vld [vmem:[%s796 + $0x61] sm:$0xff]
          %v829 = vld [vmem:[%s796 + $0x69] sm:$0xff]
          %v830 = vld [vmem:[%s796 + $0xc1] sm:$0xff]
          %v831 = vld [vmem:[%s796 + $0xc9] sm:$0xff]
          %v832 = vld [vmem:[%s796 + $0x121] sm:$0xff]
          %v833 = vld [vmem:[%s796 + $0x129] sm:$0xff]
          %v834 = vld [vmem:[%s1 + $0x4] sm:$0x1]
          %v835 = vlaneseq
          %v836 = vshrl.u32 %v835, 7
          %v837 = vsub.s32 0, %v836
          %v838 = vrot.slane %v834, %v837
          %v839 = vmul.f32 %v826, %v838
          %v840 = vmul.f32 %v827, %v838
          %v841 = vmul.f32 %v828, %v838
          %v842 = vmul.f32 %v829, %v838
          %v843 = vmul.f32 %v830, %v838
          %v844 = vmul.f32 %v831, %v838
          %v845 = vmul.f32 %v832, %v838
          %v846 = vmul.f32 %v833, %v838
          %v847 = vadd.f32 %v818, %v839
          %v848 = vadd.f32 %v819, %v840
          %v849 = vadd.f32 %v820, %v841
          %v850 = vadd.f32 %v821, %v842
          %v851 = vadd.f32 %v822, %v843
          %v852 = vadd.f32 %v823, %v844
          %v853 = vadd.f32 %v824, %v845
          %v854 = vadd.f32 %v825, %v846
          %v855 = vld [vmem:[%s796 + $0x2] sm:$0xff]
          %v856 = vld [vmem:[%s796 + $0xa] sm:$0xff]
          %v857 = vld [vmem:[%s796 + $0x62] sm:$0xff]
          %v858 = vld [vmem:[%s796 + $0x6a] sm:$0xff]
          %v859 = vld [vmem:[%s796 + $0xc2] sm:$0xff]
          %v860 = vld [vmem:[%s796 + $0xca] sm:$0xff]
          %v861 = vld [vmem:[%s796 + $0x122] sm:$0xff]
          %v862 = vld [vmem:[%s796 + $0x12a] sm:$0xff]
          %v863 = vld [vmem:[%s1 + $0x5] sm:$0x1]
          %v864 = vlaneseq
          %v865 = vshrl.u32 %v864, 7
          %v866 = vsub.s32 0, %v865
          %v867 = vrot.slane %v863, %v866
          %v868 = vmul.f32 %v855, %v867
          %v869 = vmul.f32 %v856, %v867
          %v870 = vmul.f32 %v857, %v867
          %v871 = vmul.f32 %v858, %v867
          %v872 = vmul.f32 %v859, %v867
          %v873 = vmul.f32 %v860, %v867
          %v874 = vmul.f32 %v861, %v867
          %v875 = vmul.f32 %v862, %v867
          %v876 = vadd.f32 %v847, %v868
          %v877 = vadd.f32 %v848, %v869
          %v878 = vadd.f32 %v849, %v870
          %v879 = vadd.f32 %v850, %v871
          %v880 = vadd.f32 %v851, %v872
          %v881 = vadd.f32 %v852, %v873
          %v882 = vadd.f32 %v853, %v874
          %v883 = vadd.f32 %v854, %v875
          %s884 = sadd.s32 192, %s706
          %s885 = scalar_lea.vmem [#allocation2], %s884
          %v886 = vld [vmem:[%s885] sm:$0xff]
          %v887 = vld [vmem:[%s885 + $0x8] sm:$0xff]
          %v888 = vld [vmem:[%s885 + $0x60] sm:$0xff]
          %v889 = vld [vmem:[%s885 + $0x68] sm:$0xff]
          %v890 = vld [vmem:[%s885 + $0xc0] sm:$0xff]
          %v891 = vld [vmem:[%s885 + $0xc8] sm:$0xff]
          %v892 = vld [vmem:[%s885 + $0x120] sm:$0xff]
          %v893 = vld [vmem:[%s885 + $0x128] sm:$0xff]
          %v894 = vld [vmem:[%s1 + $0x6] sm:$0x1]
          %v895 = vlaneseq
          %v896 = vshrl.u32 %v895, 7
          %v897 = vsub.s32 0, %v896
          %v898 = vrot.slane %v894, %v897
          %v899 = vmul.f32 %v886, %v898
          %v900 = vmul.f32 %v887, %v898
          %v901 = vmul.f32 %v888, %v898
          %v902 = vmul.f32 %v889, %v898
          %v903 = vmul.f32 %v890, %v898
          %v904 = vmul.f32 %v891, %v898
          %v905 = vmul.f32 %v892, %v898
          %v906 = vmul.f32 %v893, %v898
          %v907 = vadd.f32 %v876, %v899
          %v908 = vadd.f32 %v877, %v900
          %v909 = vadd.f32 %v878, %v901
          %v910 = vadd.f32 %v879, %v902
          %v911 = vadd.f32 %v880, %v903
          %v912 = vadd.f32 %v881, %v904
          %v913 = vadd.f32 %v882, %v905
          %v914 = vadd.f32 %v883, %v906
          %v915 = vld [vmem:[%s885 + $0x1] sm:$0xff]
          %v916 = vld [vmem:[%s885 + $0x9] sm:$0xff]
          %v917 = vld [vmem:[%s885 + $0x61] sm:$0xff]
          %v918 = vld [vmem:[%s885 + $0x69] sm:$0xff]
          %v919 = vld [vmem:[%s885 + $0xc1] sm:$0xff]
          %v920 = vld [vmem:[%s885 + $0xc9] sm:$0xff]
          %v921 = vld [vmem:[%s885 + $0x121] sm:$0xff]
          %v922 = vld [vmem:[%s885 + $0x129] sm:$0xff]
          %v923 = vld [vmem:[%s1 + $0x7] sm:$0x1]
          %v924 = vlaneseq
          %v925 = vshrl.u32 %v924, 7
          %v926 = vsub.s32 0, %v925
          %v927 = vrot.slane %v923, %v926
          %v928 = vmul.f32 %v915, %v927
          %v929 = vmul.f32 %v916, %v927
          %v930 = vmul.f32 %v917, %v927
          %v931 = vmul.f32 %v918, %v927
          %v932 = vmul.f32 %v919, %v927
          %v933 = vmul.f32 %v920, %v927
          %v934 = vmul.f32 %v921, %v927
          %v935 = vmul.f32 %v922, %v927
          %v936 = vadd.f32 %v907, %v928
          %v937 = vadd.f32 %v908, %v929
          %v938 = vadd.f32 %v909, %v930
          %v939 = vadd.f32 %v910, %v931
          %v940 = vadd.f32 %v911, %v932
          %v941 = vadd.f32 %v912, %v933
          %v942 = vadd.f32 %v913, %v934
          %v943 = vadd.f32 %v914, %v935
          %v944 = vld [vmem:[%s885 + $0x2] sm:$0xff]
          %v945 = vld [vmem:[%s885 + $0xa] sm:$0xff]
          %v946 = vld [vmem:[%s885 + $0x62] sm:$0xff]
          %v947 = vld [vmem:[%s885 + $0x6a] sm:$0xff]
          %v948 = vld [vmem:[%s885 + $0xc2] sm:$0xff]
          %v949 = vld [vmem:[%s885 + $0xca] sm:$0xff]
          %v950 = vld [vmem:[%s885 + $0x122] sm:$0xff]
          %v951 = vld [vmem:[%s885 + $0x12a] sm:$0xff]
          %v952 = vld [vmem:[%s1 + $0x8] sm:$0x1]
          %v953 = vlaneseq
          %v954 = vshrl.u32 %v953, 7
          %v955 = vsub.s32 0, %v954
          %v956 = vrot.slane %v952, %v955
          %v957 = vmul.f32 %v944, %v956
          %v958 = vmul.f32 %v945, %v956
          %v959 = vmul.f32 %v946, %v956
          %v960 = vmul.f32 %v947, %v956
          %v961 = vmul.f32 %v948, %v956
          %v962 = vmul.f32 %v949, %v956
          %v963 = vmul.f32 %v950, %v956
          %v964 = vmul.f32 %v951, %v956
          %v965 = vadd.f32 %v936, %v957
          %v966 = vadd.f32 %v937, %v958
          %v967 = vadd.f32 %v938, %v959
          %v968 = vadd.f32 %v939, %v960
          %v969 = vadd.f32 %v940, %v961
          %v970 = vadd.f32 %v941, %v962
          %v971 = vadd.f32 %v942, %v963
          %v972 = vadd.f32 %v943, %v964
          %s973 = sadd.s32 24, %s706
          %s974 = scalar_lea.vmem [#allocation2], %s973
          %v975 = vld [vmem:[%s974] sm:$0xff]
          %v976 = vld [vmem:[%s974 + $0x8] sm:$0xff]
          %v977 = vld [vmem:[%s974 + $0x60] sm:$0xff]
          %v978 = vld [vmem:[%s974 + $0x68] sm:$0xff]
          %v979 = vld [vmem:[%s974 + $0xc0] sm:$0xff]
          %v980 = vld [vmem:[%s974 + $0xc8] sm:$0xff]
          %v981 = vld [vmem:[%s974 + $0x120] sm:$0xff]
          %v982 = vld [vmem:[%s974 + $0x128] sm:$0xff]
          %v983 = vld [vmem:[%s1 + $0x9] sm:$0x1]
          %v984 = vlaneseq
          %v985 = vshrl.u32 %v984, 7
          %v986 = vsub.s32 0, %v985
          %v987 = vrot.slane %v983, %v986
          %v988 = vmul.f32 %v975, %v987
          %v989 = vmul.f32 %v976, %v987
          %v990 = vmul.f32 %v977, %v987
          %v991 = vmul.f32 %v978, %v987
          %v992 = vmul.f32 %v979, %v987
          %v993 = vmul.f32 %v980, %v987
          %v994 = vmul.f32 %v981, %v987
          %v995 = vmul.f32 %v982, %v987
          %v996 = vadd.f32 %v965, %v988
          %v997 = vadd.f32 %v966, %v989
          %v998 = vadd.f32 %v967, %v990
          %v999 = vadd.f32 %v968, %v991
          %v1000 = vadd.f32 %v969, %v992
          %v1001 = vadd.f32 %v970, %v993
          %v1002 = vadd.f32 %v971, %v994
          %v1003 = vadd.f32 %v972, %v995
          %v1004 = vld [vmem:[%s974 + $0x1] sm:$0xff]
          %v1005 = vld [vmem:[%s974 + $0x9] sm:$0xff]
          %v1006 = vld [vmem:[%s974 + $0x61] sm:$0xff]
          %v1007 = vld [vmem:[%s974 + $0x69] sm:$0xff]
          %v1008 = vld [vmem:[%s974 + $0xc1] sm:$0xff]
          %v1009 = vld [vmem:[%s974 + $0xc9] sm:$0xff]
          %v1010 = vld [vmem:[%s974 + $0x121] sm:$0xff]
          %v1011 = vld [vmem:[%s974 + $0x129] sm:$0xff]
          %v1012 = vld [vmem:[%s1 + $0xa] sm:$0x1]
          %v1013 = vlaneseq
          %v1014 = vshrl.u32 %v1013, 7
          %v1015 = vsub.s32 0, %v1014
          %v1016 = vrot.slane %v1012, %v1015
          %v1017 = vmul.f32 %v1004, %v1016
          %v1018 = vmul.f32 %v1005, %v1016
          %v1019 = vmul.f32 %v1006, %v1016
          %v1020 = vmul.f32 %v1007, %v1016
          %v1021 = vmul.f32 %v1008, %v1016
          %v1022 = vmul.f32 %v1009, %v1016
          %v1023 = vmul.f32 %v1010, %v1016
          %v1024 = vmul.f32 %v1011, %v1016
          %v1025 = vadd.f32 %v996, %v1017
          %v1026 = vadd.f32 %v997, %v1018
          %v1027 = vadd.f32 %v998, %v1019
          %v1028 = vadd.f32 %v999, %v1020
          %v1029 = vadd.f32 %v1000, %v1021
          %v1030 = vadd.f32 %v1001, %v1022
          %v1031 = vadd.f32 %v1002, %v1023
          %v1032 = vadd.f32 %v1003, %v1024
          %v1033 = vld [vmem:[%s974 + $0x2] sm:$0xff]
          %v1034 = vld [vmem:[%s974 + $0xa] sm:$0xff]
          %v1035 = vld [vmem:[%s974 + $0x62] sm:$0xff]
          %v1036 = vld [vmem:[%s974 + $0x6a] sm:$0xff]
          %v1037 = vld [vmem:[%s974 + $0xc2] sm:$0xff]
          %v1038 = vld [vmem:[%s974 + $0xca] sm:$0xff]
          %v1039 = vld [vmem:[%s974 + $0x122] sm:$0xff]
          %v1040 = vld [vmem:[%s974 + $0x12a] sm:$0xff]
          %v1041 = vld [vmem:[%s1 + $0xb] sm:$0x1]
          %v1042 = vlaneseq
          %v1043 = vshrl.u32 %v1042, 7
          %v1044 = vsub.s32 0, %v1043
          %v1045 = vrot.slane %v1041, %v1044
          %v1046 = vmul.f32 %v1033, %v1045
          %v1047 = vmul.f32 %v1034, %v1045
          %v1048 = vmul.f32 %v1035, %v1045
          %v1049 = vmul.f32 %v1036, %v1045
          %v1050 = vmul.f32 %v1037, %v1045
          %v1051 = vmul.f32 %v1038, %v1045
          %v1052 = vmul.f32 %v1039, %v1045
          %v1053 = vmul.f32 %v1040, %v1045
          %v1054 = vadd.f32 %v1025, %v1046
          %v1055 = vadd.f32 %v1026, %v1047
          %v1056 = vadd.f32 %v1027, %v1048
          %v1057 = vadd.f32 %v1028, %v1049
          %v1058 = vadd.f32 %v1029, %v1050
          %v1059 = vadd.f32 %v1030, %v1051
          %v1060 = vadd.f32 %v1031, %v1052
          %v1061 = vadd.f32 %v1032, %v1053
          %s1062 = sadd.s32 120, %s706
          %s1063 = scalar_lea.vmem [#allocation2], %s1062
          %v1064 = vld [vmem:[%s1063] sm:$0xff]
          %v1065 = vld [vmem:[%s1063 + $0x8] sm:$0xff]
          %v1066 = vld [vmem:[%s1063 + $0x60] sm:$0xff]
          %v1067 = vld [vmem:[%s1063 + $0x68] sm:$0xff]
          %v1068 = vld [vmem:[%s1063 + $0xc0] sm:$0xff]
          %v1069 = vld [vmem:[%s1063 + $0xc8] sm:$0xff]
          %v1070 = vld [vmem:[%s1063 + $0x120] sm:$0xff]
          %v1071 = vld [vmem:[%s1063 + $0x128] sm:$0xff]
          %v1072 = vld [vmem:[%s1 + $0xc] sm:$0x1]
          %v1073 = vlaneseq
          %v1074 = vshrl.u32 %v1073, 7
          %v1075 = vsub.s32 0, %v1074
          %v1076 = vrot.slane %v1072, %v1075
          %v1077 = vmul.f32 %v1064, %v1076
          %v1078 = vmul.f32 %v1065, %v1076
          %v1079 = vmul.f32 %v1066, %v1076
          %v1080 = vmul.f32 %v1067, %v1076
          %v1081 = vmul.f32 %v1068, %v1076
          %v1082 = vmul.f32 %v1069, %v1076
          %v1083 = vmul.f32 %v1070, %v1076
          %v1084 = vmul.f32 %v1071, %v1076
          %v1085 = vadd.f32 %v1054, %v1077
          %v1086 = vadd.f32 %v1055, %v1078
          %v1087 = vadd.f32 %v1056, %v1079
          %v1088 = vadd.f32 %v1057, %v1080
          %v1089 = vadd.f32 %v1058, %v1081
          %v1090 = vadd.f32 %v1059, %v1082
          %v1091 = vadd.f32 %v1060, %v1083
          %v1092 = vadd.f32 %v1061, %v1084
          %v1093 = vld [vmem:[%s1063 + $0x1] sm:$0xff]
          %v1094 = vld [vmem:[%s1063 + $0x9] sm:$0xff]
          %v1095 = vld [vmem:[%s1063 + $0x61] sm:$0xff]
          %v1096 = vld [vmem:[%s1063 + $0x69] sm:$0xff]
          %v1097 = vld [vmem:[%s1063 + $0xc1] sm:$0xff]
          %v1098 = vld [vmem:[%s1063 + $0xc9] sm:$0xff]
          %v1099 = vld [vmem:[%s1063 + $0x121] sm:$0xff]
          %v1100 = vld [vmem:[%s1063 + $0x129] sm:$0xff]
          %v1101 = vld [vmem:[%s1 + $0xd] sm:$0x1]
          %v1102 = vlaneseq
          %v1103 = vshrl.u32 %v1102, 7
          %v1104 = vsub.s32 0, %v1103
          %v1105 = vrot.slane %v1101, %v1104
          %v1106 = vmul.f32 %v1093, %v1105
          %v1107 = vmul.f32 %v1094, %v1105
          %v1108 = vmul.f32 %v1095, %v1105
          %v1109 = vmul.f32 %v1096, %v1105
          %v1110 = vmul.f32 %v1097, %v1105
          %v1111 = vmul.f32 %v1098, %v1105
          %v1112 = vmul.f32 %v1099, %v1105
          %v1113 = vmul.f32 %v1100, %v1105
          %v1114 = vadd.f32 %v1085, %v1106
          %v1115 = vadd.f32 %v1086, %v1107
          %v1116 = vadd.f32 %v1087, %v1108
          %v1117 = vadd.f32 %v1088, %v1109
          %v1118 = vadd.f32 %v1089, %v1110
          %v1119 = vadd.f32 %v1090, %v1111
          %v1120 = vadd.f32 %v1091, %v1112
          %v1121 = vadd.f32 %v1092, %v1113
          %v1122 = vld [vmem:[%s1063 + $0x2] sm:$0xff]
          %v1123 = vld [vmem:[%s1063 + $0xa] sm:$0xff]
          %v1124 = vld [vmem:[%s1063 + $0x62] sm:$0xff]
          %v1125 = vld [vmem:[%s1063 + $0x6a] sm:$0xff]
          %v1126 = vld [vmem:[%s1063 + $0xc2] sm:$0xff]
          %v1127 = vld [vmem:[%s1063 + $0xca] sm:$0xff]
          %v1128 = vld [vmem:[%s1063 + $0x122] sm:$0xff]
          %v1129 = vld [vmem:[%s1063 + $0x12a] sm:$0xff]
          %v1130 = vld [vmem:[%s1 + $0xe] sm:$0x1]
          %v1131 = vlaneseq
          %v1132 = vshrl.u32 %v1131, 7
          %v1133 = vsub.s32 0, %v1132
          %v1134 = vrot.slane %v1130, %v1133
          %v1135 = vmul.f32 %v1122, %v1134
          %v1136 = vmul.f32 %v1123, %v1134
          %v1137 = vmul.f32 %v1124, %v1134
          %v1138 = vmul.f32 %v1125, %v1134
          %v1139 = vmul.f32 %v1126, %v1134
          %v1140 = vmul.f32 %v1127, %v1134
          %v1141 = vmul.f32 %v1128, %v1134
          %v1142 = vmul.f32 %v1129, %v1134
          %v1143 = vadd.f32 %v1114, %v1135
          %v1144 = vadd.f32 %v1115, %v1136
          %v1145 = vadd.f32 %v1116, %v1137
          %v1146 = vadd.f32 %v1117, %v1138
          %v1147 = vadd.f32 %v1118, %v1139
          %v1148 = vadd.f32 %v1119, %v1140
          %v1149 = vadd.f32 %v1120, %v1141
          %v1150 = vadd.f32 %v1121, %v1142
          %s1151 = sadd.s32 216, %s706
          %s1152 = scalar_lea.vmem [#allocation2], %s1151
          %v1153 = vld [vmem:[%s1152] sm:$0xff]
          %v1154 = vld [vmem:[%s1152 + $0x8] sm:$0xff]
          %v1155 = vld [vmem:[%s1152 + $0x60] sm:$0xff]
          %v1156 = vld [vmem:[%s1152 + $0x68] sm:$0xff]
          %v1157 = vld [vmem:[%s1152 + $0xc0] sm:$0xff]
          %v1158 = vld [vmem:[%s1152 + $0xc8] sm:$0xff]
          %v1159 = vld [vmem:[%s1152 + $0x120] sm:$0xff]
          %v1160 = vld [vmem:[%s1152 + $0x128] sm:$0xff]
          %v1161 = vld [vmem:[%s1 + $0xf] sm:$0x1]
          %v1162 = vlaneseq
          %v1163 = vshrl.u32 %v1162, 7
          %v1164 = vsub.s32 0, %v1163
          %v1165 = vrot.slane %v1161, %v1164
          %v1166 = vmul.f32 %v1153, %v1165
          %v1167 = vmul.f32 %v1154, %v1165
          %v1168 = vmul.f32 %v1155, %v1165
          %v1169 = vmul.f32 %v1156, %v1165
          %v1170 = vmul.f32 %v1157, %v1165
          %v1171 = vmul.f32 %v1158, %v1165
          %v1172 = vmul.f32 %v1159, %v1165
          %v1173 = vmul.f32 %v1160, %v1165
          %v1174 = vadd.f32 %v1143, %v1166
          %v1175 = vadd.f32 %v1144, %v1167
          %v1176 = vadd.f32 %v1145, %v1168
          %v1177 = vadd.f32 %v1146, %v1169
          %v1178 = vadd.f32 %v1147, %v1170
          %v1179 = vadd.f32 %v1148, %v1171
          %v1180 = vadd.f32 %v1149, %v1172
          %v1181 = vadd.f32 %v1150, %v1173
          %v1182 = vld [vmem:[%s1152 + $0x1] sm:$0xff]
          %v1183 = vld [vmem:[%s1152 + $0x9] sm:$0xff]
          %v1184 = vld [vmem:[%s1152 + $0x61] sm:$0xff]
          %v1185 = vld [vmem:[%s1152 + $0x69] sm:$0xff]
          %v1186 = vld [vmem:[%s1152 + $0xc1] sm:$0xff]
          %v1187 = vld [vmem:[%s1152 + $0xc9] sm:$0xff]
          %v1188 = vld [vmem:[%s1152 + $0x121] sm:$0xff]
          %v1189 = vld [vmem:[%s1152 + $0x129] sm:$0xff]
          %v1190 = vld [vmem:[%s1 + $0x10] sm:$0x1]
          %v1191 = vlaneseq
          %v1192 = vshrl.u32 %v1191, 7
          %v1193 = vsub.s32 0, %v1192
          %v1194 = vrot.slane %v1190, %v1193
          %v1195 = vmul.f32 %v1182, %v1194
          %v1196 = vmul.f32 %v1183, %v1194
          %v1197 = vmul.f32 %v1184, %v1194
          %v1198 = vmul.f32 %v1185, %v1194
          %v1199 = vmul.f32 %v1186, %v1194
          %v1200 = vmul.f32 %v1187, %v1194
          %v1201 = vmul.f32 %v1188, %v1194
          %v1202 = vmul.f32 %v1189, %v1194
          %v1203 = vadd.f32 %v1174, %v1195
          %v1204 = vadd.f32 %v1175, %v1196
          %v1205 = vadd.f32 %v1176, %v1197
          %v1206 = vadd.f32 %v1177, %v1198
          %v1207 = vadd.f32 %v1178, %v1199
          %v1208 = vadd.f32 %v1179, %v1200
          %v1209 = vadd.f32 %v1180, %v1201
          %v1210 = vadd.f32 %v1181, %v1202
          %v1211 = vld [vmem:[%s1152 + $0x2] sm:$0xff]
          %v1212 = vld [vmem:[%s1152 + $0xa] sm:$0xff]
          %v1213 = vld [vmem:[%s1152 + $0x62] sm:$0xff]
          %v1214 = vld [vmem:[%s1152 + $0x6a] sm:$0xff]
          %v1215 = vld [vmem:[%s1152 + $0xc2] sm:$0xff]
          %v1216 = vld [vmem:[%s1152 + $0xca] sm:$0xff]
          %v1217 = vld [vmem:[%s1152 + $0x122] sm:$0xff]
          %v1218 = vld [vmem:[%s1152 + $0x12a] sm:$0xff]
          %v1219 = vld [vmem:[%s1 + $0x11] sm:$0x1]
          %v1220 = vlaneseq
          %v1221 = vshrl.u32 %v1220, 7
          %v1222 = vsub.s32 0, %v1221
          %v1223 = vrot.slane %v1219, %v1222
          %v1224 = vmul.f32 %v1211, %v1223
          %v1225 = vmul.f32 %v1212, %v1223
          %v1226 = vmul.f32 %v1213, %v1223
          %v1227 = vmul.f32 %v1214, %v1223
          %v1228 = vmul.f32 %v1215, %v1223
          %v1229 = vmul.f32 %v1216, %v1223
          %v1230 = vmul.f32 %v1217, %v1223
          %v1231 = vmul.f32 %v1218, %v1223
          %v1232 = vadd.f32 %v1203, %v1224
          %v1233 = vadd.f32 %v1204, %v1225
          %v1234 = vadd.f32 %v1205, %v1226
          %v1235 = vadd.f32 %v1206, %v1227
          %v1236 = vadd.f32 %v1207, %v1228
          %v1237 = vadd.f32 %v1208, %v1229
          %v1238 = vadd.f32 %v1209, %v1230
          %v1239 = vadd.f32 %v1210, %v1231
          %s1240 = sadd.s32 48, %s706
          %s1241 = scalar_lea.vmem [#allocation2], %s1240
          %v1242 = vld [vmem:[%s1241] sm:$0xff]
          %v1243 = vld [vmem:[%s1241 + $0x8] sm:$0xff]
          %v1244 = vld [vmem:[%s1241 + $0x60] sm:$0xff]
          %v1245 = vld [vmem:[%s1241 + $0x68] sm:$0xff]
          %v1246 = vld [vmem:[%s1241 + $0xc0] sm:$0xff]
          %v1247 = vld [vmem:[%s1241 + $0xc8] sm:$0xff]
          %v1248 = vld [vmem:[%s1241 + $0x120] sm:$0xff]
          %v1249 = vld [vmem:[%s1241 + $0x128] sm:$0xff]
          %v1250 = vld [vmem:[%s1 + $0x12] sm:$0x1]
          %v1251 = vlaneseq
          %v1252 = vshrl.u32 %v1251, 7
          %v1253 = vsub.s32 0, %v1252
          %v1254 = vrot.slane %v1250, %v1253
          %v1255 = vmul.f32 %v1242, %v1254
          %v1256 = vmul.f32 %v1243, %v1254
          %v1257 = vmul.f32 %v1244, %v1254
          %v1258 = vmul.f32 %v1245, %v1254
          %v1259 = vmul.f32 %v1246, %v1254
          %v1260 = vmul.f32 %v1247, %v1254
          %v1261 = vmul.f32 %v1248, %v1254
          %v1262 = vmul.f32 %v1249, %v1254
          %v1263 = vadd.f32 %v1232, %v1255
          %v1264 = vadd.f32 %v1233, %v1256
          %v1265 = vadd.f32 %v1234, %v1257
          %v1266 = vadd.f32 %v1235, %v1258
          %v1267 = vadd.f32 %v1236, %v1259
          %v1268 = vadd.f32 %v1237, %v1260
          %v1269 = vadd.f32 %v1238, %v1261
          %v1270 = vadd.f32 %v1239, %v1262
          %v1271 = vld [vmem:[%s1241 + $0x1] sm:$0xff]
          %v1272 = vld [vmem:[%s1241 + $0x9] sm:$0xff]
          %v1273 = vld [vmem:[%s1241 + $0x61] sm:$0xff]
          %v1274 = vld [vmem:[%s1241 + $0x69] sm:$0xff]
          %v1275 = vld [vmem:[%s1241 + $0xc1] sm:$0xff]
          %v1276 = vld [vmem:[%s1241 + $0xc9] sm:$0xff]
          %v1277 = vld [vmem:[%s1241 + $0x121] sm:$0xff]
          %v1278 = vld [vmem:[%s1241 + $0x129] sm:$0xff]
          %v1279 = vld [vmem:[%s1 + $0x13] sm:$0x1]
          %v1280 = vlaneseq
          %v1281 = vshrl.u32 %v1280, 7
          %v1282 = vsub.s32 0, %v1281
          %v1283 = vrot.slane %v1279, %v1282
          %v1284 = vmul.f32 %v1271, %v1283
          %v1285 = vmul.f32 %v1272, %v1283
          %v1286 = vmul.f32 %v1273, %v1283
          %v1287 = vmul.f32 %v1274, %v1283
          %v1288 = vmul.f32 %v1275, %v1283
          %v1289 = vmul.f32 %v1276, %v1283
          %v1290 = vmul.f32 %v1277, %v1283
          %v1291 = vmul.f32 %v1278, %v1283
          %v1292 = vadd.f32 %v1263, %v1284
          %v1293 = vadd.f32 %v1264, %v1285
          %v1294 = vadd.f32 %v1265, %v1286
          %v1295 = vadd.f32 %v1266, %v1287
          %v1296 = vadd.f32 %v1267, %v1288
          %v1297 = vadd.f32 %v1268, %v1289
          %v1298 = vadd.f32 %v1269, %v1290
          %v1299 = vadd.f32 %v1270, %v1291
          %v1300 = vld [vmem:[%s1241 + $0x2] sm:$0xff]
          %v1301 = vld [vmem:[%s1241 + $0xa] sm:$0xff]
          %v1302 = vld [vmem:[%s1241 + $0x62] sm:$0xff]
          %v1303 = vld [vmem:[%s1241 + $0x6a] sm:$0xff]
          %v1304 = vld [vmem:[%s1241 + $0xc2] sm:$0xff]
          %v1305 = vld [vmem:[%s1241 + $0xca] sm:$0xff]
          %v1306 = vld [vmem:[%s1241 + $0x122] sm:$0xff]
          %v1307 = vld [vmem:[%s1241 + $0x12a] sm:$0xff]
          %v1308 = vld [vmem:[%s1 + $0x14] sm:$0x1]
          %v1309 = vlaneseq
          %v1310 = vshrl.u32 %v1309, 7
          %v1311 = vsub.s32 0, %v1310
          %v1312 = vrot.slane %v1308, %v1311
          %v1313 = vmul.f32 %v1300, %v1312
          %v1314 = vmul.f32 %v1301, %v1312
          %v1315 = vmul.f32 %v1302, %v1312
          %v1316 = vmul.f32 %v1303, %v1312
          %v1317 = vmul.f32 %v1304, %v1312
          %v1318 = vmul.f32 %v1305, %v1312
          %v1319 = vmul.f32 %v1306, %v1312
          %v1320 = vmul.f32 %v1307, %v1312
          %v1321 = vadd.f32 %v1292, %v1313
          %v1322 = vadd.f32 %v1293, %v1314
          %v1323 = vadd.f32 %v1294, %v1315
          %v1324 = vadd.f32 %v1295, %v1316
          %v1325 = vadd.f32 %v1296, %v1317
          %v1326 = vadd.f32 %v1297, %v1318
          %v1327 = vadd.f32 %v1298, %v1319
          %v1328 = vadd.f32 %v1299, %v1320
          %s1329 = sadd.s32 144, %s706
          %s1330 = scalar_lea.vmem [#allocation2], %s1329
          %v1331 = vld [vmem:[%s1330] sm:$0xff]
          %v1332 = vld [vmem:[%s1330 + $0x8] sm:$0xff]
          %v1333 = vld [vmem:[%s1330 + $0x60] sm:$0xff]
          %v1334 = vld [vmem:[%s1330 + $0x68] sm:$0xff]
          %v1335 = vld [vmem:[%s1330 + $0xc0] sm:$0xff]
          %v1336 = vld [vmem:[%s1330 + $0xc8] sm:$0xff]
          %v1337 = vld [vmem:[%s1330 + $0x120] sm:$0xff]
          %v1338 = vld [vmem:[%s1330 + $0x128] sm:$0xff]
          %v1339 = vld [vmem:[%s1 + $0x15] sm:$0x1]
          %v1340 = vlaneseq
          %v1341 = vshrl.u32 %v1340, 7
          %v1342 = vsub.s32 0, %v1341
          %v1343 = vrot.slane %v1339, %v1342
          %v1344 = vmul.f32 %v1331, %v1343
          %v1345 = vmul.f32 %v1332, %v1343
          %v1346 = vmul.f32 %v1333, %v1343
          %v1347 = vmul.f32 %v1334, %v1343
          %v1348 = vmul.f32 %v1335, %v1343
          %v1349 = vmul.f32 %v1336, %v1343
          %v1350 = vmul.f32 %v1337, %v1343
          %v1351 = vmul.f32 %v1338, %v1343
          %v1352 = vadd.f32 %v1321, %v1344
          %v1353 = vadd.f32 %v1322, %v1345
          %v1354 = vadd.f32 %v1323, %v1346
          %v1355 = vadd.f32 %v1324, %v1347
          %v1356 = vadd.f32 %v1325, %v1348
          %v1357 = vadd.f32 %v1326, %v1349
          %v1358 = vadd.f32 %v1327, %v1350
          %v1359 = vadd.f32 %v1328, %v1351
          %v1360 = vld [vmem:[%s1330 + $0x1] sm:$0xff]
          %v1361 = vld [vmem:[%s1330 + $0x9] sm:$0xff]
          %v1362 = vld [vmem:[%s1330 + $0x61] sm:$0xff]
          %v1363 = vld [vmem:[%s1330 + $0x69] sm:$0xff]
          %v1364 = vld [vmem:[%s1330 + $0xc1] sm:$0xff]
          %v1365 = vld [vmem:[%s1330 + $0xc9] sm:$0xff]
          %v1366 = vld [vmem:[%s1330 + $0x121] sm:$0xff]
          %v1367 = vld [vmem:[%s1330 + $0x129] sm:$0xff]
          %v1368 = vld [vmem:[%s1 + $0x16] sm:$0x1]
          %v1369 = vlaneseq
          %v1370 = vshrl.u32 %v1369, 7
          %v1371 = vsub.s32 0, %v1370
          %v1372 = vrot.slane %v1368, %v1371
          %v1373 = vmul.f32 %v1360, %v1372
          %v1374 = vmul.f32 %v1361, %v1372
          %v1375 = vmul.f32 %v1362, %v1372
          %v1376 = vmul.f32 %v1363, %v1372
          %v1377 = vmul.f32 %v1364, %v1372
          %v1378 = vmul.f32 %v1365, %v1372
          %v1379 = vmul.f32 %v1366, %v1372
          %v1380 = vmul.f32 %v1367, %v1372
          %v1381 = vadd.f32 %v1352, %v1373
          %v1382 = vadd.f32 %v1353, %v1374
          %v1383 = vadd.f32 %v1354, %v1375
          %v1384 = vadd.f32 %v1355, %v1376
          %v1385 = vadd.f32 %v1356, %v1377
          %v1386 = vadd.f32 %v1357, %v1378
          %v1387 = vadd.f32 %v1358, %v1379
          %v1388 = vadd.f32 %v1359, %v1380
          %v1389 = vld [vmem:[%s1330 + $0x2] sm:$0xff]
          %v1390 = vld [vmem:[%s1330 + $0xa] sm:$0xff]
          %v1391 = vld [vmem:[%s1330 + $0x62] sm:$0xff]
          %v1392 = vld [vmem:[%s1330 + $0x6a] sm:$0xff]
          %v1393 = vld [vmem:[%s1330 + $0xc2] sm:$0xff]
          %v1394 = vld [vmem:[%s1330 + $0xca] sm:$0xff]
          %v1395 = vld [vmem:[%s1330 + $0x122] sm:$0xff]
          %v1396 = vld [vmem:[%s1330 + $0x12a] sm:$0xff]
          %v1397 = vld [vmem:[%s1 + $0x17] sm:$0x1]
          %v1398 = vlaneseq
          %v1399 = vshrl.u32 %v1398, 7
          %v1400 = vsub.s32 0, %v1399
          %v1401 = vrot.slane %v1397, %v1400
          %v1402 = vmul.f32 %v1389, %v1401
          %v1403 = vmul.f32 %v1390, %v1401
          %v1404 = vmul.f32 %v1391, %v1401
          %v1405 = vmul.f32 %v1392, %v1401
          %v1406 = vmul.f32 %v1393, %v1401
          %v1407 = vmul.f32 %v1394, %v1401
          %v1408 = vmul.f32 %v1395, %v1401
          %v1409 = vmul.f32 %v1396, %v1401
          %v1410 = vadd.f32 %v1381, %v1402
          %v1411 = vadd.f32 %v1382, %v1403
          %v1412 = vadd.f32 %v1383, %v1404
          %v1413 = vadd.f32 %v1384, %v1405
          %v1414 = vadd.f32 %v1385, %v1406
          %v1415 = vadd.f32 %v1386, %v1407
          %v1416 = vadd.f32 %v1387, %v1408
          %v1417 = vadd.f32 %v1388, %v1409
          %s1418 = sadd.s32 240, %s706
          %s1419 = scalar_lea.vmem [#allocation2], %s1418
          %v1420 = vld [vmem:[%s1419] sm:$0xff]
          %v1421 = vld [vmem:[%s1419 + $0x8] sm:$0xff]
          %v1422 = vld [vmem:[%s1419 + $0x60] sm:$0xff]
          %v1423 = vld [vmem:[%s1419 + $0x68] sm:$0xff]
          %v1424 = vld [vmem:[%s1419 + $0xc0] sm:$0xff]
          %v1425 = vld [vmem:[%s1419 + $0xc8] sm:$0xff]
          %v1426 = vld [vmem:[%s1419 + $0x120] sm:$0xff]
          %v1427 = vld [vmem:[%s1419 + $0x128] sm:$0xff]
          %v1428 = vld [vmem:[%s1 + $0x18] sm:$0x1]
          %v1429 = vlaneseq
          %v1430 = vshrl.u32 %v1429, 7
          %v1431 = vsub.s32 0, %v1430
          %v1432 = vrot.slane %v1428, %v1431
          %v1433 = vmul.f32 %v1420, %v1432
          %v1434 = vmul.f32 %v1421, %v1432
          %v1435 = vmul.f32 %v1422, %v1432
          %v1436 = vmul.f32 %v1423, %v1432
          %v1437 = vmul.f32 %v1424, %v1432
          %v1438 = vmul.f32 %v1425, %v1432
          %v1439 = vmul.f32 %v1426, %v1432
          %v1440 = vmul.f32 %v1427, %v1432
          %v1441 = vadd.f32 %v1410, %v1433
          %v1442 = vadd.f32 %v1411, %v1434
          %v1443 = vadd.f32 %v1412, %v1435
          %v1444 = vadd.f32 %v1413, %v1436
          %v1445 = vadd.f32 %v1414, %v1437
          %v1446 = vadd.f32 %v1415, %v1438
          %v1447 = vadd.f32 %v1416, %v1439
          %v1448 = vadd.f32 %v1417, %v1440
          %v1449 = vld [vmem:[%s1419 + $0x1] sm:$0xff]
          %v1450 = vld [vmem:[%s1419 + $0x9] sm:$0xff]
          %v1451 = vld [vmem:[%s1419 + $0x61] sm:$0xff]
          %v1452 = vld [vmem:[%s1419 + $0x69] sm:$0xff]
          %v1453 = vld [vmem:[%s1419 + $0xc1] sm:$0xff]
          %v1454 = vld [vmem:[%s1419 + $0xc9] sm:$0xff]
          %v1455 = vld [vmem:[%s1419 + $0x121] sm:$0xff]
          %v1456 = vld [vmem:[%s1419 + $0x129] sm:$0xff]
          %v1457 = vld [vmem:[%s1 + $0x19] sm:$0x1]
          %v1458 = vlaneseq
          %v1459 = vshrl.u32 %v1458, 7
          %v1460 = vsub.s32 0, %v1459
          %v1461 = vrot.slane %v1457, %v1460
          %v1462 = vmul.f32 %v1449, %v1461
          %v1463 = vmul.f32 %v1450, %v1461
          %v1464 = vmul.f32 %v1451, %v1461
          %v1465 = vmul.f32 %v1452, %v1461
          %v1466 = vmul.f32 %v1453, %v1461
          %v1467 = vmul.f32 %v1454, %v1461
          %v1468 = vmul.f32 %v1455, %v1461
          %v1469 = vmul.f32 %v1456, %v1461
          %v1470 = vadd.f32 %v1441, %v1462
          %v1471 = vadd.f32 %v1442, %v1463
          %v1472 = vadd.f32 %v1443, %v1464
          %v1473 = vadd.f32 %v1444, %v1465
          %v1474 = vadd.f32 %v1445, %v1466
          %v1475 = vadd.f32 %v1446, %v1467
          %v1476 = vadd.f32 %v1447, %v1468
          %v1477 = vadd.f32 %v1448, %v1469
          %v1478 = vld [vmem:[%s1419 + $0x2] sm:$0xff]
          %v1479 = vld [vmem:[%s1419 + $0xa] sm:$0xff]
          %v1480 = vld [vmem:[%s1419 + $0x62] sm:$0xff]
          %v1481 = vld [vmem:[%s1419 + $0x6a] sm:$0xff]
          %v1482 = vld [vmem:[%s1419 + $0xc2] sm:$0xff]
          %v1483 = vld [vmem:[%s1419 + $0xca] sm:$0xff]
          %v1484 = vld [vmem:[%s1419 + $0x122] sm:$0xff]
          %v1485 = vld [vmem:[%s1419 + $0x12a] sm:$0xff]
          %v1486 = vld [vmem:[%s1 + $0x1a] sm:$0x1]
          %v1487 = vlaneseq
          %v1488 = vshrl.u32 %v1487, 7
          %v1489 = vsub.s32 0, %v1488
          %v1490 = vrot.slane %v1486, %v1489
          %v1491 = vmul.f32 %v1478, %v1490
          %v1492 = vmul.f32 %v1479, %v1490
          %v1493 = vmul.f32 %v1480, %v1490
          %v1494 = vmul.f32 %v1481, %v1490
          %v1495 = vmul.f32 %v1482, %v1490
          %v1496 = vmul.f32 %v1483, %v1490
          %v1497 = vmul.f32 %v1484, %v1490
          %v1498 = vmul.f32 %v1485, %v1490
          %v1499 = vadd.f32 %v1470, %v1491
          %v1500 = vadd.f32 %v1471, %v1492
          %v1501 = vadd.f32 %v1472, %v1493
          %v1502 = vadd.f32 %v1473, %v1494
          %v1503 = vadd.f32 %v1474, %v1495
          %v1504 = vadd.f32 %v1475, %v1496
          %v1505 = vadd.f32 %v1476, %v1497
          %v1506 = vadd.f32 %v1477, %v1498
          %s1507 = sadd.s32 72, %s706
          %s1508 = scalar_lea.vmem [#allocation2], %s1507
          %v1509 = vld [vmem:[%s1508] sm:$0xff]
          %v1510 = vld [vmem:[%s1508 + $0x8] sm:$0xff]
          %v1511 = vld [vmem:[%s1508 + $0x60] sm:$0xff]
          %v1512 = vld [vmem:[%s1508 + $0x68] sm:$0xff]
          %v1513 = vld [vmem:[%s1508 + $0xc0] sm:$0xff]
          %v1514 = vld [vmem:[%s1508 + $0xc8] sm:$0xff]
          %v1515 = vld [vmem:[%s1508 + $0x120] sm:$0xff]
          %v1516 = vld [vmem:[%s1508 + $0x128] sm:$0xff]
          %v1517 = vld [vmem:[%s1 + $0x1b] sm:$0x1]
          %v1518 = vlaneseq
          %v1519 = vshrl.u32 %v1518, 7
          %v1520 = vsub.s32 0, %v1519
          %v1521 = vrot.slane %v1517, %v1520
          %v1522 = vmul.f32 %v1509, %v1521
          %v1523 = vmul.f32 %v1510, %v1521
          %v1524 = vmul.f32 %v1511, %v1521
          %v1525 = vmul.f32 %v1512, %v1521
          %v1526 = vmul.f32 %v1513, %v1521
          %v1527 = vmul.f32 %v1514, %v1521
          %v1528 = vmul.f32 %v1515, %v1521
          %v1529 = vmul.f32 %v1516, %v1521
          %v1530 = vadd.f32 %v1499, %v1522
          %v1531 = vadd.f32 %v1500, %v1523
          %v1532 = vadd.f32 %v1501, %v1524
          %v1533 = vadd.f32 %v1502, %v1525
          %v1534 = vadd.f32 %v1503, %v1526
          %v1535 = vadd.f32 %v1504, %v1527
          %v1536 = vadd.f32 %v1505, %v1528
          %v1537 = vadd.f32 %v1506, %v1529
          %v1538 = vld [vmem:[%s1508 + $0x1] sm:$0xff]
          %v1539 = vld [vmem:[%s1508 + $0x9] sm:$0xff]
          %v1540 = vld [vmem:[%s1508 + $0x61] sm:$0xff]
          %v1541 = vld [vmem:[%s1508 + $0x69] sm:$0xff]
          %v1542 = vld [vmem:[%s1508 + $0xc1] sm:$0xff]
          %v1543 = vld [vmem:[%s1508 + $0xc9] sm:$0xff]
          %v1544 = vld [vmem:[%s1508 + $0x121] sm:$0xff]
          %v1545 = vld [vmem:[%s1508 + $0x129] sm:$0xff]
          %v1546 = vld [vmem:[%s1 + $0x1c] sm:$0x1]
          %v1547 = vlaneseq
          %v1548 = vshrl.u32 %v1547, 7
          %v1549 = vsub.s32 0, %v1548
          %v1550 = vrot.slane %v1546, %v1549
          %v1551 = vmul.f32 %v1538, %v1550
          %v1552 = vmul.f32 %v1539, %v1550
          %v1553 = vmul.f32 %v1540, %v1550
          %v1554 = vmul.f32 %v1541, %v1550
          %v1555 = vmul.f32 %v1542, %v1550
          %v1556 = vmul.f32 %v1543, %v1550
          %v1557 = vmul.f32 %v1544, %v1550
          %v1558 = vmul.f32 %v1545, %v1550
          %v1559 = vadd.f32 %v1530, %v1551
          %v1560 = vadd.f32 %v1531, %v1552
          %v1561 = vadd.f32 %v1532, %v1553
          %v1562 = vadd.f32 %v1533, %v1554
          %v1563 = vadd.f32 %v1534, %v1555
          %v1564 = vadd.f32 %v1535, %v1556
          %v1565 = vadd.f32 %v1536, %v1557
          %v1566 = vadd.f32 %v1537, %v1558
          %v1567 = vld [vmem:[%s1508 + $0x2] sm:$0xff]
          %v1568 = vld [vmem:[%s1508 + $0xa] sm:$0xff]
          %v1569 = vld [vmem:[%s1508 + $0x62] sm:$0xff]
          %v1570 = vld [vmem:[%s1508 + $0x6a] sm:$0xff]
          %v1571 = vld [vmem:[%s1508 + $0xc2] sm:$0xff]
          %v1572 = vld [vmem:[%s1508 + $0xca] sm:$0xff]
          %v1573 = vld [vmem:[%s1508 + $0x122] sm:$0xff]
          %v1574 = vld [vmem:[%s1508 + $0x12a] sm:$0xff]
          %v1575 = vld [vmem:[%s1 + $0x1d] sm:$0x1]
          %v1576 = vlaneseq
          %v1577 = vshrl.u32 %v1576, 7
          %v1578 = vsub.s32 0, %v1577
          %v1579 = vrot.slane %v1575, %v1578
          %v1580 = vmul.f32 %v1567, %v1579
          %v1581 = vmul.f32 %v1568, %v1579
          %v1582 = vmul.f32 %v1569, %v1579
          %v1583 = vmul.f32 %v1570, %v1579
          %v1584 = vmul.f32 %v1571, %v1579
          %v1585 = vmul.f32 %v1572, %v1579
          %v1586 = vmul.f32 %v1573, %v1579
          %v1587 = vmul.f32 %v1574, %v1579
          %v1588 = vadd.f32 %v1559, %v1580
          %v1589 = vadd.f32 %v1560, %v1581
          %v1590 = vadd.f32 %v1561, %v1582
          %v1591 = vadd.f32 %v1562, %v1583
          %v1592 = vadd.f32 %v1563, %v1584
          %v1593 = vadd.f32 %v1564, %v1585
          %v1594 = vadd.f32 %v1565, %v1586
          %v1595 = vadd.f32 %v1566, %v1587
          %s1596 = sadd.s32 168, %s706
          %s1597 = scalar_lea.vmem [#allocation2], %s1596
          %v1598 = vld [vmem:[%s1597] sm:$0xff]
          %v1599 = vld [vmem:[%s1597 + $0x8] sm:$0xff]
          %v1600 = vld [vmem:[%s1597 + $0x60] sm:$0xff]
          %v1601 = vld [vmem:[%s1597 + $0x68] sm:$0xff]
          %v1602 = vld [vmem:[%s1597 + $0xc0] sm:$0xff]
          %v1603 = vld [vmem:[%s1597 + $0xc8] sm:$0xff]
          %v1604 = vld [vmem:[%s1597 + $0x120] sm:$0xff]
          %v1605 = vld [vmem:[%s1597 + $0x128] sm:$0xff]
          %v1606 = vld [vmem:[%s1 + $0x1e] sm:$0x1]
          %v1607 = vlaneseq
          %v1608 = vshrl.u32 %v1607, 7
          %v1609 = vsub.s32 0, %v1608
          %v1610 = vrot.slane %v1606, %v1609
          %v1611 = vmul.f32 %v1598, %v1610
          %v1612 = vmul.f32 %v1599, %v1610
          %v1613 = vmul.f32 %v1600, %v1610
          %v1614 = vmul.f32 %v1601, %v1610
          %v1615 = vmul.f32 %v1602, %v1610
          %v1616 = vmul.f32 %v1603, %v1610
          %v1617 = vmul.f32 %v1604, %v1610
          %v1618 = vmul.f32 %v1605, %v1610
          %v1619 = vadd.f32 %v1588, %v1611
          %v1620 = vadd.f32 %v1589, %v1612
          %v1621 = vadd.f32 %v1590, %v1613
          %v1622 = vadd.f32 %v1591, %v1614
          %v1623 = vadd.f32 %v1592, %v1615
          %v1624 = vadd.f32 %v1593, %v1616
          %v1625 = vadd.f32 %v1594, %v1617
          %v1626 = vadd.f32 %v1595, %v1618
          %v1627 = vld [vmem:[%s1597 + $0x1] sm:$0xff]
          %v1628 = vld [vmem:[%s1597 + $0x9] sm:$0xff]
          %v1629 = vld [vmem:[%s1597 + $0x61] sm:$0xff]
          %v1630 = vld [vmem:[%s1597 + $0x69] sm:$0xff]
          %v1631 = vld [vmem:[%s1597 + $0xc1] sm:$0xff]
          %v1632 = vld [vmem:[%s1597 + $0xc9] sm:$0xff]
          %v1633 = vld [vmem:[%s1597 + $0x121] sm:$0xff]
          %v1634 = vld [vmem:[%s1597 + $0x129] sm:$0xff]
          %v1635 = vld [vmem:[%s1 + $0x1f] sm:$0x1]
          %v1636 = vlaneseq
          %v1637 = vshrl.u32 %v1636, 7
          %v1638 = vsub.s32 0, %v1637
          %v1639 = vrot.slane %v1635, %v1638
          %v1640 = vmul.f32 %v1627, %v1639
          %v1641 = vmul.f32 %v1628, %v1639
          %v1642 = vmul.f32 %v1629, %v1639
          %v1643 = vmul.f32 %v1630, %v1639
          %v1644 = vmul.f32 %v1631, %v1639
          %v1645 = vmul.f32 %v1632, %v1639
          %v1646 = vmul.f32 %v1633, %v1639
          %v1647 = vmul.f32 %v1634, %v1639
          %v1648 = vadd.f32 %v1619, %v1640
          %v1649 = vadd.f32 %v1620, %v1641
          %v1650 = vadd.f32 %v1621, %v1642
          %v1651 = vadd.f32 %v1622, %v1643
          %v1652 = vadd.f32 %v1623, %v1644
          %v1653 = vadd.f32 %v1624, %v1645
          %v1654 = vadd.f32 %v1625, %v1646
          %v1655 = vadd.f32 %v1626, %v1647
          %v1656 = vld [vmem:[%s1597 + $0x2] sm:$0xff]
          %v1657 = vld [vmem:[%s1597 + $0xa] sm:$0xff]
          %v1658 = vld [vmem:[%s1597 + $0x62] sm:$0xff]
          %v1659 = vld [vmem:[%s1597 + $0x6a] sm:$0xff]
          %v1660 = vld [vmem:[%s1597 + $0xc2] sm:$0xff]
          %v1661 = vld [vmem:[%s1597 + $0xca] sm:$0xff]
          %v1662 = vld [vmem:[%s1597 + $0x122] sm:$0xff]
          %v1663 = vld [vmem:[%s1597 + $0x12a] sm:$0xff]
          %v1664 = vld [vmem:[%s1 + $0x20] sm:$0x1]
          %v1665 = vlaneseq
          %v1666 = vshrl.u32 %v1665, 7
          %v1667 = vsub.s32 0, %v1666
          %v1668 = vrot.slane %v1664, %v1667
          %v1669 = vmul.f32 %v1656, %v1668
          %v1670 = vmul.f32 %v1657, %v1668
          %v1671 = vmul.f32 %v1658, %v1668
          %v1672 = vmul.f32 %v1659, %v1668
          %v1673 = vmul.f32 %v1660, %v1668
          %v1674 = vmul.f32 %v1661, %v1668
          %v1675 = vmul.f32 %v1662, %v1668
          %v1676 = vmul.f32 %v1663, %v1668
          %v1677 = vadd.f32 %v1648, %v1669
          %v1678 = vadd.f32 %v1649, %v1670
          %v1679 = vadd.f32 %v1650, %v1671
          %v1680 = vadd.f32 %v1651, %v1672
          %v1681 = vadd.f32 %v1652, %v1673
          %v1682 = vadd.f32 %v1653, %v1674
          %v1683 = vadd.f32 %v1654, %v1675
          %v1684 = vadd.f32 %v1655, %v1676
          %s1685 = sadd.s32 264, %s706
          %s1686 = scalar_lea.vmem [#allocation2], %s1685
          %v1687 = vld [vmem:[%s1686] sm:$0xff]
          %v1688 = vld [vmem:[%s1686 + $0x8] sm:$0xff]
          %v1689 = vld [vmem:[%s1686 + $0x60] sm:$0xff]
          %v1690 = vld [vmem:[%s1686 + $0x68] sm:$0xff]
          %v1691 = vld [vmem:[%s1686 + $0xc0] sm:$0xff]
          %v1692 = vld [vmem:[%s1686 + $0xc8] sm:$0xff]
          %v1693 = vld [vmem:[%s1686 + $0x120] sm:$0xff]
          %v1694 = vld [vmem:[%s1686 + $0x128] sm:$0xff]
          %v1695 = vld [vmem:[%s1 + $0x21] sm:$0x1]
          %v1696 = vlaneseq
          %v1697 = vshrl.u32 %v1696, 7
          %v1698 = vsub.s32 0, %v1697
          %v1699 = vrot.slane %v1695, %v1698
          %v1700 = vmul.f32 %v1687, %v1699
          %v1701 = vmul.f32 %v1688, %v1699
          %v1702 = vmul.f32 %v1689, %v1699
          %v1703 = vmul.f32 %v1690, %v1699
          %v1704 = vmul.f32 %v1691, %v1699
          %v1705 = vmul.f32 %v1692, %v1699
          %v1706 = vmul.f32 %v1693, %v1699
          %v1707 = vmul.f32 %v1694, %v1699
          %v1708 = vadd.f32 %v1677, %v1700
          %v1709 = vadd.f32 %v1678, %v1701
          %v1710 = vadd.f32 %v1679, %v1702
          %v1711 = vadd.f32 %v1680, %v1703
          %v1712 = vadd.f32 %v1681, %v1704
          %v1713 = vadd.f32 %v1682, %v1705
          %v1714 = vadd.f32 %v1683, %v1706
          %v1715 = vadd.f32 %v1684, %v1707
          %v1716 = vld [vmem:[%s1686 + $0x1] sm:$0xff]
          %v1717 = vld [vmem:[%s1686 + $0x9] sm:$0xff]
          %v1718 = vld [vmem:[%s1686 + $0x61] sm:$0xff]
          %v1719 = vld [vmem:[%s1686 + $0x69] sm:$0xff]
          %v1720 = vld [vmem:[%s1686 + $0xc1] sm:$0xff]
          %v1721 = vld [vmem:[%s1686 + $0xc9] sm:$0xff]
          %v1722 = vld [vmem:[%s1686 + $0x121] sm:$0xff]
          %v1723 = vld [vmem:[%s1686 + $0x129] sm:$0xff]
          %v1724 = vld [vmem:[%s1 + $0x22] sm:$0x1]
          %v1725 = vlaneseq
          %v1726 = vshrl.u32 %v1725, 7
          %v1727 = vsub.s32 0, %v1726
          %v1728 = vrot.slane %v1724, %v1727
          %v1729 = vmul.f32 %v1716, %v1728
          %v1730 = vmul.f32 %v1717, %v1728
          %v1731 = vmul.f32 %v1718, %v1728
          %v1732 = vmul.f32 %v1719, %v1728
          %v1733 = vmul.f32 %v1720, %v1728
          %v1734 = vmul.f32 %v1721, %v1728
          %v1735 = vmul.f32 %v1722, %v1728
          %v1736 = vmul.f32 %v1723, %v1728
          %v1737 = vadd.f32 %v1708, %v1729
          %v1738 = vadd.f32 %v1709, %v1730
          %v1739 = vadd.f32 %v1710, %v1731
          %v1740 = vadd.f32 %v1711, %v1732
          %v1741 = vadd.f32 %v1712, %v1733
          %v1742 = vadd.f32 %v1713, %v1734
          %v1743 = vadd.f32 %v1714, %v1735
          %v1744 = vadd.f32 %v1715, %v1736
          %v1745 = vld [vmem:[%s1686 + $0x2] sm:$0xff]
          %v1746 = vld [vmem:[%s1686 + $0xa] sm:$0xff]
          %v1747 = vld [vmem:[%s1686 + $0x62] sm:$0xff]
          %v1748 = vld [vmem:[%s1686 + $0x6a] sm:$0xff]
          %v1749 = vld [vmem:[%s1686 + $0xc2] sm:$0xff]
          %v1750 = vld [vmem:[%s1686 + $0xca] sm:$0xff]
          %v1751 = vld [vmem:[%s1686 + $0x122] sm:$0xff]
          %v1752 = vld [vmem:[%s1686 + $0x12a] sm:$0xff]
          %v1753 = vld [vmem:[%s1 + $0x23] sm:$0x1]
          %v1754 = vlaneseq
          %v1755 = vshrl.u32 %v1754, 7
          %v1756 = vsub.s32 0, %v1755
          %v1757 = vrot.slane %v1753, %v1756
          %v1758 = vmul.f32 %v1745, %v1757
          %v1759 = vmul.f32 %v1746, %v1757
          %v1760 = vmul.f32 %v1747, %v1757
          %v1761 = vmul.f32 %v1748, %v1757
          %v1762 = vmul.f32 %v1749, %v1757
          %v1763 = vmul.f32 %v1750, %v1757
          %v1764 = vmul.f32 %v1751, %v1757
          %v1765 = vmul.f32 %v1752, %v1757
          %v1766 = vadd.f32 %v1737, %v1758
          %v1767 = vadd.f32 %v1738, %v1759
          %v1768 = vadd.f32 %v1739, %v1760
          %v1769 = vadd.f32 %v1740, %v1761
          %v1770 = vadd.f32 %v1741, %v1762
          %v1771 = vadd.f32 %v1742, %v1763
          %v1772 = vadd.f32 %v1743, %v1764
          %v1773 = vadd.f32 %v1744, %v1765
          %v1774 = vld [vmem:[%s2] sm:$0x1]
          %v1776 = vlaneseq
          %v1777 = vshrl.u32 %v1776, 7
          %v1778 = vsub.s32 0, %v1777
          %v1779 = vrot.slane %v1774, %v1778
          %v1781 = vadd.f32 %v1766, %v1779
          %v1782 = vadd.f32 %v1767, %v1779
          %v1783 = vadd.f32 %v1768, %v1779
          %v1784 = vadd.f32 %v1769, %v1779
          %v1785 = vadd.f32 %v1770, %v1779
          %v1786 = vadd.f32 %v1771, %v1779
          %v1787 = vadd.f32 %v1772, %v1779
          %v1788 = vadd.f32 %v1773, %v1779
          %v1789 = vpack.c.bf16 %v1782, %v1781
          %v1790 = vpack.c.bf16 %v1784, %v1783
          %v1791 = vpack.c.bf16 %v1786, %v1785
          %v1792 = vpack.c.bf16 %v1788, %v1787
          %v1793 = vld [vmem:[%s3] sm:$0xf]
          %v1794 = vld [vmem:[%s3 + $0x4] sm:$0xf]
          %v1795 = vld [vmem:[%s3 + $0x8] sm:$0xf]
          %v1796 = vld [vmem:[%s3 + $0xc] sm:$0xf]
          %v1797 = vld [vmem:[%s3 + $0x10] sm:$0xf]
          %v1798 = vld [vmem:[%s3 + $0x14] sm:$0xf]
          %v1799 = vld [vmem:[%s3 + $0x18] sm:$0xf]
          %v1800 = vld [vmem:[%s3 + $0x1c] sm:$0xf]
          %v1801 = vld [vmem:[%s3 + $0x20] sm:$0xf]
          %v1802 = vld [vmem:[%s3 + $0x24] sm:$0xf]
          %v1803 = vld [vmem:[%s3 + $0x28] sm:$0xf]
          %v1804 = vld [vmem:[%s3 + $0x2c] sm:$0xf]
          %v1805 = vld [vmem:[%s3 + $0x30] sm:$0xf]
          %v1806 = vld [vmem:[%s3 + $0x34] sm:$0xf]
          %v1807 = vld [vmem:[%s3 + $0x38] sm:$0xf]
          %v1808 = vld [vmem:[%s3 + $0x3c] sm:$0xf]
          %v1809 = vld [vmem:[%s4] sm:$0x1]
          %v1811 = vlaneseq
          %v1812 = vshrl.u32 %v1811, 7
          %v1813 = vsub.s32 0, %v1812
          %v1814 = vrot.slane %v1809, %v1813
          %v1832 = vunpack.c.l.b16 %v1793
          %v1833 = vunpack.c.l.b16 %v1794
          %v1834 = vunpack.c.l.b16 %v1795
          %v1835 = vunpack.c.l.b16 %v1796
          %v1836 = vunpack.c.l.b16 %v1797
          %v1837 = vunpack.c.l.b16 %v1798
          %v1838 = vunpack.c.l.b16 %v1799
          %v1839 = vunpack.c.l.b16 %v1800
          %v1840 = vunpack.c.l.b16 %v1801
          %v1841 = vunpack.c.l.b16 %v1802
          %v1842 = vunpack.c.l.b16 %v1803
          %v1843 = vunpack.c.l.b16 %v1804
          %v1844 = vunpack.c.l.b16 %v1805
          %v1845 = vunpack.c.l.b16 %v1806
          %v1846 = vunpack.c.l.b16 %v1807
          %v1847 = vunpack.c.l.b16 %v1808
          %v1848 = vpack.c.b16 %v1833, %v1832
          %v1849 = vpack.c.b16 %v1835, %v1834
          %v1850 = vpack.c.b16 %v1837, %v1836
          %v1851 = vpack.c.b16 %v1839, %v1838
          %v1852 = vpack.c.b16 %v1841, %v1840
          %v1853 = vpack.c.b16 %v1843, %v1842
          %v1854 = vpack.c.b16 %v1845, %v1844
          %v1855 = vpack.c.b16 %v1847, %v1846
          %1864 = vmatprep.subr.bf16.mxu0 0
          %1865 = vmatpush1.bf16.msra.mxu0 %v1848
          %1866 = vmatprep.subr.bf16.mxu0 0
          %1867 = vmatpush1.bf16.msra.mxu0 %v1849
          %1868 = vmatprep.subr.bf16.mxu0 0
          %1869 = vmatpush1.bf16.msra.mxu0 %v1850
          %1870 = vmatprep.subr.bf16.mxu0 0
          %1871 = vmatpush1.bf16.msra.mxu0 %v1851
          %1872 = vmatprep.subr.bf16.mxu0 0
          %1873 = vmatpush1.bf16.msra.mxu0 %v1852
          %1874 = vmatprep.subr.bf16.mxu0 0
          %1875 = vmatpush1.bf16.msra.mxu0 %v1853
          %1876 = vmatprep.subr.bf16.mxu0 0
          %1877 = vmatpush1.bf16.msra.mxu0 %v1854
          %1878 = vmatprep.subr.bf16.mxu0 0
          %1879 = vmatpush1.bf16.msra.mxu0 %v1855
          %1880 = vmatprep.subr.bf16.mxu0 0
          %1881 = vmatpush1.bf16.msra.mxu0 0
          %1882 = vmatprep.subr.bf16.mxu0 0
          %1883 = vmatpush1.bf16.msra.mxu0 0
          %1884 = vmatprep.subr.bf16.mxu0 0
          %1885 = vmatpush1.bf16.msra.mxu0 0
          %1886 = vmatprep.subr.bf16.mxu0 0
          %1887 = vmatpush1.bf16.msra.mxu0 0
          %1888 = vmatprep.subr.bf16.mxu0 0
          %1889 = vmatpush1.bf16.msra.mxu0 0
          %1890 = vmatprep.subr.bf16.mxu0 0
          %1891 = vmatpush1.bf16.msra.mxu0 0
          %1892 = vmatprep.subr.bf16.mxu0 0
          %1893 = vmatpush1.bf16.msra.mxu0 0
          %1894 = vmatprep.subr.bf16.mxu0 0
          %1895 = vmatpush1.bf16.msra.mxu0 0
          %1896 = vmatprep.mubr.bf16.mxu0 0
          %1897 = vmatmul.mubr.bf16.gmra.mrb[0].mxu0 %v1789
          %v1898 = vpop.f32.mrb[0].mxu0
          %v1899 = vadd.f32 %v1814, %v1898
          %v1900 = vpop.f32.mrb[0].mxu0
          %v1901 = vpop.f32.mrb[0].mxu0
          %v1902 = vadd.f32 %v1814, %v1901
          %v1903 = vpop.f32.mrb[0].mxu0
          %1904 = vmatprep.mubr.bf16.mxu0 0
          %1905 = vmatmul.mubr.bf16.gmra.mrb[0].mxu0 %v1790
          %v1906 = vpop.f32.mrb[0].mxu0
          %v1907 = vadd.f32 %v1814, %v1906
          %v1908 = vpop.f32.mrb[0].mxu0
          %v1909 = vpop.f32.mrb[0].mxu0
          %v1910 = vadd.f32 %v1814, %v1909
          %v1911 = vpop.f32.mrb[0].mxu0
          %1912 = vmatprep.mubr.bf16.mxu0 0
          %1913 = vmatmul.mubr.bf16.gmra.mrb[0].mxu0 %v1791
          %v1914 = vpop.f32.mrb[0].mxu0
          %v1915 = vadd.f32 %v1814, %v1914
          %v1916 = vpop.f32.mrb[0].mxu0
          %v1917 = vpop.f32.mrb[0].mxu0
          %v1918 = vadd.f32 %v1814, %v1917
          %v1919 = vpop.f32.mrb[0].mxu0
          %1920 = vmatprep.mubr.bf16.mxu0 0
          %1921 = vmatmul.mubr.bf16.gmra.mrb[0].mxu0 %v1792
          %v1922 = vpop.f32.mrb[0].mxu0
          %v1923 = vadd.f32 %v1814, %v1922
          %v1924 = vpop.f32.mrb[0].mxu0
          %v1925 = vpop.f32.mrb[0].mxu0
          %v1926 = vadd.f32 %v1814, %v1925
          %v1927 = vpop.f32.mrb[0].mxu0
          %1928 = vdwg.mxu0
          %s1929 = smul.u32 %s439, 64
          %s1930 = scalar_lea.vmem %s190, %s1929 [#allocation4]
          %1931 = vst [vmem:[%s1930] sm:$0xff] %v1899
          %1932 = vst [vmem:[%s1930 + $0x8] sm:$0xff] %v1902
          %1933 = vst [vmem:[%s1930 + $0x10] sm:$0xff] %v1907
          %1934 = vst [vmem:[%s1930 + $0x18] sm:$0xff] %v1910
          %1935 = vst [vmem:[%s1930 + $0x20] sm:$0xff] %v1915
          %1936 = vst [vmem:[%s1930 + $0x28] sm:$0xff] %v1918
          %1937 = vst [vmem:[%s1930 + $0x30] sm:$0xff] %v1923
          %1938 = vst [vmem:[%s1930 + $0x38] sm:$0xff] %v1926
        $region78: #{tpu_custom_call.1} parent=35 // loop_footer
          %s443 = sadd.s32 1, %s439
        $region79: #{tpu_custom_call.1} parent=35 // loop_footer_branch
          %438 = sbr.rel target = $region75
        $region80: #{tpu_custom_call.1} parent=35 // loop_exit
          _
        %s1939 = sand.u32 %s125, 1
        %s1940 = scalar_lea.sflag [#allocation5], %s1939
        %s1941 = sand.u32 %s125, 1
        %s1942 = smul.addr %s1941, 128
        %s1943 = scalar_lea.vmem [#allocation4], %s1942
        // Predicated region
        $region122: #{tpu_custom_call.1} parent=35 // pred_check
          %p1944 = pneg %p135
        $region123: #{tpu_custom_call.1} parent=35 // pred_check_branch
          %1946 = sbr.rel (%p1944) target = $region125
        $region124: #{tpu_custom_call.1} parent=35 // pred_region
          %s1947 = smul.u32 16, %s24
          %s1949 = ssub.s32 2048, 2048
          %1950 = vsyncadd %s1940, %s1949
          %s1951 = smul.addr %s23, 32
          %s1952 = sadd.s32 %s1947, %s1951
          %s1953 = smul.addr %s1952, 128
          %s1954 = scalar_lea.hbm %s5, %s1953
          %s1955 = sshll.u32 %s1943, 4
          %s1956 = int_to_ptr.vmem [resolvable:$true] %s1955
          %1961 = dma.vmem_to_hbm [thread:$0]  %s1956, 2048, %s1954, %s1940, 128, 128, 8
        $region125: #{tpu_custom_call.1} parent=35 // pred_fallthru
          _
      $region36: #{tpu_custom_call.1} parent=5 // pred_fallthru
        _
      %p1962 = scmp.le.s32.totalorder 2, %s14
      // Predicated region
      $region126: #{tpu_custom_call.1} parent=5 // pred_check
        %p1963 = pneg %p1962
      $region127: #{tpu_custom_call.1} parent=5 // pred_check_branch
        %1965 = sbr.rel (%p1963) target = $region129
      $region128: #{tpu_custom_call.1} parent=5 // pred_region
        %s1966 = ssub.s32 %s14, 2
        // Predicated region
        $region130: #{tpu_custom_call.1} parent=128 // pred_check
          %p1967 = pneg %p141
        $region131: #{tpu_custom_call.1} parent=128 // pred_check_branch
          %1969 = sbr.rel (%p1967) target = $region133
        $region132: #{tpu_custom_call.1} parent=128 // pred_region
          %s1970 = sand.u32 %s126, 1
          %s1971 = scalar_lea.sflag [#allocation5], %s1970
          %s1972 = sand.u32 %s126, 1
          %s1973 = smul.addr %s1972, 128
          %s1974 = scalar_lea.vmem [#allocation4], %s1973
          %1975 = dma.done %s1971, 2048
        $region133: #{tpu_custom_call.1} parent=128 // pred_fallthru
          _
      $region129: #{tpu_custom_call.1} parent=5 // pred_fallthru
        _
    $region6: #{tpu_custom_call.1} parent=1 // loop_footer
      %s18 = sadd.s32 1, %s14
    $region7: #{tpu_custom_call.1} parent=1 // loop_footer_branch
      %13 = sbr.rel target = $region3
    $region8: #{tpu_custom_call.1} parent=1 // loop_exit
      _
    %1976 = vsyncpa [#allocation5], 1
    %s1977 = scalar_lea.sflag [#allocation5], 1
    %1978 = vsyncpa %s1977, 1
  %1979 = vsyncmov [#allocation3]
  %s1980 = vpop.sfrf %1979
  %p1981 = scmp.eq.s32.totalorder %s1980, 0
  %p1982 = pneg %p1981
  %1984 = shalt.err (%p1982)
  %s1985 = scalar_lea.sflag [#allocation3], 1
  %1986 = vsyncmov %s1985
  %s1987 = vpop.sfrf %1986
  %p1988 = scmp.eq.s32.totalorder %s1987, 0
  %p1989 = pneg %p1988
  %1991 = shalt.err (%p1989)

</llo_original>
